<compile_context>
chip_gen: v7x
topology: tpu7x:2x2x1
jax: 0.10.0
libtpu: 0.0.40
codegen_flags: <defaults>
</compile_context>

<pallas_src>
import functools

import jax
import jax.numpy as jnp
from jax.experimental import pallas as pl
from jax.experimental.pallas import tpu as pltpu

# Logical (PyTorch) dims
LATENT_DIM = 20
HIDDEN_DIM2 = 400
HIDDEN_DIM1 = 800
OUTPUT_DIM = 784
DROPOUT_RATE = 0.1      # unused at inference (identity)
BN_EPS = 1e-5
NEG_SLOPE = 0.01


def _round_up(n, m=128):
    return (n + m - 1) // m * m


# Lane-dense padded *output* widths used inside the kernel (K of layer 1 is NOT
# padded; see header).
H2_PAD = _round_up(HIDDEN_DIM2)       # 512
H1_PAD = _round_up(HIDDEN_DIM1)       # 896
OUT_PAD = _round_up(OUTPUT_DIM)       # 896


def _vmem_physical_bytes():
    """Per-core physical VMEM, generation-aware, with a conservative fallback."""
    try:
        info = pltpu.get_tpu_info()
        cap = getattr(info, "vmem_capacity_bytes", None)
        if cap:
            return int(cap)
    except Exception:
        pass
    return 64 << 20   # assume the smallest (v7x per-TensorCore)


_VMEM_PHYSICAL = _vmem_physical_bytes()


def _leaky_relu(x):
    return jnp.where(x > 0, x, NEG_SLOPE * x)


def _batch_norm_train(h, gamma, beta):
    """Training-mode BatchNorm1d folded to a per-feature scale/shift.

    Stats via sum(h)/sum(h*h) in f32 (biased variance, clamped at 0).
    """
    inv_n = 1.0 / h.shape[0]
    s1 = jnp.sum(h, axis=0, keepdims=True)
    s2 = jnp.sum(h * h, axis=0, keepdims=True)
    mean = s1 * inv_n
    var = jnp.maximum(s2 * inv_n - mean * mean, 0.0)
    scale = gamma * jax.lax.rsqrt(var + BN_EPS)
    shift = beta - mean * scale
    return h * scale + shift


def decoder_kernel(x_ref,
                   w1_ref, b1_ref, g1_ref, be1_ref,
                   w2_ref, s2_ref, b2_ref, g2_ref, be2_ref,
                   w3_ref, s3_ref, b3_ref,
                   out_ref):
    """Fused decoder forward; all operands resident in VMEM (few MiB total)."""
    x = x_ref[...]                                            # f32 [B, 20]

    # FC_hidden (20 -> 512pad), bf16 weights, f32 accumulate on the MXU.
    h = jnp.dot(x.astype(jnp.bfloat16), w1_ref[...],
                preferred_element_type=jnp.float32) + b1_ref[...]
    h = _leaky_relu(h)
    h = _batch_norm_train(h, g1_ref[...], be1_ref[...])
    # dropout -> identity (eval semantics)

    # FC_hidden2 (512pad -> 896pad), int8 weights, per-column scale folded into
    # the bias add (dequant happens on the f32 accumulator, not the weights DMA).
    h = (jnp.dot(h.astype(jnp.bfloat16), w2_ref[...].astype(jnp.bfloat16),
                 preferred_element_type=jnp.float32) * s2_ref[...] + b2_ref[...])
    h = _leaky_relu(h)
    h = _batch_norm_train(h, g2_ref[...], be2_ref[...])
    # dropout -> identity (eval semantics)

    # FC_output (896pad -> 896pad), int8 weights + per-column scale, sigmoid.
    y = (jnp.dot(h.astype(jnp.bfloat16), w3_ref[...].astype(jnp.bfloat16),
                 preferred_element_type=jnp.float32) * s3_ref[...] + b3_ref[...])
    out_ref[...] = jax.nn.sigmoid(y)


@functools.partial(jax.jit, static_argnames=("output_dim",))
def decoder_forward(x, params, output_dim=OUTPUT_DIM):
    batch, latent = x.shape
    x = x.astype(jnp.float32)    # no K-dim padding: (B, 20) straight into VMEM

    vmem_spec = pl.BlockSpec(memory_space=pltpu.MemorySpace.VMEM)
    n_inputs = 1 + len(params)

    # VMEM budget from the actual buffer footprint, capped generation-aware
    # (~96 MiB on v5e/v6e's 128 MiB, ~48 MiB on v7x's 64 MiB).
    param_bytes = sum(int(p.size) * p.dtype.itemsize for p in params)
    io_bytes = batch * 4 * (latent + OUT_PAD)
    act_bytes = batch * 4 * 2 * (H2_PAD + H1_PAD + OUT_PAD)
    footprint = param_bytes + io_bytes + act_bytes
    vmem_cap = (3 * _VMEM_PHYSICAL) // 4
    vmem_limit = int(min(max(2 * footprint + (4 << 20), 16 << 20), vmem_cap))

    out_pad = pl.pallas_call(
        decoder_kernel,
        out_shape=jax.ShapeDtypeStruct((batch, OUT_PAD), jnp.float32),
        in_specs=[vmem_spec] * n_inputs,
        out_specs=vmem_spec,
        compiler_params=pltpu.CompilerParams(vmem_limit_bytes=vmem_limit),
    )(x, *params)

    # TODO(synk): for large batches the consumer should accept the lane-dense
    # 896-wide slab (and/or bf16) directly; this slice is an extra HBM pass.
    return out_pad[:, :output_dim]


def _quantize_int8_cols(w):
    """Symmetric per-output-column int8 quantization; returns (w_q, scale)."""
    amax = jnp.max(jnp.abs(w), axis=0, keepdims=True)
    scale = jnp.where(amax > 0, amax / 127.0, 1.0)
    w_q = jnp.clip(jnp.round(w / scale), -127.0, 127.0).astype(jnp.int8)
    return w_q, scale.astype(jnp.float32)


def init_params(key):
    """Deterministic torch-Linear-like init.

    Returns:
      kernel_params: lane-padded params for the Pallas kernel
                     (w1 bf16; w2/w3 int8 + f32 per-column scales;
                      bias/gamma/beta f32).
      ref_params:    unpadded params with identical numerics for the JAX reference.
    """
    ks = jax.random.split(key, 6)

    def torch_linear(kw, kb, fan_in, fan_out):
        bound = float(1.0 / (fan_in ** 0.5))
        w = jax.random.uniform(kw, (fan_in, fan_out), jnp.float32, -bound, bound)
        b = jax.random.uniform(kb, (1, fan_out), jnp.float32, -bound, bound)
        return w, b

    w1, b1 = torch_linear(ks[0], ks[1], LATENT_DIM, HIDDEN_DIM2)
    w2, b2 = torch_linear(ks[2], ks[3], HIDDEN_DIM2, HIDDEN_DIM1)
    w3, b3 = torch_linear(ks[4], ks[5], HIDDEN_DIM1, OUTPUT_DIM)

    # Layer 1: bf16 storage, K dim (20) left unpadded; only N padded to 512.
    w1_bf = w1.astype(jnp.bfloat16)
    w1_k = (jnp.zeros((LATENT_DIM, H2_PAD), jnp.bfloat16)
            .at[:, :HIDDEN_DIM2].set(w1_bf))
    b1_k = jnp.zeros((1, H2_PAD), jnp.float32).at[:, :HIDDEN_DIM2].set(b1)

    # Layers 2/3: int8 weights + per-column scales (the two big DMAs).
    w2_q, s2 = _quantize_int8_cols(w2)
    w3_q, s3 = _quantize_int8_cols(w3)

    def pad_q(wq, s, b, in_dim, out_dim, in_pad, out_pad):
        wq_p = jnp.zeros((in_pad, out_pad), jnp.int8).at[:in_dim, :out_dim].set(wq)
        s_p = jnp.ones((1, out_pad), jnp.float32).at[:, :out_dim].set(s)
        b_p = jnp.zeros((1, out_pad), jnp.float32).at[:, :out_dim].set(b)
        return wq_p, s_p, b_p

    w2_k, s2_k, b2_k = pad_q(w2_q, s2, b2, HIDDEN_DIM2, HIDDEN_DIM1, H2_PAD, H1_PAD)
    w3_k, s3_k, b3_k = pad_q(w3_q, s3, b3, HIDDEN_DIM1, OUTPUT_DIM, H1_PAD, OUT_PAD)

    def bn(dim, dim_pad):
        g = jnp.ones((1, dim), jnp.float32)
        be = jnp.zeros((1, dim), jnp.float32)
        # Pad columns get gamma=0/beta=0 so they stay exactly 0 after BN.
        g_p = jnp.zeros((1, dim_pad), jnp.float32).at[:, :dim].set(1.0)
        be_p = jnp.zeros((1, dim_pad), jnp.float32)
        return (g, be), (g_p, be_p)

    (g1, be1), (g1_k, be1_k) = bn(HIDDEN_DIM2, H2_PAD)
    (g2, be2), (g2_k, be2_k) = bn(HIDDEN_DIM1, H1_PAD)

    kernel_params = (w1_k, b1_k, g1_k, be1_k,
                     w2_k, s2_k, b2_k, g2_k, be2_k,
                     w3_k, s3_k, b3_k)
    ref_params = (w1_bf, b1, g1, be1,
                  w2_q, s2, b2, g2, be2,
                  w3_q, s3, b3)
    return kernel_params, ref_params


def reference_forward(x, ref_params):
    """Pure-JAX reference on unpadded shapes, mirroring the kernel math exactly."""
    (w1, b1, g1, be1, w2_q, s2, b2, g2, be2, w3_q, s3, b3) = ref_params
    h = jnp.dot(x.astype(jnp.bfloat16), w1,
                preferred_element_type=jnp.float32) + b1
    h = _batch_norm_train(_leaky_relu(h), g1, be1)
    h = (jnp.dot(h.astype(jnp.bfloat16), w2_q.astype(jnp.bfloat16),
                 preferred_element_type=jnp.float32) * s2 + b2)
    h = _batch_norm_train(_leaky_relu(h), g2, be2)
    y = (jnp.dot(h.astype(jnp.bfloat16), w3_q.astype(jnp.bfloat16),
                 preferred_element_type=jnp.float32) * s3 + b3)
    return jax.nn.sigmoid(y)


if __name__ == "__main__":
    key = jax.random.PRNGKey(0)
    k_param, k_x = jax.random.split(key)

    batch = 8
    x = jax.random.normal(k_x, (batch, LATENT_DIM), jnp.float32)
    kernel_params, ref_params = init_params(k_param)

    out = decoder_forward(x, kernel_params)
    out = jax.block_until_ready(out)

    ref = reference_forward(x, ref_params)
    assert out.shape == (batch, OUTPUT_DIM)
    assert jnp.allclose(out, ref, atol=1e-3, rtol=1e-3), "mismatch vs JAX reference"

    print("KERNEL_OK")
</pallas_src>

<mosaic_0001>
module attributes {stable_mosaic.version = 11 : i64} {
  func.func @decoder_kernel(%arg0: memref<8x20xf32, #tpu.memory_space<vmem>>, %arg1: memref<20x512xbf16, #tpu.memory_space<vmem>>, %arg2: memref<1x512xf32, #tpu.memory_space<vmem>>, %arg3: memref<1x512xf32, #tpu.memory_space<vmem>>, %arg4: memref<1x512xf32, #tpu.memory_space<vmem>>, %arg5: memref<512x896xi8, #tpu.memory_space<vmem>>, %arg6: memref<1x896xf32, #tpu.memory_space<vmem>>, %arg7: memref<1x896xf32, #tpu.memory_space<vmem>>, %arg8: memref<1x896xf32, #tpu.memory_space<vmem>>, %arg9: memref<1x896xf32, #tpu.memory_space<vmem>>, %arg10: memref<896x896xi8, #tpu.memory_space<vmem>>, %arg11: memref<1x896xf32, #tpu.memory_space<vmem>>, %arg12: memref<1x896xf32, #tpu.memory_space<vmem>>, %arg13: memref<8x896xf32, #tpu.memory_space<vmem>>) attributes {dimension_semantics = [], scalar_prefetch = 0 : i64, scratch_operands = 0 : i64, tpu.core_type = #tpu.core_type<tc>} {
    %c0 = arith.constant 0 : index
    %c0_0 = arith.constant 0 : index
    %0 = vector.load %arg0[%c0, %c0_0] : memref<8x20xf32, #tpu.memory_space<vmem>>, vector<8x20xf32>
    %1 = arith.truncf %0 : vector<8x20xf32> to vector<8x20xbf16>
    %c0_1 = arith.constant 0 : index
    %c0_2 = arith.constant 0 : index
    %2 = vector.load %arg1[%c0_1, %c0_2] : memref<20x512xbf16, #tpu.memory_space<vmem>>, vector<20x512xbf16>
    %cst = arith.constant dense<0.000000e+00> : vector<8x512xf32>
    %3 = tpu.matmul %1, %2, %cst {dimension_numbers = #tpu.dot_dimension_numbers<[1], [0], [0], [1], [0, 0, 1, 1], [], []>} : vector<8x20xbf16>, vector<20x512xbf16>, vector<8x512xf32> -> vector<8x512xf32>
    %c0_3 = arith.constant 0 : index
    %c0_4 = arith.constant 0 : index
    %4 = vector.load %arg2[%c0_3, %c0_4] : memref<1x512xf32, #tpu.memory_space<vmem>>, vector<1x512xf32>
    %5 = vector.broadcast %4 : vector<1x512xf32> to vector<8x512xf32>
    %6 = arith.addf %3, %5 : vector<8x512xf32>
    %cst_5 = arith.constant 0.000000e+00 : f32
    %7 = vector.broadcast %cst_5 : f32 to vector<8x512xf32>
    %8 = arith.cmpf ogt, %6, %7 : vector<8x512xf32>
    %cst_6 = arith.constant 0.00999999977 : f32
    %9 = vector.broadcast %cst_6 : f32 to vector<8x512xf32>
    %10 = arith.mulf %9, %6 : vector<8x512xf32>
    %11 = arith.select %8, %6, %10 : vector<8x512xi1>, vector<8x512xf32>
    %c0_7 = arith.constant 0 : index
    %c0_8 = arith.constant 0 : index
    %12 = vector.load %arg3[%c0_7, %c0_8] : memref<1x512xf32, #tpu.memory_space<vmem>>, vector<1x512xf32>
    %c0_9 = arith.constant 0 : index
    %c0_10 = arith.constant 0 : index
    %13 = vector.load %arg4[%c0_9, %c0_10] : memref<1x512xf32, #tpu.memory_space<vmem>>, vector<1x512xf32>
    %cst_11 = arith.constant dense<0.000000e+00> : vector<512xf32>
    %14 = vector.multi_reduction <add>, %11, %cst_11 [0] : vector<8x512xf32> to vector<512xf32>
    %15 = vector.shape_cast %14 : vector<512xf32> to vector<1x512xf32>
    %16 = arith.mulf %11, %11 : vector<8x512xf32>
    %cst_12 = arith.constant dense<0.000000e+00> : vector<512xf32>
    %17 = vector.multi_reduction <add>, %16, %cst_12 [0] : vector<8x512xf32> to vector<512xf32>
    %18 = vector.shape_cast %17 : vector<512xf32> to vector<1x512xf32>
    %cst_13 = arith.constant 1.250000e-01 : f32
    %19 = vector.broadcast %cst_13 : f32 to vector<1x512xf32>
    %20 = arith.mulf %15, %19 : vector<1x512xf32>
    %cst_14 = arith.constant 1.250000e-01 : f32
    %21 = vector.broadcast %cst_14 : f32 to vector<1x512xf32>
    %22 = arith.mulf %18, %21 : vector<1x512xf32>
    %23 = arith.mulf %20, %20 : vector<1x512xf32>
    %24 = arith.subf %22, %23 : vector<1x512xf32>
    %cst_15 = arith.constant 0.000000e+00 : f32
    %25 = vector.broadcast %cst_15 : f32 to vector<1x512xf32>
    %26 = arith.maximumf %24, %25 : vector<1x512xf32>
    %cst_16 = arith.constant 9.99999974E-6 : f32
    %27 = vector.broadcast %cst_16 : f32 to vector<1x512xf32>
    %28 = arith.addf %26, %27 : vector<1x512xf32>
    %29 = math.rsqrt %28 : vector<1x512xf32>
    %30 = arith.mulf %12, %29 : vector<1x512xf32>
    %31 = arith.mulf %20, %30 : vector<1x512xf32>
    %32 = arith.subf %13, %31 : vector<1x512xf32>
    %33 = vector.broadcast %30 : vector<1x512xf32> to vector<8x512xf32>
    %34 = arith.mulf %11, %33 : vector<8x512xf32>
    %35 = vector.broadcast %32 : vector<1x512xf32> to vector<8x512xf32>
    %36 = arith.addf %34, %35 : vector<8x512xf32>
    %37 = arith.truncf %36 : vector<8x512xf32> to vector<8x512xbf16>
    %c0_17 = arith.constant 0 : index
    %c0_18 = arith.constant 0 : index
    %38 = vector.load %arg5[%c0_17, %c0_18] : memref<512x896xi8, #tpu.memory_space<vmem>>, vector<512x896xi8>
    %39 = arith.sitofp %38 : vector<512x896xi8> to vector<512x896xbf16>
    %cst_19 = arith.constant dense<0.000000e+00> : vector<8x896xf32>
    %40 = tpu.matmul %37, %39, %cst_19 {dimension_numbers = #tpu.dot_dimension_numbers<[1], [0], [0], [1], [0, 0, 1, 1], [], []>} : vector<8x512xbf16>, vector<512x896xbf16>, vector<8x896xf32> -> vector<8x896xf32>
    %c0_20 = arith.constant 0 : index
    %c0_21 = arith.constant 0 : index
    %41 = vector.load %arg6[%c0_20, %c0_21] : memref<1x896xf32, #tpu.memory_space<vmem>>, vector<1x896xf32>
    %42 = vector.broadcast %41 : vector<1x896xf32> to vector<8x896xf32>
    %43 = arith.mulf %40, %42 : vector<8x896xf32>
    %c0_22 = arith.constant 0 : index
    %c0_23 = arith.constant 0 : index
    %44 = vector.load %arg7[%c0_22, %c0_23] : memref<1x896xf32, #tpu.memory_space<vmem>>, vector<1x896xf32>
    %45 = vector.broadcast %44 : vector<1x896xf32> to vector<8x896xf32>
    %46 = arith.addf %43, %45 : vector<8x896xf32>
    %cst_24 = arith.constant 0.000000e+00 : f32
    %47 = vector.broadcast %cst_24 : f32 to vector<8x896xf32>
    %48 = arith.cmpf ogt, %46, %47 : vector<8x896xf32>
    %cst_25 = arith.constant 0.00999999977 : f32
    %49 = vector.broadcast %cst_25 : f32 to vector<8x896xf32>
    %50 = arith.mulf %49, %46 : vector<8x896xf32>
    %51 = arith.select %48, %46, %50 : vector<8x896xi1>, vector<8x896xf32>
    %c0_26 = arith.constant 0 : index
    %c0_27 = arith.constant 0 : index
    %52 = vector.load %arg8[%c0_26, %c0_27] : memref<1x896xf32, #tpu.memory_space<vmem>>, vector<1x896xf32>
    %c0_28 = arith.constant 0 : index
    %c0_29 = arith.constant 0 : index
    %53 = vector.load %arg9[%c0_28, %c0_29] : memref<1x896xf32, #tpu.memory_space<vmem>>, vector<1x896xf32>
    %cst_30 = arith.constant dense<0.000000e+00> : vector<896xf32>
    %54 = vector.multi_reduction <add>, %51, %cst_30 [0] : vector<8x896xf32> to vector<896xf32>
    %55 = vector.shape_cast %54 : vector<896xf32> to vector<1x896xf32>
    %56 = arith.mulf %51, %51 : vector<8x896xf32>
    %cst_31 = arith.constant dense<0.000000e+00> : vector<896xf32>
    %57 = vector.multi_reduction <add>, %56, %cst_31 [0] : vector<8x896xf32> to vector<896xf32>
    %58 = vector.shape_cast %57 : vector<896xf32> to vector<1x896xf32>
    %cst_32 = arith.constant 1.250000e-01 : f32
    %59 = vector.broadcast %cst_32 : f32 to vector<1x896xf32>
    %60 = arith.mulf %55, %59 : vector<1x896xf32>
    %cst_33 = arith.constant 1.250000e-01 : f32
    %61 = vector.broadcast %cst_33 : f32 to vector<1x896xf32>
    %62 = arith.mulf %58, %61 : vector<1x896xf32>
    %63 = arith.mulf %60, %60 : vector<1x896xf32>
    %64 = arith.subf %62, %63 : vector<1x896xf32>
    %cst_34 = arith.constant 0.000000e+00 : f32
    %65 = vector.broadcast %cst_34 : f32 to vector<1x896xf32>
    %66 = arith.maximumf %64, %65 : vector<1x896xf32>
    %cst_35 = arith.constant 9.99999974E-6 : f32
    %67 = vector.broadcast %cst_35 : f32 to vector<1x896xf32>
    %68 = arith.addf %66, %67 : vector<1x896xf32>
    %69 = math.rsqrt %68 : vector<1x896xf32>
    %70 = arith.mulf %52, %69 : vector<1x896xf32>
    %71 = arith.mulf %60, %70 : vector<1x896xf32>
    %72 = arith.subf %53, %71 : vector<1x896xf32>
    %73 = vector.broadcast %70 : vector<1x896xf32> to vector<8x896xf32>
    %74 = arith.mulf %51, %73 : vector<8x896xf32>
    %75 = vector.broadcast %72 : vector<1x896xf32> to vector<8x896xf32>
    %76 = arith.addf %74, %75 : vector<8x896xf32>
    %77 = arith.truncf %76 : vector<8x896xf32> to vector<8x896xbf16>
    %c0_36 = arith.constant 0 : index
    %c0_37 = arith.constant 0 : index
    %78 = vector.load %arg10[%c0_36, %c0_37] : memref<896x896xi8, #tpu.memory_space<vmem>>, vector<896x896xi8>
    %79 = arith.sitofp %78 : vector<896x896xi8> to vector<896x896xbf16>
    %cst_38 = arith.constant dense<0.000000e+00> : vector<8x896xf32>
    %80 = tpu.matmul %77, %79, %cst_38 {dimension_numbers = #tpu.dot_dimension_numbers<[1], [0], [0], [1], [0, 0, 1, 1], [], []>} : vector<8x896xbf16>, vector<896x896xbf16>, vector<8x896xf32> -> vector<8x896xf32>
    %c0_39 = arith.constant 0 : index
    %c0_40 = arith.constant 0 : index
    %81 = vector.load %arg11[%c0_39, %c0_40] : memref<1x896xf32, #tpu.memory_space<vmem>>, vector<1x896xf32>
    %82 = vector.broadcast %81 : vector<1x896xf32> to vector<8x896xf32>
    %83 = arith.mulf %80, %82 : vector<8x896xf32>
    %c0_41 = arith.constant 0 : index
    %c0_42 = arith.constant 0 : index
    %84 = vector.load %arg12[%c0_41, %c0_42] : memref<1x896xf32, #tpu.memory_space<vmem>>, vector<1x896xf32>
    %85 = vector.broadcast %84 : vector<1x896xf32> to vector<8x896xf32>
    %86 = arith.addf %83, %85 : vector<8x896xf32>
    %87 = arith.negf %86 : vector<8x896xf32>
    %88 = math.exp %87 : vector<8x896xf32>
    %cst_43 = arith.constant 1.000000e+00 : f32
    %89 = vector.broadcast %cst_43 : f32 to vector<8x896xf32>
    %90 = arith.addf %89, %88 : vector<8x896xf32>
    %91 = arith.divf %89, %90 : vector<8x896xf32>
    %c0_44 = arith.constant 0 : index
    %c0_45 = arith.constant 0 : index
    %92 = vector.load %arg13[%c0_44, %c0_45] : memref<8x896xf32, #tpu.memory_space<vmem>>, vector<8x896xf32>
    tpu.vector_store %arg13[%c0_44, %c0_45], %91 {strides = array<i32>} : memref<8x896xf32, #tpu.memory_space<vmem>>, vector<8x896xf32>,
    return
  }
}

</mosaic_0001>

<llo_original>
// kernel: decoder_forward.1
$region0: #{decoder_forward.1}
  #allocation0 [shape = 'u32[]', space=smem, size = 0x4, offset = 0x4, fixed_abs, tag = 'smem constant byte address 0x4 - core index']
  #allocation1 [shape = 'u32[144,128]{1,0:T(1,128)}', space=vmem, size = 0x12000, scoped, tag = 'internal scratch']
  %s0 = inlined_call_operand.hbm [shape: f32[8,20], index: 0, kind: input, shape index: {}]
  %s1 = inlined_call_operand.hbm [shape: bf16[20,512], index: 1, kind: input, shape index: {}]
  %s2 = inlined_call_operand.hbm [shape: f32[1,512], index: 2, kind: input, shape index: {}]
  %s3 = inlined_call_operand.hbm [shape: f32[1,512], index: 3, kind: input, shape index: {}]
  %s4 = inlined_call_operand.hbm [shape: f32[1,512], index: 4, kind: input, shape index: {}]
  %s5 = inlined_call_operand.hbm [shape: s8[512,896], index: 5, kind: input, shape index: {}]
  %s6 = inlined_call_operand.vmem [shape: f32[1,896], index: 6, kind: input, shape index: {}]
  %s7 = inlined_call_operand.vmem [shape: f32[1,896], index: 7, kind: input, shape index: {}]
  %s8 = inlined_call_operand.vmem [shape: f32[1,896], index: 8, kind: input, shape index: {}]
  %s9 = inlined_call_operand.vmem [shape: f32[1,896], index: 9, kind: input, shape index: {}]
  %s10 = inlined_call_operand.hbm [shape: s8[896,896], index: 10, kind: input, shape index: {}]
  %s11 = inlined_call_operand.vmem [shape: f32[1,896], index: 11, kind: input, shape index: {}]
  %s12 = inlined_call_operand.vmem [shape: f32[1,896], index: 12, kind: input, shape index: {}]
  %s13 = inlined_call_operand.hbm [shape: f32[8,896], index: 13, kind: output, shape index: {}]
  %s14 = sld [smem:[#allocation0]]
  $region90: #{decoder_forward.1} parent=0
    _
  %s16 = ssub.s32 1, %s14
  %s17 = scalar_select 0, %s16, %s14
  $region1: #{decoder_forward.1} parent=0
    #allocation2 [shape = 'u8[4096]{0}', space=vmem, size = 0x1000, scoped, tag = 'input window, operand 0, single buffered']
    #allocation3 [shape = 's32[1]{0}', space=sflag, size = 0x4, scoped, tag = 'scoped memory for decoder_forward.1']
    #allocation4 [shape = 's32[1]{0}', space=sflag, size = 0x4, scoped, tag = 'scoped memory for decoder_forward.1']
    #allocation5 [shape = 'u8[24576]{0}', space=vmem, size = 0x6000, scoped, tag = 'input window, operand 1, single buffered']
    #allocation6 [shape = 's32[1]{0}', space=sflag, size = 0x4, scoped, tag = 'scoped memory for decoder_forward.1']
    #allocation7 [shape = 'u8[2048]{0}', space=vmem, size = 0x800, scoped, tag = 'input window, operand 2, single buffered']
    #allocation8 [shape = 'u8[2048]{0}', space=vmem, size = 0x800, scoped, tag = 'input window, operand 3, single buffered']
    #allocation9 [shape = 's32[1]{0}', space=sflag, size = 0x4, scoped, tag = 'scoped memory for decoder_forward.1']
    #allocation10 [shape = 'u8[2048]{0}', space=vmem, size = 0x800, scoped, tag = 'input window, operand 4, single buffered']
    #allocation11 [shape = 'u8[458752]{0}', space=vmem, size = 0x70000, scoped, tag = 'input window, operand 5, single buffered']
    #allocation12 [shape = 's32[1]{0}', space=sflag, size = 0x4, scoped, tag = 'scoped memory for decoder_forward.1']
    #allocation13 [shape = 'u8[802816]{0}', space=vmem, size = 0xc4000, scoped, tag = 'input window, operand 10, single buffered']
    #allocation14 [shape = 'u8[28672]{0}', space=vmem, size = 0x7000, scoped, tag = 'output window, operand 0, single buffered']
    %18 = vsyncpa [#allocation3], 0
    %19 = vsyncpa [#allocation6], 0
    %20 = vsyncpa [#allocation9], 0
    %21 = vsyncpa [#allocation12], 0
    %22 = vsyncpa [#allocation4], 0
    // Predicated region
    $region2: #{decoder_forward.1} parent=1 // pred_check
      _
    $region3: #{decoder_forward.1} parent=1 // pred_check_branch
      %24 = sbr.rel (0) target = $region5
    $region4: #{decoder_forward.1} parent=1 // pred_region
      %s26 = ssub.s32 128, 128
      %27 = vsyncadd [#allocation3], %s26
      %s29 = sshll.u32 [#allocation2], 4
      %s30 = int_to_ptr.vmem [resolvable:$true] %s29
      %32 = dma.hbm_to_vmem [thread:$0]  %s0, 128, %s30, [#allocation3]
    $region5: #{decoder_forward.1} parent=1 // pred_fallthru
      _
    // Predicated region
    $region6: #{decoder_forward.1} parent=1 // pred_check
      _
    $region7: #{decoder_forward.1} parent=1 // pred_check_branch
      %34 = sbr.rel (0) target = $region9
    $region8: #{decoder_forward.1} parent=1 // pred_region
      %s36 = ssub.s32 768, 768
      %37 = vsyncadd [#allocation6], %s36
      %s38 = sshll.u32 [#allocation5], 4
      %s39 = int_to_ptr.vmem [resolvable:$true] %s38
      %44 = dma.hbm_to_vmem [thread:$0]  %s1, 768, %s39, [#allocation6], 256, 256, 16
    $region9: #{decoder_forward.1} parent=1 // pred_fallthru
      _
    // Predicated region
    $region10: #{decoder_forward.1} parent=1 // pred_check
      _
    $region11: #{decoder_forward.1} parent=1 // pred_check_branch
      %46 = sbr.rel (0) target = $region13
    $region12: #{decoder_forward.1} parent=1 // pred_region
      %s48 = ssub.s32 64, 64
      %49 = vsyncadd [#allocation6], %s48
      %s51 = sshll.u32 [#allocation7], 4
      %s52 = int_to_ptr.vmem [resolvable:$true] %s51
      %54 = dma.hbm_to_vmem [thread:$0]  %s2, 64, %s52, [#allocation6]
    $region13: #{decoder_forward.1} parent=1 // pred_fallthru
      _
    // Predicated region
    $region14: #{decoder_forward.1} parent=1 // pred_check
      _
    $region15: #{decoder_forward.1} parent=1 // pred_check_branch
      %56 = sbr.rel (0) target = $region17
    $region16: #{decoder_forward.1} parent=1 // pred_region
      %s58 = ssub.s32 64, 64
      %59 = vsyncadd [#allocation9], %s58
      %s61 = sshll.u32 [#allocation8], 4
      %s62 = int_to_ptr.vmem [resolvable:$true] %s61
      %64 = dma.hbm_to_vmem [thread:$0]  %s3, 64, %s62, [#allocation9]
    $region17: #{decoder_forward.1} parent=1 // pred_fallthru
      _
    // Predicated region
    $region18: #{decoder_forward.1} parent=1 // pred_check
      _
    $region19: #{decoder_forward.1} parent=1 // pred_check_branch
      %66 = sbr.rel (0) target = $region21
    $region20: #{decoder_forward.1} parent=1 // pred_region
      %s68 = ssub.s32 64, 64
      %69 = vsyncadd [#allocation9], %s68
      %s71 = sshll.u32 [#allocation10], 4
      %s72 = int_to_ptr.vmem [resolvable:$true] %s71
      %74 = dma.hbm_to_vmem [thread:$0]  %s4, 64, %s72, [#allocation9]
    $region21: #{decoder_forward.1} parent=1 // pred_fallthru
      _
    // Predicated region
    $region22: #{decoder_forward.1} parent=1 // pred_check
      _
    $region23: #{decoder_forward.1} parent=1 // pred_check_branch
      %76 = sbr.rel (0) target = $region25
    $region24: #{decoder_forward.1} parent=1 // pred_region
      %s78 = ssub.s32 14336, 14336
      %79 = vsyncadd [#allocation12], %s78
      %s80 = sshll.u32 [#allocation11], 4
      %s81 = int_to_ptr.vmem [resolvable:$true] %s80
      %86 = dma.hbm_to_vmem [thread:$0]  %s5, 14336, %s81, [#allocation12], 896, 896, 56
    $region25: #{decoder_forward.1} parent=1 // pred_fallthru
      _
    // Predicated region
    $region26: #{decoder_forward.1} parent=1 // pred_check
      _
    $region27: #{decoder_forward.1} parent=1 // pred_check_branch
      %88 = sbr.rel (0) target = $region29
    $region28: #{decoder_forward.1} parent=1 // pred_region
      _
    $region29: #{decoder_forward.1} parent=1 // pred_fallthru
      _
    // Predicated region
    $region30: #{decoder_forward.1} parent=1 // pred_check
      _
    $region31: #{decoder_forward.1} parent=1 // pred_check_branch
      %90 = sbr.rel (0) target = $region33
    $region32: #{decoder_forward.1} parent=1 // pred_region
      _
    $region33: #{decoder_forward.1} parent=1 // pred_fallthru
      _
    // Predicated region
    $region34: #{decoder_forward.1} parent=1 // pred_check
      _
    $region35: #{decoder_forward.1} parent=1 // pred_check_branch
      %92 = sbr.rel (0) target = $region37
    $region36: #{decoder_forward.1} parent=1 // pred_region
      _
    $region37: #{decoder_forward.1} parent=1 // pred_fallthru
      _
    // Predicated region
    $region38: #{decoder_forward.1} parent=1 // pred_check
      _
    $region39: #{decoder_forward.1} parent=1 // pred_check_branch
      %94 = sbr.rel (0) target = $region41
    $region40: #{decoder_forward.1} parent=1 // pred_region
      _
    $region41: #{decoder_forward.1} parent=1 // pred_fallthru
      _
    // Predicated region
    $region42: #{decoder_forward.1} parent=1 // pred_check
      _
    $region43: #{decoder_forward.1} parent=1 // pred_check_branch
      %96 = sbr.rel (0) target = $region45
    $region44: #{decoder_forward.1} parent=1 // pred_region
      %s98 = ssub.s32 25088, 25088
      %99 = vsyncadd [#allocation12], %s98
      %s100 = sshll.u32 [#allocation13], 4
      %s101 = int_to_ptr.vmem [resolvable:$true] %s100
      %106 = dma.hbm_to_vmem [thread:$0]  %s10, 25088, %s101, [#allocation12], 896, 896, 56
    $region45: #{decoder_forward.1} parent=1 // pred_fallthru
      _
    // Predicated region
    $region46: #{decoder_forward.1} parent=1 // pred_check
      _
    $region47: #{decoder_forward.1} parent=1 // pred_check_branch
      %108 = sbr.rel (0) target = $region49
    $region48: #{decoder_forward.1} parent=1 // pred_region
      _
    $region49: #{decoder_forward.1} parent=1 // pred_fallthru
      _
    // Predicated region
    $region50: #{decoder_forward.1} parent=1 // pred_check
      _
    $region51: #{decoder_forward.1} parent=1 // pred_check_branch
      %110 = sbr.rel (0) target = $region53
    $region52: #{decoder_forward.1} parent=1 // pred_region
      _
    $region53: #{decoder_forward.1} parent=1 // pred_fallthru
      _
    // Predicated region
    $region54: #{decoder_forward.1} parent=1 // pred_check
      _
    $region55: #{decoder_forward.1} parent=1 // pred_check_branch
      %112 = sbr.rel (0) target = $region57
    $region56: #{decoder_forward.1} parent=1 // pred_region
      %113 = dma.done [#allocation3], 128
    $region57: #{decoder_forward.1} parent=1 // pred_fallthru
      _
    // Predicated region
    $region58: #{decoder_forward.1} parent=1 // pred_check
      _
    $region59: #{decoder_forward.1} parent=1 // pred_check_branch
      %115 = sbr.rel (0) target = $region61
    $region60: #{decoder_forward.1} parent=1 // pred_region
      %116 = dma.done [#allocation6], 768
    $region61: #{decoder_forward.1} parent=1 // pred_fallthru
      _
    // Predicated region
    $region62: #{decoder_forward.1} parent=1 // pred_check
      _
    $region63: #{decoder_forward.1} parent=1 // pred_check_branch
      %118 = sbr.rel (0) target = $region65
    $region64: #{decoder_forward.1} parent=1 // pred_region
      %119 = dma.done [#allocation6], 64
    $region65: #{decoder_forward.1} parent=1 // pred_fallthru
      _
    // Predicated region
    $region66: #{decoder_forward.1} parent=1 // pred_check
      _
    $region67: #{decoder_forward.1} parent=1 // pred_check_branch
      %121 = sbr.rel (0) target = $region69
    $region68: #{decoder_forward.1} parent=1 // pred_region
      %122 = dma.done [#allocation9], 64
    $region69: #{decoder_forward.1} parent=1 // pred_fallthru
      _
    // Predicated region
    $region70: #{decoder_forward.1} parent=1 // pred_check
      _
    $region71: #{decoder_forward.1} parent=1 // pred_check_branch
      %124 = sbr.rel (0) target = $region73
    $region72: #{decoder_forward.1} parent=1 // pred_region
      %125 = dma.done [#allocation9], 64
    $region73: #{decoder_forward.1} parent=1 // pred_fallthru
      _
    // Predicated region
    $region74: #{decoder_forward.1} parent=1 // pred_check
      _
    $region75: #{decoder_forward.1} parent=1 // pred_check_branch
      %127 = sbr.rel (0) target = $region77
    $region76: #{decoder_forward.1} parent=1 // pred_region
      %128 = dma.done [#allocation12], 14336
    $region77: #{decoder_forward.1} parent=1 // pred_fallthru
      _
    // Predicated region
    $region78: #{decoder_forward.1} parent=1 // pred_check
      _
    $region79: #{decoder_forward.1} parent=1 // pred_check_branch
      %130 = sbr.rel (0) target = $region81
    $region80: #{decoder_forward.1} parent=1 // pred_region
      %131 = dma.done [#allocation12], 25088
    $region81: #{decoder_forward.1} parent=1 // pred_fallthru
      _
    %v133 = vld [vmem:[#allocation2] sm:$0xff]
    %v134 = vpack.c.bf16 %v133, %v133
    %v135 = vld [vmem:[#allocation5] sm:$0xff]
    %v136 = vld [vmem:[#allocation5 + $0x8] sm:$0xff]
    %v137 = vld [vmem:[#allocation5 + $0x10] sm:$0xff]
    %v138 = vld [vmem:[#allocation5 + $0x18] sm:$0xff]
    %v139 = vld [vmem:[#allocation5 + $0x20] sm:$0x33]
    %v140 = vld [vmem:[#allocation5 + $0x28] sm:$0x33]
    %v141 = vld [vmem:[#allocation7] sm:$0xf]
    %v143 = vlaneseq
    %v144 = vshrl.u32 %v143, 7
    %v145 = vsub.s32 0, %v144
    %v146 = vrot.slane %v141, %v145
    %v147 = vlaneseq
    %v148 = vshrl.u32 %v147, 7
    %v149 = vsub.s32 1, %v148
    %v150 = vrot.slane %v141, %v149
    %v151 = vlaneseq
    %v152 = vshrl.u32 %v151, 7
    %v153 = vsub.s32 2, %v152
    %v154 = vrot.slane %v141, %v153
    %v155 = vlaneseq
    %v156 = vshrl.u32 %v155, 7
    %v157 = vsub.s32 3, %v156
    %v158 = vrot.slane %v141, %v157
    %v169 = vunpack.c.l.b16 %v135
    %v170 = vunpack.c.h.b16 %v135
    %v171 = vunpack.c.l.b16 %v136
    %v172 = vunpack.c.h.b16 %v136
    %v173 = vunpack.c.l.b16 %v137
    %v174 = vunpack.c.h.b16 %v137
    %v175 = vunpack.c.l.b16 %v138
    %v176 = vunpack.c.h.b16 %v138
    %v177 = vunpack.c.l.b16 %v139
    %v178 = vunpack.c.h.b16 %v139
    %v179 = vunpack.c.l.b16 %v140
    %v180 = vunpack.c.h.b16 %v140
    %v181 = vpack.c.b16 %v173, %v169
    %v182 = vpack.c.b16 %v174, %v170
    %v183 = vpack.c.b16 %v175, %v171
    %v184 = vpack.c.b16 %v176, %v172
    %v185 = vpack.c.b16 %v177, %v177
    %v186 = vpack.c.b16 %v178, %v178
    %v187 = vpack.c.b16 %v179, %v179
    %v188 = vpack.c.b16 %v180, %v180
    %vm193 = vcmask 162816
    %v195 = vsel %vm193, %v134, 0
    %vm197 = vcmask 1041408
    %v199 = vsel %vm197, %v185, 0
    %v202 = vsel %vm197, %v186, 0
    %v205 = vsel %vm197, %v187, 0
    %v208 = vsel %vm197, %v188, 0
    %210 = vmatprep.subr.bf16.mxu0 %v182
    %211 = vmatpush1.bf16.msra.mxu0 %v181
    %212 = vmatprep.subr.bf16.mxu0 %v202
    %213 = vmatpush1.bf16.msra.mxu0 %v199
    %214 = vmatprep.subr.bf16.mxu0 0
    %215 = vmatpush1.bf16.msra.mxu0 0
    %216 = vmatprep.subr.bf16.mxu0 0
    %217 = vmatpush1.bf16.msra.mxu0 0
    %218 = vmatprep.subr.bf16.mxu0 0
    %219 = vmatpush1.bf16.msra.mxu0 0
    %220 = vmatprep.subr.bf16.mxu0 0
    %221 = vmatpush1.bf16.msra.mxu0 0
    %222 = vmatprep.subr.bf16.mxu0 0
    %223 = vmatpush1.bf16.msra.mxu0 0
    %224 = vmatprep.subr.bf16.mxu0 0
    %225 = vmatpush1.bf16.msra.mxu0 0
    %226 = vmatprep.subr.bf16.mxu0 0
    %227 = vmatpush1.bf16.msra.mxu0 0
    %228 = vmatprep.subr.bf16.mxu0 0
    %229 = vmatpush1.bf16.msra.mxu0 0
    %230 = vmatprep.subr.bf16.mxu0 0
    %231 = vmatpush1.bf16.msra.mxu0 0
    %232 = vmatprep.subr.bf16.mxu0 0
    %233 = vmatpush1.bf16.msra.mxu0 0
    %234 = vmatprep.subr.bf16.mxu0 0
    %235 = vmatpush1.bf16.msra.mxu0 0
    %236 = vmatprep.subr.bf16.mxu0 0
    %237 = vmatpush1.bf16.msra.mxu0 0
    %238 = vmatprep.subr.bf16.mxu0 0
    %239 = vmatpush1.bf16.msra.mxu0 0
    %240 = vmatprep.subr.bf16.mxu0 0
    %241 = vmatpush1.bf16.msra.mxu0 0
    %242 = vmatprep.mubr.bf16.mxu0 0
    %243 = vmatmul.mubr.bf16.gmra.mrb[0].mxu0 %v195
    %v244 = vpop.f32.mrb[0].mxu0
    %v245 = vadd.f32 %v146, %v244
    %v246 = vpop.f32.mrb[0].mxu0
    %v247 = vadd.f32 %v150, %v246
    %v248 = vpop.f32.mrb[0].mxu0
    %v249 = vpop.f32.mrb[0].mxu0
    %250 = vdwg.mxu0
    %251 = vmatprep.subr.bf16.mxu0 %v184
    %252 = vmatpush1.bf16.msra.mxu0 %v183
    %253 = vmatprep.subr.bf16.mxu0 %v208
    %254 = vmatpush1.bf16.msra.mxu0 %v205
    %255 = vmatprep.subr.bf16.mxu0 0
    %256 = vmatpush1.bf16.msra.mxu0 0
    %257 = vmatprep.subr.bf16.mxu0 0
    %258 = vmatpush1.bf16.msra.mxu0 0
    %259 = vmatprep.subr.bf16.mxu0 0
    %260 = vmatpush1.bf16.msra.mxu0 0
    %261 = vmatprep.subr.bf16.mxu0 0
    %262 = vmatpush1.bf16.msra.mxu0 0
    %263 = vmatprep.subr.bf16.mxu0 0
    %264 = vmatpush1.bf16.msra.mxu0 0
    %265 = vmatprep.subr.bf16.mxu0 0
    %266 = vmatpush1.bf16.msra.mxu0 0
    %267 = vmatprep.subr.bf16.mxu0 0
    %268 = vmatpush1.bf16.msra.mxu0 0
    %269 = vmatprep.subr.bf16.mxu0 0
    %270 = vmatpush1.bf16.msra.mxu0 0
    %271 = vmatprep.subr.bf16.mxu0 0
    %272 = vmatpush1.bf16.msra.mxu0 0
    %273 = vmatprep.subr.bf16.mxu0 0
    %274 = vmatpush1.bf16.msra.mxu0 0
    %275 = vmatprep.subr.bf16.mxu0 0
    %276 = vmatpush1.bf16.msra.mxu0 0
    %277 = vmatprep.subr.bf16.mxu0 0
    %278 = vmatpush1.bf16.msra.mxu0 0
    %279 = vmatprep.subr.bf16.mxu0 0
    %280 = vmatpush1.bf16.msra.mxu0 0
    %281 = vmatprep.subr.bf16.mxu0 0
    %282 = vmatpush1.bf16.msra.mxu0 0
    %283 = vmatprep.mubr.bf16.mxu0 0
    %284 = vmatmul.mubr.bf16.gmra.mrb[0].mxu0 %v195
    %v285 = vpop.f32.mrb[0].mxu0
    %v286 = vadd.f32 %v154, %v285
    %v287 = vpop.f32.mrb[0].mxu0
    %v288 = vadd.f32 %v158, %v287
    %v289 = vpop.f32.mrb[0].mxu0
    %v290 = vpop.f32.mrb[0].mxu0
    %291 = vdwg.mxu0
    %vm292 = vcmp.gt.f32.partialorder %v245, 0.0
    %vm293 = vcmp.gt.f32.partialorder %v247, 0.0
    %vm294 = vcmp.gt.f32.partialorder %v286, 0.0
    %vm295 = vcmp.gt.f32.partialorder %v288, 0.0
    %v296 = vmul.f32 %v245, 0.01
    %v297 = vmul.f32 %v247, 0.01
    %v298 = vmul.f32 %v286, 0.01
    %v299 = vmul.f32 %v288, 0.01
    %v300 = vsel %vm292, %v245, %v296
    %v301 = vsel %vm293, %v247, %v297
    %v302 = vsel %vm294, %v286, %v298
    %v303 = vsel %vm295, %v288, %v299
    %v304 = vld [vmem:[#allocation8] sm:$0xf]
    %v305 = vld [vmem:[#allocation10] sm:$0xf]
    %v306 = vrot.slane %v300, 4
    %v307 = vadd.f32 %v300, %v306
    %v308 = vrot.slane %v307, 2
    %v309 = vadd.f32 %v307, %v308
    %v310 = vrot.slane %v309, 1
    %v311 = vadd.f32 %v309, %v310
    %v312 = vrot.slane %v301, 4
    %v313 = vadd.f32 %v301, %v312
    %v314 = vrot.slane %v313, 2
    %v315 = vadd.f32 %v313, %v314
    %v316 = vrot.slane %v315, 1
    %v317 = vadd.f32 %v315, %v316
    %v318 = vrot.slane %v302, 4
    %v319 = vadd.f32 %v302, %v318
    %v320 = vrot.slane %v319, 2
    %v321 = vadd.f32 %v319, %v320
    %v322 = vrot.slane %v321, 1
    %v323 = vadd.f32 %v321, %v322
    %v324 = vrot.slane %v303, 4
    %v325 = vadd.f32 %v303, %v324
    %v326 = vrot.slane %v325, 2
    %v327 = vadd.f32 %v325, %v326
    %v328 = vrot.slane %v327, 1
    %v329 = vadd.f32 %v327, %v328
    %v330 = vmul.f32 %v300, %v300
    %v331 = vmul.f32 %v301, %v301
    %v332 = vmul.f32 %v302, %v302
    %v333 = vmul.f32 %v303, %v303
    %v334 = vrot.slane %v330, 4
    %v335 = vadd.f32 %v330, %v334
    %v336 = vrot.slane %v335, 2
    %v337 = vadd.f32 %v335, %v336
    %v338 = vrot.slane %v337, 1
    %v339 = vadd.f32 %v337, %v338
    %v340 = vrot.slane %v331, 4
    %v341 = vadd.f32 %v331, %v340
    %v342 = vrot.slane %v341, 2
    %v343 = vadd.f32 %v341, %v342
    %v344 = vrot.slane %v343, 1
    %v345 = vadd.f32 %v343, %v344
    %v346 = vrot.slane %v332, 4
    %v347 = vadd.f32 %v332, %v346
    %v348 = vrot.slane %v347, 2
    %v349 = vadd.f32 %v347, %v348
    %v350 = vrot.slane %v349, 1
    %v351 = vadd.f32 %v349, %v350
    %v352 = vrot.slane %v333, 4
    %v353 = vadd.f32 %v333, %v352
    %v354 = vrot.slane %v353, 2
    %v355 = vadd.f32 %v353, %v354
    %v356 = vrot.slane %v355, 1
    %v357 = vadd.f32 %v355, %v356
    %v358 = vmul.f32 %v311, 0.125
    %v359 = vmul.f32 %v317, 0.125
    %v360 = vmul.f32 %v323, 0.125
    %v361 = vmul.f32 %v329, 0.125
    %v362 = vmul.f32 %v339, 0.125
    %v363 = vmul.f32 %v345, 0.125
    %v364 = vmul.f32 %v351, 0.125
    %v365 = vmul.f32 %v357, 0.125
    %v366 = vmul.f32 %v358, %v358
    %v367 = vmul.f32 %v359, %v359
    %v368 = vmul.f32 %v360, %v360
    %v369 = vmul.f32 %v361, %v361
    %v370 = vsub.f32 %v362, %v366
    %v371 = vsub.f32 %v363, %v367
    %v372 = vsub.f32 %v364, %v368
    %v373 = vsub.f32 %v365, %v369
    %v374 = vmax.f32 %v370, 0.0
    %v375 = vmax.f32 %v371, 0.0
    %v376 = vmax.f32 %v372, 0.0
    %v377 = vmax.f32 %v373, 0.0
    %v378 = vadd.f32 %v374, 1e-05
    %v379 = vadd.f32 %v375, 1e-05
    %v380 = vadd.f32 %v376, 1e-05
    %v381 = vadd.f32 %v377, 1e-05
    %v382 = vrsqrt.pop %v378
    %v383 = vrsqrt.pop %v379
    %v384 = vrsqrt.pop %v380
    %v385 = vrsqrt.pop %v381
    %v390 = vcombine.low %v382, %v383
    %v391 = vcombine.low %v384, %v385
    %v393 = vunpack.c.l.s4 1966171168
    %v394 = vunpack.c.0.s8 %v393
    %v395 = vlaneseq
    %v396 = vshrl.u32 %v395, 7
    %v397 = vsub.s32 %v394, %v396
    %v398 = vrot.slane %v390, %v397
    %v400 = vunpack.c.l.s4 1966171168
    %v401 = vunpack.c.0.s8 %v400
    %v402 = vlaneseq
    %v403 = vshrl.u32 %v402, 7
    %v404 = vsub.s32 %v401, %v403
    %v405 = vrot.slane %v391, %v404
    %v406 = vcombine.low %v398, %v405
    %v408 = vunpack.c.l.s4 1966171168
    %v409 = vunpack.c.0.s8 %v408
    %v410 = vlaneseq
    %v411 = vshrl.u32 %v410, 7
    %v412 = vsub.s32 %v409, %v411
    %v413 = vrot.slane %v406, %v412
    %v415 = vmul.f32 %v304, %v413
    %v417 = vlaneseq
    %v418 = vshrl.u32 %v417, 7
    %v419 = vsub.s32 0, %v418
    %v420 = vrot.slane %v415, %v419
    %v421 = vlaneseq
    %v422 = vshrl.u32 %v421, 7
    %v423 = vsub.s32 1, %v422
    %v424 = vrot.slane %v415, %v423
    %v425 = vlaneseq
    %v426 = vshrl.u32 %v425, 7
    %v427 = vsub.s32 2, %v426
    %v428 = vrot.slane %v415, %v427
    %v429 = vlaneseq
    %v430 = vshrl.u32 %v429, 7
    %v431 = vsub.s32 3, %v430
    %v432 = vrot.slane %v415, %v431
    %v437 = vmul.f32 %v358, %v420
    %v438 = vmul.f32 %v359, %v424
    %v439 = vmul.f32 %v360, %v428
    %v440 = vmul.f32 %v361, %v432
    %v445 = vcombine.low %v437, %v438
    %v446 = vcombine.low %v439, %v440
    %v448 = vunpack.c.l.s4 1966171168
    %v449 = vunpack.c.0.s8 %v448
    %v450 = vlaneseq
    %v451 = vshrl.u32 %v450, 7
    %v452 = vsub.s32 %v449, %v451
    %v453 = vrot.slane %v445, %v452
    %v455 = vunpack.c.l.s4 1966171168
    %v456 = vunpack.c.0.s8 %v455
    %v457 = vlaneseq
    %v458 = vshrl.u32 %v457, 7
    %v459 = vsub.s32 %v456, %v458
    %v460 = vrot.slane %v446, %v459
    %v461 = vcombine.low %v453, %v460
    %v463 = vunpack.c.l.s4 1966171168
    %v464 = vunpack.c.0.s8 %v463
    %v465 = vlaneseq
    %v466 = vshrl.u32 %v465, 7
    %v467 = vsub.s32 %v464, %v466
    %v468 = vrot.slane %v461, %v467
    %v470 = vsub.f32 %v305, %v468
    %v471 = vmul.f32 %v300, %v420
    %v472 = vmul.f32 %v301, %v424
    %v473 = vmul.f32 %v302, %v428
    %v474 = vmul.f32 %v303, %v432
    %v476 = vlaneseq
    %v477 = vshrl.u32 %v476, 7
    %v478 = vsub.s32 0, %v477
    %v479 = vrot.slane %v470, %v478
    %v480 = vlaneseq
    %v481 = vshrl.u32 %v480, 7
    %v482 = vsub.s32 1, %v481
    %v483 = vrot.slane %v470, %v482
    %v484 = vlaneseq
    %v485 = vshrl.u32 %v484, 7
    %v486 = vsub.s32 2, %v485
    %v487 = vrot.slane %v470, %v486
    %v488 = vlaneseq
    %v489 = vshrl.u32 %v488, 7
    %v490 = vsub.s32 3, %v489
    %v491 = vrot.slane %v470, %v490
    %v496 = vadd.f32 %v471, %v479
    %v497 = vadd.f32 %v472, %v483
    %v498 = vadd.f32 %v473, %v487
    %v499 = vadd.f32 %v474, %v491
    %v500 = vpack.c.bf16 %v496, %v496
    %v501 = vpack.c.bf16 %v497, %v497
    %v502 = vpack.c.bf16 %v498, %v498
    %v503 = vpack.c.bf16 %v499, %v499
    %v504 = vld [vmem:[#allocation11] sm:$0xff]
    %v505 = vld [vmem:[#allocation11 + $0x8] sm:$0xff]
    %v506 = vld [vmem:[#allocation11 + $0x10] sm:$0xff]
    %v507 = vld [vmem:[#allocation11 + $0x18] sm:$0xff]
    %v508 = vld [vmem:[#allocation11 + $0x20] sm:$0xff]
    %v509 = vld [vmem:[#allocation11 + $0x28] sm:$0xff]
    %v510 = vld [vmem:[#allocation11 + $0x30] sm:$0xff]
    %v511 = vld [vmem:[#allocation11 + $0x38] sm:$0xff]
    %v512 = vld [vmem:[#allocation11 + $0x40] sm:$0xff]
    %v513 = vld [vmem:[#allocation11 + $0x48] sm:$0xff]
    %v514 = vld [vmem:[#allocation11 + $0x50] sm:$0xff]
    %v515 = vld [vmem:[#allocation11 + $0x58] sm:$0xff]
    %v516 = vld [vmem:[#allocation11 + $0x60] sm:$0xff]
    %v517 = vld [vmem:[#allocation11 + $0x68] sm:$0xff]
    %v518 = vld [vmem:[#allocation11 + $0x70] sm:$0xff]
    %v519 = vld [vmem:[#allocation11 + $0x78] sm:$0xff]
    %v520 = vld [vmem:[#allocation11 + $0x80] sm:$0xff]
    %v521 = vld [vmem:[#allocation11 + $0x88] sm:$0xff]
    %v522 = vld [vmem:[#allocation11 + $0x90] sm:$0xff]
    %v523 = vld [vmem:[#allocation11 + $0x98] sm:$0xff]
    %v524 = vld [vmem:[#allocation11 + $0xa0] sm:$0xff]
    %v525 = vld [vmem:[#allocation11 + $0xa8] sm:$0xff]
    %v526 = vld [vmem:[#allocation11 + $0xb0] sm:$0xff]
    %v527 = vld [vmem:[#allocation11 + $0xb8] sm:$0xff]
    %v528 = vld [vmem:[#allocation11 + $0xc0] sm:$0xff]
    %v529 = vld [vmem:[#allocation11 + $0xc8] sm:$0xff]
    %v530 = vld [vmem:[#allocation11 + $0xd0] sm:$0xff]
    %v531 = vld [vmem:[#allocation11 + $0xd8] sm:$0xff]
    %v532 = vld [vmem:[#allocation11 + $0xe0] sm:$0xff]
    %v533 = vld [vmem:[#allocation11 + $0xe8] sm:$0xff]
    %v534 = vld [vmem:[#allocation11 + $0xf0] sm:$0xff]
    %v535 = vld [vmem:[#allocation11 + $0xf8] sm:$0xff]
    %v536 = vld [vmem:[#allocation11 + $0x100] sm:$0xff]
    %v537 = vld [vmem:[#allocation11 + $0x108] sm:$0xff]
    %v538 = vld [vmem:[#allocation11 + $0x110] sm:$0xff]
    %v539 = vld [vmem:[#allocation11 + $0x118] sm:$0xff]
    %v540 = vld [vmem:[#allocation11 + $0x120] sm:$0xff]
    %v541 = vld [vmem:[#allocation11 + $0x128] sm:$0xff]
    %v542 = vld [vmem:[#allocation11 + $0x130] sm:$0xff]
    %v543 = vld [vmem:[#allocation11 + $0x138] sm:$0xff]
    %v544 = vld [vmem:[#allocation11 + $0x140] sm:$0xff]
    %v545 = vld [vmem:[#allocation11 + $0x148] sm:$0xff]
    %v546 = vld [vmem:[#allocation11 + $0x150] sm:$0xff]
    %v547 = vld [vmem:[#allocation11 + $0x158] sm:$0xff]
    %v548 = vld [vmem:[#allocation11 + $0x160] sm:$0xff]
    %v549 = vld [vmem:[#allocation11 + $0x168] sm:$0xff]
    %v550 = vld [vmem:[#allocation11 + $0x170] sm:$0xff]
    %v551 = vld [vmem:[#allocation11 + $0x178] sm:$0xff]
    %v552 = vld [vmem:[#allocation11 + $0x180] sm:$0xff]
    %v553 = vld [vmem:[#allocation11 + $0x188] sm:$0xff]
    %v554 = vld [vmem:[#allocation11 + $0x190] sm:$0xff]
    %v555 = vld [vmem:[#allocation11 + $0x198] sm:$0xff]
    %v556 = vld [vmem:[#allocation11 + $0x1a0] sm:$0xff]
    %v557 = vld [vmem:[#allocation11 + $0x1a8] sm:$0xff]
    %v558 = vld [vmem:[#allocation11 + $0x1b0] sm:$0xff]
    %v559 = vld [vmem:[#allocation11 + $0x1b8] sm:$0xff]
    %v560 = vld [vmem:[#allocation11 + $0x1c0] sm:$0xff]
    %v561 = vld [vmem:[#allocation11 + $0x1c8] sm:$0xff]
    %v562 = vld [vmem:[#allocation11 + $0x1d0] sm:$0xff]
    %v563 = vld [vmem:[#allocation11 + $0x1d8] sm:$0xff]
    %v564 = vld [vmem:[#allocation11 + $0x1e0] sm:$0xff]
    %v565 = vld [vmem:[#allocation11 + $0x1e8] sm:$0xff]
    %v566 = vld [vmem:[#allocation11 + $0x1f0] sm:$0xff]
    %v567 = vld [vmem:[#allocation11 + $0x1f8] sm:$0xff]
    %v568 = vld [vmem:[#allocation11 + $0x200] sm:$0xff]
    %v569 = vld [vmem:[#allocation11 + $0x208] sm:$0xff]
    %v570 = vld [vmem:[#allocation11 + $0x210] sm:$0xff]
    %v571 = vld [vmem:[#allocation11 + $0x218] sm:$0xff]
    %v572 = vld [vmem:[#allocation11 + $0x220] sm:$0xff]
    %v573 = vld [vmem:[#allocation11 + $0x228] sm:$0xff]
    %v574 = vld [vmem:[#allocation11 + $0x230] sm:$0xff]
    %v575 = vld [vmem:[#allocation11 + $0x238] sm:$0xff]
    %v576 = vld [vmem:[#allocation11 + $0x240] sm:$0xff]
    %v577 = vld [vmem:[#allocation11 + $0x248] sm:$0xff]
    %v578 = vld [vmem:[#allocation11 + $0x250] sm:$0xff]
    %v579 = vld [vmem:[#allocation11 + $0x258] sm:$0xff]
    %v580 = vld [vmem:[#allocation11 + $0x260] sm:$0xff]
    %v581 = vld [vmem:[#allocation11 + $0x268] sm:$0xff]
    %v582 = vld [vmem:[#allocation11 + $0x270] sm:$0xff]
    %v583 = vld [vmem:[#allocation11 + $0x278] sm:$0xff]
    %v584 = vld [vmem:[#allocation11 + $0x280] sm:$0xff]
    %v585 = vld [vmem:[#allocation11 + $0x288] sm:$0xff]
    %v586 = vld [vmem:[#allocation11 + $0x290] sm:$0xff]
    %v587 = vld [vmem:[#allocation11 + $0x298] sm:$0xff]
    %v588 = vld [vmem:[#allocation11 + $0x2a0] sm:$0xff]
    %v589 = vld [vmem:[#allocation11 + $0x2a8] sm:$0xff]
    %v590 = vld [vmem:[#allocation11 + $0x2b0] sm:$0xff]
    %v591 = vld [vmem:[#allocation11 + $0x2b8] sm:$0xff]
    %v592 = vld [vmem:[#allocation11 + $0x2c0] sm:$0xff]
    %v593 = vld [vmem:[#allocation11 + $0x2c8] sm:$0xff]
    %v594 = vld [vmem:[#allocation11 + $0x2d0] sm:$0xff]
    %v595 = vld [vmem:[#allocation11 + $0x2d8] sm:$0xff]
    %v596 = vld [vmem:[#allocation11 + $0x2e0] sm:$0xff]
    %v597 = vld [vmem:[#allocation11 + $0x2e8] sm:$0xff]
    %v598 = vld [vmem:[#allocation11 + $0x2f0] sm:$0xff]
    %v599 = vld [vmem:[#allocation11 + $0x2f8] sm:$0xff]
    %v600 = vld [vmem:[#allocation11 + $0x300] sm:$0xff]
    %v601 = vld [vmem:[#allocation11 + $0x308] sm:$0xff]
    %v602 = vld [vmem:[#allocation11 + $0x310] sm:$0xff]
    %v603 = vld [vmem:[#allocation11 + $0x318] sm:$0xff]
    %v604 = vld [vmem:[#allocation11 + $0x320] sm:$0xff]
    %v605 = vld [vmem:[#allocation11 + $0x328] sm:$0xff]
    %v606 = vld [vmem:[#allocation11 + $0x330] sm:$0xff]
    %v607 = vld [vmem:[#allocation11 + $0x338] sm:$0xff]
    %v608 = vld [vmem:[#allocation11 + $0x340] sm:$0xff]
    %v609 = vld [vmem:[#allocation11 + $0x348] sm:$0xff]
    %v610 = vld [vmem:[#allocation11 + $0x350] sm:$0xff]
    %v611 = vld [vmem:[#allocation11 + $0x358] sm:$0xff]
    %v612 = vld [vmem:[#allocation11 + $0x360] sm:$0xff]
    %v613 = vld [vmem:[#allocation11 + $0x368] sm:$0xff]
    %v614 = vld [vmem:[#allocation11 + $0x370] sm:$0xff]
    %v615 = vld [vmem:[#allocation11 + $0x378] sm:$0xff]
    %v616 = vunpack.c.l.s8.bf16 %v504
    %v617 = vunpack.c.l.s8.bf16 %v505
    %v618 = vunpack.c.l.s8.bf16 %v506
    %v619 = vunpack.c.l.s8.bf16 %v507
    %v620 = vunpack.c.l.s8.bf16 %v508
    %v621 = vunpack.c.l.s8.bf16 %v509
    %v622 = vunpack.c.l.s8.bf16 %v510
    %v623 = vunpack.c.h.s8.bf16 %v504
    %v624 = vunpack.c.h.s8.bf16 %v505
    %v625 = vunpack.c.h.s8.bf16 %v506
    %v626 = vunpack.c.h.s8.bf16 %v507
    %v627 = vunpack.c.h.s8.bf16 %v508
    %v628 = vunpack.c.h.s8.bf16 %v509
    %v629 = vunpack.c.h.s8.bf16 %v510
    %v630 = vunpack.c.l.s8.bf16 %v511
    %v631 = vunpack.c.l.s8.bf16 %v512
    %v632 = vunpack.c.l.s8.bf16 %v513
    %v633 = vunpack.c.l.s8.bf16 %v514
    %v634 = vunpack.c.l.s8.bf16 %v515
    %v635 = vunpack.c.l.s8.bf16 %v516
    %v636 = vunpack.c.l.s8.bf16 %v517
    %v637 = vunpack.c.h.s8.bf16 %v511
    %v638 = vunpack.c.h.s8.bf16 %v512
    %v639 = vunpack.c.h.s8.bf16 %v513
    %v640 = vunpack.c.h.s8.bf16 %v514
    %v641 = vunpack.c.h.s8.bf16 %v515
    %v642 = vunpack.c.h.s8.bf16 %v516
    %v643 = vunpack.c.h.s8.bf16 %v517
    %v644 = vunpack.c.l.s8.bf16 %v518
    %v645 = vunpack.c.l.s8.bf16 %v519
    %v646 = vunpack.c.l.s8.bf16 %v520
    %v647 = vunpack.c.l.s8.bf16 %v521
    %v648 = vunpack.c.l.s8.bf16 %v522
    %v649 = vunpack.c.l.s8.bf16 %v523
    %v650 = vunpack.c.l.s8.bf16 %v524
    %v651 = vunpack.c.h.s8.bf16 %v518
    %v652 = vunpack.c.h.s8.bf16 %v519
    %v653 = vunpack.c.h.s8.bf16 %v520
    %v654 = vunpack.c.h.s8.bf16 %v521
    %v655 = vunpack.c.h.s8.bf16 %v522
    %v656 = vunpack.c.h.s8.bf16 %v523
    %v657 = vunpack.c.h.s8.bf16 %v524
    %v658 = vunpack.c.l.s8.bf16 %v525
    %v659 = vunpack.c.l.s8.bf16 %v526
    %v660 = vunpack.c.l.s8.bf16 %v527
    %v661 = vunpack.c.l.s8.bf16 %v528
    %v662 = vunpack.c.l.s8.bf16 %v529
    %v663 = vunpack.c.l.s8.bf16 %v530
    %v664 = vunpack.c.l.s8.bf16 %v531
    %v665 = vunpack.c.h.s8.bf16 %v525
    %v666 = vunpack.c.h.s8.bf16 %v526
    %v667 = vunpack.c.h.s8.bf16 %v527
    %v668 = vunpack.c.h.s8.bf16 %v528
    %v669 = vunpack.c.h.s8.bf16 %v529
    %v670 = vunpack.c.h.s8.bf16 %v530
    %v671 = vunpack.c.h.s8.bf16 %v531
    %v672 = vunpack.c.l.s8.bf16 %v532
    %v673 = vunpack.c.l.s8.bf16 %v533
    %v674 = vunpack.c.l.s8.bf16 %v534
    %v675 = vunpack.c.l.s8.bf16 %v535
    %v676 = vunpack.c.l.s8.bf16 %v536
    %v677 = vunpack.c.l.s8.bf16 %v537
    %v678 = vunpack.c.l.s8.bf16 %v538
    %v679 = vunpack.c.h.s8.bf16 %v532
    %v680 = vunpack.c.h.s8.bf16 %v533
    %v681 = vunpack.c.h.s8.bf16 %v534
    %v682 = vunpack.c.h.s8.bf16 %v535
    %v683 = vunpack.c.h.s8.bf16 %v536
    %v684 = vunpack.c.h.s8.bf16 %v537
    %v685 = vunpack.c.h.s8.bf16 %v538
    %v686 = vunpack.c.l.s8.bf16 %v539
    %v687 = vunpack.c.l.s8.bf16 %v540
    %v688 = vunpack.c.l.s8.bf16 %v541
    %v689 = vunpack.c.l.s8.bf16 %v542
    %v690 = vunpack.c.l.s8.bf16 %v543
    %v691 = vunpack.c.l.s8.bf16 %v544
    %v692 = vunpack.c.l.s8.bf16 %v545
    %v693 = vunpack.c.h.s8.bf16 %v539
    %v694 = vunpack.c.h.s8.bf16 %v540
    %v695 = vunpack.c.h.s8.bf16 %v541
    %v696 = vunpack.c.h.s8.bf16 %v542
    %v697 = vunpack.c.h.s8.bf16 %v543
    %v698 = vunpack.c.h.s8.bf16 %v544
    %v699 = vunpack.c.h.s8.bf16 %v545
    %v700 = vunpack.c.l.s8.bf16 %v546
    %v701 = vunpack.c.l.s8.bf16 %v547
    %v702 = vunpack.c.l.s8.bf16 %v548
    %v703 = vunpack.c.l.s8.bf16 %v549
    %v704 = vunpack.c.l.s8.bf16 %v550
    %v705 = vunpack.c.l.s8.bf16 %v551
    %v706 = vunpack.c.l.s8.bf16 %v552
    %v707 = vunpack.c.h.s8.bf16 %v546
    %v708 = vunpack.c.h.s8.bf16 %v547
    %v709 = vunpack.c.h.s8.bf16 %v548
    %v710 = vunpack.c.h.s8.bf16 %v549
    %v711 = vunpack.c.h.s8.bf16 %v550
    %v712 = vunpack.c.h.s8.bf16 %v551
    %v713 = vunpack.c.h.s8.bf16 %v552
    %v714 = vunpack.c.l.s8.bf16 %v553
    %v715 = vunpack.c.l.s8.bf16 %v554
    %v716 = vunpack.c.l.s8.bf16 %v555
    %v717 = vunpack.c.l.s8.bf16 %v556
    %v718 = vunpack.c.l.s8.bf16 %v557
    %v719 = vunpack.c.l.s8.bf16 %v558
    %v720 = vunpack.c.l.s8.bf16 %v559
    %v721 = vunpack.c.h.s8.bf16 %v553
    %v722 = vunpack.c.h.s8.bf16 %v554
    %v723 = vunpack.c.h.s8.bf16 %v555
    %v724 = vunpack.c.h.s8.bf16 %v556
    %v725 = vunpack.c.h.s8.bf16 %v557
    %v726 = vunpack.c.h.s8.bf16 %v558
    %v727 = vunpack.c.h.s8.bf16 %v559
    %v728 = vunpack.c.l.s8.bf16 %v560
    %v729 = vunpack.c.l.s8.bf16 %v561
    %v730 = vunpack.c.l.s8.bf16 %v562
    %v731 = vunpack.c.l.s8.bf16 %v563
    %v732 = vunpack.c.l.s8.bf16 %v564
    %v733 = vunpack.c.l.s8.bf16 %v565
    %v734 = vunpack.c.l.s8.bf16 %v566
    %v735 = vunpack.c.h.s8.bf16 %v560
    %v736 = vunpack.c.h.s8.bf16 %v561
    %v737 = vunpack.c.h.s8.bf16 %v562
    %v738 = vunpack.c.h.s8.bf16 %v563
    %v739 = vunpack.c.h.s8.bf16 %v564
    %v740 = vunpack.c.h.s8.bf16 %v565
    %v741 = vunpack.c.h.s8.bf16 %v566
    %v742 = vunpack.c.l.s8.bf16 %v567
    %v743 = vunpack.c.l.s8.bf16 %v568
    %v744 = vunpack.c.l.s8.bf16 %v569
    %v745 = vunpack.c.l.s8.bf16 %v570
    %v746 = vunpack.c.l.s8.bf16 %v571
    %v747 = vunpack.c.l.s8.bf16 %v572
    %v748 = vunpack.c.l.s8.bf16 %v573
    %v749 = vunpack.c.h.s8.bf16 %v567
    %v750 = vunpack.c.h.s8.bf16 %v568
    %v751 = vunpack.c.h.s8.bf16 %v569
    %v752 = vunpack.c.h.s8.bf16 %v570
    %v753 = vunpack.c.h.s8.bf16 %v571
    %v754 = vunpack.c.h.s8.bf16 %v572
    %v755 = vunpack.c.h.s8.bf16 %v573
    %v756 = vunpack.c.l.s8.bf16 %v574
    %v757 = vunpack.c.l.s8.bf16 %v575
    %v758 = vunpack.c.l.s8.bf16 %v576
    %v759 = vunpack.c.l.s8.bf16 %v577
    %v760 = vunpack.c.l.s8.bf16 %v578
    %v761 = vunpack.c.l.s8.bf16 %v579
    %v762 = vunpack.c.l.s8.bf16 %v580
    %v763 = vunpack.c.h.s8.bf16 %v574
    %v764 = vunpack.c.h.s8.bf16 %v575
    %v765 = vunpack.c.h.s8.bf16 %v576
    %v766 = vunpack.c.h.s8.bf16 %v577
    %v767 = vunpack.c.h.s8.bf16 %v578
    %v768 = vunpack.c.h.s8.bf16 %v579
    %v769 = vunpack.c.h.s8.bf16 %v580
    %v770 = vunpack.c.l.s8.bf16 %v581
    %v771 = vunpack.c.l.s8.bf16 %v582
    %v772 = vunpack.c.l.s8.bf16 %v583
    %v773 = vunpack.c.l.s8.bf16 %v584
    %v774 = vunpack.c.l.s8.bf16 %v585
    %v775 = vunpack.c.l.s8.bf16 %v586
    %v776 = vunpack.c.l.s8.bf16 %v587
    %v777 = vunpack.c.h.s8.bf16 %v581
    %v778 = vunpack.c.h.s8.bf16 %v582
    %v779 = vunpack.c.h.s8.bf16 %v583
    %v780 = vunpack.c.h.s8.bf16 %v584
    %v781 = vunpack.c.h.s8.bf16 %v585
    %v782 = vunpack.c.h.s8.bf16 %v586
    %v783 = vunpack.c.h.s8.bf16 %v587
    %v784 = vunpack.c.l.s8.bf16 %v588
    %v785 = vunpack.c.l.s8.bf16 %v589
    %v786 = vunpack.c.l.s8.bf16 %v590
    %v787 = vunpack.c.l.s8.bf16 %v591
    %v788 = vunpack.c.l.s8.bf16 %v592
    %v789 = vunpack.c.l.s8.bf16 %v593
    %v790 = vunpack.c.l.s8.bf16 %v594
    %v791 = vunpack.c.h.s8.bf16 %v588
    %v792 = vunpack.c.h.s8.bf16 %v589
    %v793 = vunpack.c.h.s8.bf16 %v590
    %v794 = vunpack.c.h.s8.bf16 %v591
    %v795 = vunpack.c.h.s8.bf16 %v592
    %v796 = vunpack.c.h.s8.bf16 %v593
    %v797 = vunpack.c.h.s8.bf16 %v594
    %v798 = vunpack.c.l.s8.bf16 %v595
    %v799 = vunpack.c.l.s8.bf16 %v596
    %v800 = vunpack.c.l.s8.bf16 %v597
    %v801 = vunpack.c.l.s8.bf16 %v598
    %v802 = vunpack.c.l.s8.bf16 %v599
    %v803 = vunpack.c.l.s8.bf16 %v600
    %v804 = vunpack.c.l.s8.bf16 %v601
    %v805 = vunpack.c.h.s8.bf16 %v595
    %v806 = vunpack.c.h.s8.bf16 %v596
    %v807 = vunpack.c.h.s8.bf16 %v597
    %v808 = vunpack.c.h.s8.bf16 %v598
    %v809 = vunpack.c.h.s8.bf16 %v599
    %v810 = vunpack.c.h.s8.bf16 %v600
    %v811 = vunpack.c.h.s8.bf16 %v601
    %v812 = vunpack.c.l.s8.bf16 %v602
    %v813 = vunpack.c.l.s8.bf16 %v603
    %v814 = vunpack.c.l.s8.bf16 %v604
    %v815 = vunpack.c.l.s8.bf16 %v605
    %v816 = vunpack.c.l.s8.bf16 %v606
    %v817 = vunpack.c.l.s8.bf16 %v607
    %v818 = vunpack.c.l.s8.bf16 %v608
    %v819 = vunpack.c.h.s8.bf16 %v602
    %v820 = vunpack.c.h.s8.bf16 %v603
    %v821 = vunpack.c.h.s8.bf16 %v604
    %v822 = vunpack.c.h.s8.bf16 %v605
    %v823 = vunpack.c.h.s8.bf16 %v606
    %v824 = vunpack.c.h.s8.bf16 %v607
    %v825 = vunpack.c.h.s8.bf16 %v608
    %v826 = vunpack.c.l.s8.bf16 %v609
    %v827 = vunpack.c.l.s8.bf16 %v610
    %v828 = vunpack.c.l.s8.bf16 %v611
    %v829 = vunpack.c.l.s8.bf16 %v612
    %v830 = vunpack.c.l.s8.bf16 %v613
    %v831 = vunpack.c.l.s8.bf16 %v614
    %v832 = vunpack.c.l.s8.bf16 %v615
    %v833 = vunpack.c.h.s8.bf16 %v609
    %v834 = vunpack.c.h.s8.bf16 %v610
    %v835 = vunpack.c.h.s8.bf16 %v611
    %v836 = vunpack.c.h.s8.bf16 %v612
    %v837 = vunpack.c.h.s8.bf16 %v613
    %v838 = vunpack.c.h.s8.bf16 %v614
    %v839 = vunpack.c.h.s8.bf16 %v615
    %840 = vmatprep.subr.bf16.mxu0 %v617
    %841 = vmatpush1.bf16.msra.mxu0 %v616
    %842 = vmatprep.subr.bf16.mxu0 %v624
    %843 = vmatpush1.bf16.msra.mxu0 %v623
    %844 = vmatprep.subr.bf16.mxu0 %v631
    %845 = vmatpush1.bf16.msra.mxu0 %v630
    %846 = vmatprep.subr.bf16.mxu0 %v638
    %847 = vmatpush1.bf16.msra.mxu0 %v637
    %848 = vmatprep.subr.bf16.mxu0 %v645
    %849 = vmatpush1.bf16.msra.mxu0 %v644
    %850 = vmatprep.subr.bf16.mxu0 %v652
    %851 = vmatpush1.bf16.msra.mxu0 %v651
    %852 = vmatprep.subr.bf16.mxu0 %v659
    %853 = vmatpush1.bf16.msra.mxu0 %v658
    %854 = vmatprep.subr.bf16.mxu0 %v666
    %855 = vmatpush1.bf16.msra.mxu0 %v665
    %856 = vmatprep.subr.bf16.mxu0 %v673
    %857 = vmatpush1.bf16.msra.mxu0 %v672
    %858 = vmatprep.subr.bf16.mxu0 %v680
    %859 = vmatpush1.bf16.msra.mxu0 %v679
    %860 = vmatprep.subr.bf16.mxu0 %v687
    %861 = vmatpush1.bf16.msra.mxu0 %v686
    %862 = vmatprep.subr.bf16.mxu0 %v694
    %863 = vmatpush1.bf16.msra.mxu0 %v693
    %864 = vmatprep.subr.bf16.mxu0 %v701
    %865 = vmatpush1.bf16.msra.mxu0 %v700
    %866 = vmatprep.subr.bf16.mxu0 %v708
    %867 = vmatpush1.bf16.msra.mxu0 %v707
    %868 = vmatprep.subr.bf16.mxu0 %v715
    %869 = vmatpush1.bf16.msra.mxu0 %v714
    %870 = vmatprep.subr.bf16.mxu0 %v722
    %871 = vmatpush1.bf16.msra.mxu0 %v721
    %872 = vmatprep.mubr.bf16.mxu0 %v501
    %873 = vmatmul.mubr.bf16.gmra.mrb[0].mxu0 %v500
    %v874 = vpop.f32.mrb[0].mxu0
    %v875 = vadd.f32 0.0, %v874
    %v876 = vpop.f32.mrb[0].mxu0
    %v877 = vadd.f32 0.0, %v876
    %v878 = vpop.f32.mrb[0].mxu0
    %v879 = vpop.f32.mrb[0].mxu0
    %880 = vdwg.mxu0
    %881 = vmatprep.subr.bf16.mxu0 %v729
    %882 = vmatpush1.bf16.msra.mxu0 %v728
    %883 = vmatprep.subr.bf16.mxu0 %v736
    %884 = vmatpush1.bf16.msra.mxu0 %v735
    %885 = vmatprep.subr.bf16.mxu0 %v743
    %886 = vmatpush1.bf16.msra.mxu0 %v742
    %887 = vmatprep.subr.bf16.mxu0 %v750
    %888 = vmatpush1.bf16.msra.mxu0 %v749
    %889 = vmatprep.subr.bf16.mxu0 %v757
    %890 = vmatpush1.bf16.msra.mxu0 %v756
    %891 = vmatprep.subr.bf16.mxu0 %v764
    %892 = vmatpush1.bf16.msra.mxu0 %v763
    %893 = vmatprep.subr.bf16.mxu0 %v771
    %894 = vmatpush1.bf16.msra.mxu0 %v770
    %895 = vmatprep.subr.bf16.mxu0 %v778
    %896 = vmatpush1.bf16.msra.mxu0 %v777
    %897 = vmatprep.subr.bf16.mxu0 %v785
    %898 = vmatpush1.bf16.msra.mxu0 %v784
    %899 = vmatprep.subr.bf16.mxu0 %v792
    %900 = vmatpush1.bf16.msra.mxu0 %v791
    %901 = vmatprep.subr.bf16.mxu0 %v799
    %902 = vmatpush1.bf16.msra.mxu0 %v798
    %903 = vmatprep.subr.bf16.mxu0 %v806
    %904 = vmatpush1.bf16.msra.mxu0 %v805
    %905 = vmatprep.subr.bf16.mxu0 %v813
    %906 = vmatpush1.bf16.msra.mxu0 %v812
    %907 = vmatprep.subr.bf16.mxu0 %v820
    %908 = vmatpush1.bf16.msra.mxu0 %v819
    %909 = vmatprep.subr.bf16.mxu0 %v827
    %910 = vmatpush1.bf16.msra.mxu0 %v826
    %911 = vmatprep.subr.bf16.mxu0 %v834
    %912 = vmatpush1.bf16.msra.mxu0 %v833
    %913 = vmatprep.mubr.bf16.mxu0 %v503
    %914 = vmatmul.mubr.bf16.gmra.mrb[0].mxu0 %v502
    %v915 = vpop.f32.mrb[0].mxu0
    %v916 = vadd.f32 %v875, %v915
    %v917 = vpop.f32.mrb[0].mxu0
    %v918 = vadd.f32 %v877, %v917
    %v919 = vpop.f32.mrb[0].mxu0
    %v920 = vpop.f32.mrb[0].mxu0
    %921 = vdwg.mxu0
    %922 = vmatprep.subr.bf16.mxu0 %v619
    %923 = vmatpush1.bf16.msra.mxu0 %v618
    %924 = vmatprep.subr.bf16.mxu0 %v626
    %925 = vmatpush1.bf16.msra.mxu0 %v625
    %926 = vmatprep.subr.bf16.mxu0 %v633
    %927 = vmatpush1.bf16.msra.mxu0 %v632
    %928 = vmatprep.subr.bf16.mxu0 %v640
    %929 = vmatpush1.bf16.msra.mxu0 %v639
    %930 = vmatprep.subr.bf16.mxu0 %v647
    %931 = vmatpush1.bf16.msra.mxu0 %v646
    %932 = vmatprep.subr.bf16.mxu0 %v654
    %933 = vmatpush1.bf16.msra.mxu0 %v653
    %934 = vmatprep.subr.bf16.mxu0 %v661
    %935 = vmatpush1.bf16.msra.mxu0 %v660
    %936 = vmatprep.subr.bf16.mxu0 %v668
    %937 = vmatpush1.bf16.msra.mxu0 %v667
    %938 = vmatprep.subr.bf16.mxu0 %v675
    %939 = vmatpush1.bf16.msra.mxu0 %v674
    %940 = vmatprep.subr.bf16.mxu0 %v682
    %941 = vmatpush1.bf16.msra.mxu0 %v681
    %942 = vmatprep.subr.bf16.mxu0 %v689
    %943 = vmatpush1.bf16.msra.mxu0 %v688
    %944 = vmatprep.subr.bf16.mxu0 %v696
    %945 = vmatpush1.bf16.msra.mxu0 %v695
    %946 = vmatprep.subr.bf16.mxu0 %v703
    %947 = vmatpush1.bf16.msra.mxu0 %v702
    %948 = vmatprep.subr.bf16.mxu0 %v710
    %949 = vmatpush1.bf16.msra.mxu0 %v709
    %950 = vmatprep.subr.bf16.mxu0 %v717
    %951 = vmatpush1.bf16.msra.mxu0 %v716
    %952 = vmatprep.subr.bf16.mxu0 %v724
    %953 = vmatpush1.bf16.msra.mxu0 %v723
    %954 = vmatprep.mubr.bf16.mxu0 %v501
    %955 = vmatmul.mubr.bf16.gmra.mrb[0].mxu0 %v500
    %v956 = vpop.f32.mrb[0].mxu0
    %v957 = vadd.f32 0.0, %v956
    %v958 = vpop.f32.mrb[0].mxu0
    %v959 = vadd.f32 0.0, %v958
    %v960 = vpop.f32.mrb[0].mxu0
    %v961 = vpop.f32.mrb[0].mxu0
    %962 = vdwg.mxu0
    %963 = vmatprep.subr.bf16.mxu0 %v731
    %964 = vmatpush1.bf16.msra.mxu0 %v730
    %965 = vmatprep.subr.bf16.mxu0 %v738
    %966 = vmatpush1.bf16.msra.mxu0 %v737
    %967 = vmatprep.subr.bf16.mxu0 %v745
    %968 = vmatpush1.bf16.msra.mxu0 %v744
    %969 = vmatprep.subr.bf16.mxu0 %v752
    %970 = vmatpush1.bf16.msra.mxu0 %v751
    %971 = vmatprep.subr.bf16.mxu0 %v759
    %972 = vmatpush1.bf16.msra.mxu0 %v758
    %973 = vmatprep.subr.bf16.mxu0 %v766
    %974 = vmatpush1.bf16.msra.mxu0 %v765
    %975 = vmatprep.subr.bf16.mxu0 %v773
    %976 = vmatpush1.bf16.msra.mxu0 %v772
    %977 = vmatprep.subr.bf16.mxu0 %v780
    %978 = vmatpush1.bf16.msra.mxu0 %v779
    %979 = vmatprep.subr.bf16.mxu0 %v787
    %980 = vmatpush1.bf16.msra.mxu0 %v786
    %981 = vmatprep.subr.bf16.mxu0 %v794
    %982 = vmatpush1.bf16.msra.mxu0 %v793
    %983 = vmatprep.subr.bf16.mxu0 %v801
    %984 = vmatpush1.bf16.msra.mxu0 %v800
    %985 = vmatprep.subr.bf16.mxu0 %v808
    %986 = vmatpush1.bf16.msra.mxu0 %v807
    %987 = vmatprep.subr.bf16.mxu0 %v815
    %988 = vmatpush1.bf16.msra.mxu0 %v814
    %989 = vmatprep.subr.bf16.mxu0 %v822
    %990 = vmatpush1.bf16.msra.mxu0 %v821
    %991 = vmatprep.subr.bf16.mxu0 %v829
    %992 = vmatpush1.bf16.msra.mxu0 %v828
    %993 = vmatprep.subr.bf16.mxu0 %v836
    %994 = vmatpush1.bf16.msra.mxu0 %v835
    %995 = vmatprep.mubr.bf16.mxu0 %v503
    %996 = vmatmul.mubr.bf16.gmra.mrb[0].mxu0 %v502
    %v997 = vpop.f32.mrb[0].mxu0
    %v998 = vadd.f32 %v957, %v997
    %v999 = vpop.f32.mrb[0].mxu0
    %v1000 = vadd.f32 %v959, %v999
    %v1001 = vpop.f32.mrb[0].mxu0
    %v1002 = vpop.f32.mrb[0].mxu0
    %1003 = vdwg.mxu0
    %1004 = vmatprep.subr.bf16.mxu0 %v621
    %1005 = vmatpush1.bf16.msra.mxu0 %v620
    %1006 = vmatprep.subr.bf16.mxu0 %v628
    %1007 = vmatpush1.bf16.msra.mxu0 %v627
    %1008 = vmatprep.subr.bf16.mxu0 %v635
    %1009 = vmatpush1.bf16.msra.mxu0 %v634
    %1010 = vmatprep.subr.bf16.mxu0 %v642
    %1011 = vmatpush1.bf16.msra.mxu0 %v641
    %1012 = vmatprep.subr.bf16.mxu0 %v649
    %1013 = vmatpush1.bf16.msra.mxu0 %v648
    %1014 = vmatprep.subr.bf16.mxu0 %v656
    %1015 = vmatpush1.bf16.msra.mxu0 %v655
    %1016 = vmatprep.subr.bf16.mxu0 %v663
    %1017 = vmatpush1.bf16.msra.mxu0 %v662
    %1018 = vmatprep.subr.bf16.mxu0 %v670
    %1019 = vmatpush1.bf16.msra.mxu0 %v669
    %1020 = vmatprep.subr.bf16.mxu0 %v677
    %1021 = vmatpush1.bf16.msra.mxu0 %v676
    %1022 = vmatprep.subr.bf16.mxu0 %v684
    %1023 = vmatpush1.bf16.msra.mxu0 %v683
    %1024 = vmatprep.subr.bf16.mxu0 %v691
    %1025 = vmatpush1.bf16.msra.mxu0 %v690
    %1026 = vmatprep.subr.bf16.mxu0 %v698
    %1027 = vmatpush1.bf16.msra.mxu0 %v697
    %1028 = vmatprep.subr.bf16.mxu0 %v705
    %1029 = vmatpush1.bf16.msra.mxu0 %v704
    %1030 = vmatprep.subr.bf16.mxu0 %v712
    %1031 = vmatpush1.bf16.msra.mxu0 %v711
    %1032 = vmatprep.subr.bf16.mxu0 %v719
    %1033 = vmatpush1.bf16.msra.mxu0 %v718
    %1034 = vmatprep.subr.bf16.mxu0 %v726
    %1035 = vmatpush1.bf16.msra.mxu0 %v725
    %1036 = vmatprep.mubr.bf16.mxu0 %v501
    %1037 = vmatmul.mubr.bf16.gmra.mrb[0].mxu0 %v500
    %v1038 = vpop.f32.mrb[0].mxu0
    %v1039 = vadd.f32 0.0, %v1038
    %v1040 = vpop.f32.mrb[0].mxu0
    %v1041 = vadd.f32 0.0, %v1040
    %v1042 = vpop.f32.mrb[0].mxu0
    %v1043 = vpop.f32.mrb[0].mxu0
    %1044 = vdwg.mxu0
    %1045 = vmatprep.subr.bf16.mxu0 %v733
    %1046 = vmatpush1.bf16.msra.mxu0 %v732
    %1047 = vmatprep.subr.bf16.mxu0 %v740
    %1048 = vmatpush1.bf16.msra.mxu0 %v739
    %1049 = vmatprep.subr.bf16.mxu0 %v747
    %1050 = vmatpush1.bf16.msra.mxu0 %v746
    %1051 = vmatprep.subr.bf16.mxu0 %v754
    %1052 = vmatpush1.bf16.msra.mxu0 %v753
    %1053 = vmatprep.subr.bf16.mxu0 %v761
    %1054 = vmatpush1.bf16.msra.mxu0 %v760
    %1055 = vmatprep.subr.bf16.mxu0 %v768
    %1056 = vmatpush1.bf16.msra.mxu0 %v767
    %1057 = vmatprep.subr.bf16.mxu0 %v775
    %1058 = vmatpush1.bf16.msra.mxu0 %v774
    %1059 = vmatprep.subr.bf16.mxu0 %v782
    %1060 = vmatpush1.bf16.msra.mxu0 %v781
    %1061 = vmatprep.subr.bf16.mxu0 %v789
    %1062 = vmatpush1.bf16.msra.mxu0 %v788
    %1063 = vmatprep.subr.bf16.mxu0 %v796
    %1064 = vmatpush1.bf16.msra.mxu0 %v795
    %1065 = vmatprep.subr.bf16.mxu0 %v803
    %1066 = vmatpush1.bf16.msra.mxu0 %v802
    %1067 = vmatprep.subr.bf16.mxu0 %v810
    %1068 = vmatpush1.bf16.msra.mxu0 %v809
    %1069 = vmatprep.subr.bf16.mxu0 %v817
    %1070 = vmatpush1.bf16.msra.mxu0 %v816
    %1071 = vmatprep.subr.bf16.mxu0 %v824
    %1072 = vmatpush1.bf16.msra.mxu0 %v823
    %1073 = vmatprep.subr.bf16.mxu0 %v831
    %1074 = vmatpush1.bf16.msra.mxu0 %v830
    %1075 = vmatprep.subr.bf16.mxu0 %v838
    %1076 = vmatpush1.bf16.msra.mxu0 %v837
    %1077 = vmatprep.mubr.bf16.mxu0 %v503
    %1078 = vmatmul.mubr.bf16.gmra.mrb[0].mxu0 %v502
    %v1079 = vpop.f32.mrb[0].mxu0
    %v1080 = vadd.f32 %v1039, %v1079
    %v1081 = vpop.f32.mrb[0].mxu0
    %v1082 = vadd.f32 %v1041, %v1081
    %v1083 = vpop.f32.mrb[0].mxu0
    %v1084 = vpop.f32.mrb[0].mxu0
    %1085 = vdwg.mxu0
    %1086 = vmatprep.subr.bf16.mxu0 0
    %1087 = vmatpush1.bf16.msra.mxu0 %v622
    %1088 = vmatprep.subr.bf16.mxu0 0
    %1089 = vmatpush1.bf16.msra.mxu0 %v629
    %1090 = vmatprep.subr.bf16.mxu0 0
    %1091 = vmatpush1.bf16.msra.mxu0 %v636
    %1092 = vmatprep.subr.bf16.mxu0 0
    %1093 = vmatpush1.bf16.msra.mxu0 %v643
    %1094 = vmatprep.subr.bf16.mxu0 0
    %1095 = vmatpush1.bf16.msra.mxu0 %v650
    %1096 = vmatprep.subr.bf16.mxu0 0
    %1097 = vmatpush1.bf16.msra.mxu0 %v657
    %1098 = vmatprep.subr.bf16.mxu0 0
    %1099 = vmatpush1.bf16.msra.mxu0 %v664
    %1100 = vmatprep.subr.bf16.mxu0 0
    %1101 = vmatpush1.bf16.msra.mxu0 %v671
    %1102 = vmatprep.subr.bf16.mxu0 0
    %1103 = vmatpush1.bf16.msra.mxu0 %v678
    %1104 = vmatprep.subr.bf16.mxu0 0
    %1105 = vmatpush1.bf16.msra.mxu0 %v685
    %1106 = vmatprep.subr.bf16.mxu0 0
    %1107 = vmatpush1.bf16.msra.mxu0 %v692
    %1108 = vmatprep.subr.bf16.mxu0 0
    %1109 = vmatpush1.bf16.msra.mxu0 %v699
    %1110 = vmatprep.subr.bf16.mxu0 0
    %1111 = vmatpush1.bf16.msra.mxu0 %v706
    %1112 = vmatprep.subr.bf16.mxu0 0
    %1113 = vmatpush1.bf16.msra.mxu0 %v713
    %1114 = vmatprep.subr.bf16.mxu0 0
    %1115 = vmatpush1.bf16.msra.mxu0 %v720
    %1116 = vmatprep.subr.bf16.mxu0 0
    %1117 = vmatpush1.bf16.msra.mxu0 %v727
    %1118 = vmatprep.mubr.bf16.mxu0 %v501
    %1119 = vmatmul.mubr.bf16.gmra.mrb[0].mxu0 %v500
    %v1120 = vpop.f32.mrb[0].mxu0
    %v1121 = vadd.f32 0.0, %v1120
    %v1122 = vpop.f32.mrb[0].mxu0
    %v1123 = vpop.f32.mrb[0].mxu0
    %v1124 = vpop.f32.mrb[0].mxu0
    %1125 = vdwg.mxu0
    %1126 = vmatprep.subr.bf16.mxu0 0
    %1127 = vmatpush1.bf16.msra.mxu0 %v734
    %1128 = vmatprep.subr.bf16.mxu0 0
    %1129 = vmatpush1.bf16.msra.mxu0 %v741
    %1130 = vmatprep.subr.bf16.mxu0 0
    %1131 = vmatpush1.bf16.msra.mxu0 %v748
    %1132 = vmatprep.subr.bf16.mxu0 0
    %1133 = vmatpush1.bf16.msra.mxu0 %v755
    %1134 = vmatprep.subr.bf16.mxu0 0
    %1135 = vmatpush1.bf16.msra.mxu0 %v762
    %1136 = vmatprep.subr.bf16.mxu0 0
    %1137 = vmatpush1.bf16.msra.mxu0 %v769
    %1138 = vmatprep.subr.bf16.mxu0 0
    %1139 = vmatpush1.bf16.msra.mxu0 %v776
    %1140 = vmatprep.subr.bf16.mxu0 0
    %1141 = vmatpush1.bf16.msra.mxu0 %v783
    %1142 = vmatprep.subr.bf16.mxu0 0
    %1143 = vmatpush1.bf16.msra.mxu0 %v790
    %1144 = vmatprep.subr.bf16.mxu0 0
    %1145 = vmatpush1.bf16.msra.mxu0 %v797
    %1146 = vmatprep.subr.bf16.mxu0 0
    %1147 = vmatpush1.bf16.msra.mxu0 %v804
    %1148 = vmatprep.subr.bf16.mxu0 0
    %1149 = vmatpush1.bf16.msra.mxu0 %v811
    %1150 = vmatprep.subr.bf16.mxu0 0
    %1151 = vmatpush1.bf16.msra.mxu0 %v818
    %1152 = vmatprep.subr.bf16.mxu0 0
    %1153 = vmatpush1.bf16.msra.mxu0 %v825
    %1154 = vmatprep.subr.bf16.mxu0 0
    %1155 = vmatpush1.bf16.msra.mxu0 %v832
    %1156 = vmatprep.subr.bf16.mxu0 0
    %1157 = vmatpush1.bf16.msra.mxu0 %v839
    %1158 = vmatprep.mubr.bf16.mxu0 %v503
    %1159 = vmatmul.mubr.bf16.gmra.mrb[0].mxu0 %v502
    %v1160 = vpop.f32.mrb[0].mxu0
    %v1161 = vadd.f32 %v1121, %v1160
    %v1162 = vpop.f32.mrb[0].mxu0
    %v1163 = vpop.f32.mrb[0].mxu0
    %v1164 = vpop.f32.mrb[0].mxu0
    %1165 = vdwg.mxu0
    %v1166 = vld [vmem:[%s6] sm:$0xff]
    %v1168 = vlaneseq
    %v1169 = vshrl.u32 %v1168, 7
    %v1170 = vsub.s32 0, %v1169
    %v1171 = vrot.slane %v1166, %v1170
    %v1172 = vlaneseq
    %v1173 = vshrl.u32 %v1172, 7
    %v1174 = vsub.s32 1, %v1173
    %v1175 = vrot.slane %v1166, %v1174
    %v1176 = vlaneseq
    %v1177 = vshrl.u32 %v1176, 7
    %v1178 = vsub.s32 2, %v1177
    %v1179 = vrot.slane %v1166, %v1178
    %v1180 = vlaneseq
    %v1181 = vshrl.u32 %v1180, 7
    %v1182 = vsub.s32 3, %v1181
    %v1183 = vrot.slane %v1166, %v1182
    %v1184 = vlaneseq
    %v1185 = vshrl.u32 %v1184, 7
    %v1186 = vsub.s32 4, %v1185
    %v1187 = vrot.slane %v1166, %v1186
    %v1188 = vlaneseq
    %v1189 = vshrl.u32 %v1188, 7
    %v1190 = vsub.s32 5, %v1189
    %v1191 = vrot.slane %v1166, %v1190
    %v1192 = vlaneseq
    %v1193 = vshrl.u32 %v1192, 7
    %v1194 = vsub.s32 6, %v1193
    %v1195 = vrot.slane %v1166, %v1194
    %v1203 = vmul.f32 %v916, %v1171
    %v1204 = vmul.f32 %v918, %v1175
    %v1205 = vmul.f32 %v998, %v1179
    %v1206 = vmul.f32 %v1000, %v1183
    %v1207 = vmul.f32 %v1080, %v1187
    %v1208 = vmul.f32 %v1082, %v1191
    %v1209 = vmul.f32 %v1161, %v1195
    %v1210 = vld [vmem:[%s7] sm:$0xff]
    %v1212 = vlaneseq
    %v1213 = vshrl.u32 %v1212, 7
    %v1214 = vsub.s32 0, %v1213
    %v1215 = vrot.slane %v1210, %v1214
    %v1216 = vlaneseq
    %v1217 = vshrl.u32 %v1216, 7
    %v1218 = vsub.s32 1, %v1217
    %v1219 = vrot.slane %v1210, %v1218
    %v1220 = vlaneseq
    %v1221 = vshrl.u32 %v1220, 7
    %v1222 = vsub.s32 2, %v1221
    %v1223 = vrot.slane %v1210, %v1222
    %v1224 = vlaneseq
    %v1225 = vshrl.u32 %v1224, 7
    %v1226 = vsub.s32 3, %v1225
    %v1227 = vrot.slane %v1210, %v1226
    %v1228 = vlaneseq
    %v1229 = vshrl.u32 %v1228, 7
    %v1230 = vsub.s32 4, %v1229
    %v1231 = vrot.slane %v1210, %v1230
    %v1232 = vlaneseq
    %v1233 = vshrl.u32 %v1232, 7
    %v1234 = vsub.s32 5, %v1233
    %v1235 = vrot.slane %v1210, %v1234
    %v1236 = vlaneseq
    %v1237 = vshrl.u32 %v1236, 7
    %v1238 = vsub.s32 6, %v1237
    %v1239 = vrot.slane %v1210, %v1238
    %v1247 = vadd.f32 %v1203, %v1215
    %v1248 = vadd.f32 %v1204, %v1219
    %v1249 = vadd.f32 %v1205, %v1223
    %v1250 = vadd.f32 %v1206, %v1227
    %v1251 = vadd.f32 %v1207, %v1231
    %v1252 = vadd.f32 %v1208, %v1235
    %v1253 = vadd.f32 %v1209, %v1239
    %vm1254 = vcmp.gt.f32.partialorder %v1247, 0.0
    %vm1255 = vcmp.gt.f32.partialorder %v1248, 0.0
    %vm1256 = vcmp.gt.f32.partialorder %v1249, 0.0
    %vm1257 = vcmp.gt.f32.partialorder %v1250, 0.0
    %vm1258 = vcmp.gt.f32.partialorder %v1251, 0.0
    %vm1259 = vcmp.gt.f32.partialorder %v1252, 0.0
    %vm1260 = vcmp.gt.f32.partialorder %v1253, 0.0
    %v1261 = vmul.f32 %v1247, 0.01
    %v1262 = vmul.f32 %v1248, 0.01
    %v1263 = vmul.f32 %v1249, 0.01
    %v1264 = vmul.f32 %v1250, 0.01
    %v1265 = vmul.f32 %v1251, 0.01
    %v1266 = vmul.f32 %v1252, 0.01
    %v1267 = vmul.f32 %v1253, 0.01
    %v1268 = vsel %vm1254, %v1247, %v1261
    %v1269 = vsel %vm1255, %v1248, %v1262
    %v1270 = vsel %vm1256, %v1249, %v1263
    %v1271 = vsel %vm1257, %v1250, %v1264
    %v1272 = vsel %vm1258, %v1251, %v1265
    %v1273 = vsel %vm1259, %v1252, %v1266
    %v1274 = vsel %vm1260, %v1253, %v1267
    %v1275 = vld [vmem:[%s8] sm:$0xff]
    %v1276 = vld [vmem:[%s9] sm:$0xff]
    %v1277 = vrot.slane %v1268, 4
    %v1278 = vadd.f32 %v1268, %v1277
    %v1279 = vrot.slane %v1278, 2
    %v1280 = vadd.f32 %v1278, %v1279
    %v1281 = vrot.slane %v1280, 1
    %v1282 = vadd.f32 %v1280, %v1281
    %v1283 = vrot.slane %v1269, 4
    %v1284 = vadd.f32 %v1269, %v1283
    %v1285 = vrot.slane %v1284, 2
    %v1286 = vadd.f32 %v1284, %v1285
    %v1287 = vrot.slane %v1286, 1
    %v1288 = vadd.f32 %v1286, %v1287
    %v1289 = vrot.slane %v1270, 4
    %v1290 = vadd.f32 %v1270, %v1289
    %v1291 = vrot.slane %v1290, 2
    %v1292 = vadd.f32 %v1290, %v1291
    %v1293 = vrot.slane %v1292, 1
    %v1294 = vadd.f32 %v1292, %v1293
    %v1295 = vrot.slane %v1271, 4
    %v1296 = vadd.f32 %v1271, %v1295
    %v1297 = vrot.slane %v1296, 2
    %v1298 = vadd.f32 %v1296, %v1297
    %v1299 = vrot.slane %v1298, 1
    %v1300 = vadd.f32 %v1298, %v1299
    %v1301 = vrot.slane %v1272, 4
    %v1302 = vadd.f32 %v1272, %v1301
    %v1303 = vrot.slane %v1302, 2
    %v1304 = vadd.f32 %v1302, %v1303
    %v1305 = vrot.slane %v1304, 1
    %v1306 = vadd.f32 %v1304, %v1305
    %v1307 = vrot.slane %v1273, 4
    %v1308 = vadd.f32 %v1273, %v1307
    %v1309 = vrot.slane %v1308, 2
    %v1310 = vadd.f32 %v1308, %v1309
    %v1311 = vrot.slane %v1310, 1
    %v1312 = vadd.f32 %v1310, %v1311
    %v1313 = vrot.slane %v1274, 4
    %v1314 = vadd.f32 %v1274, %v1313
    %v1315 = vrot.slane %v1314, 2
    %v1316 = vadd.f32 %v1314, %v1315
    %v1317 = vrot.slane %v1316, 1
    %v1318 = vadd.f32 %v1316, %v1317
    %v1319 = vmul.f32 %v1268, %v1268
    %v1320 = vmul.f32 %v1269, %v1269
    %v1321 = vmul.f32 %v1270, %v1270
    %v1322 = vmul.f32 %v1271, %v1271
    %v1323 = vmul.f32 %v1272, %v1272
    %v1324 = vmul.f32 %v1273, %v1273
    %v1325 = vmul.f32 %v1274, %v1274
    %v1326 = vrot.slane %v1319, 4
    %v1327 = vadd.f32 %v1319, %v1326
    %v1328 = vrot.slane %v1327, 2
    %v1329 = vadd.f32 %v1327, %v1328
    %v1330 = vrot.slane %v1329, 1
    %v1331 = vadd.f32 %v1329, %v1330
    %v1332 = vrot.slane %v1320, 4
    %v1333 = vadd.f32 %v1320, %v1332
    %v1334 = vrot.slane %v1333, 2
    %v1335 = vadd.f32 %v1333, %v1334
    %v1336 = vrot.slane %v1335, 1
    %v1337 = vadd.f32 %v1335, %v1336
    %v1338 = vrot.slane %v1321, 4
    %v1339 = vadd.f32 %v1321, %v1338
    %v1340 = vrot.slane %v1339, 2
    %v1341 = vadd.f32 %v1339, %v1340
    %v1342 = vrot.slane %v1341, 1
    %v1343 = vadd.f32 %v1341, %v1342
    %v1344 = vrot.slane %v1322, 4
    %v1345 = vadd.f32 %v1322, %v1344
    %v1346 = vrot.slane %v1345, 2
    %v1347 = vadd.f32 %v1345, %v1346
    %v1348 = vrot.slane %v1347, 1
    %v1349 = vadd.f32 %v1347, %v1348
    %v1350 = vrot.slane %v1323, 4
    %v1351 = vadd.f32 %v1323, %v1350
    %v1352 = vrot.slane %v1351, 2
    %v1353 = vadd.f32 %v1351, %v1352
    %v1354 = vrot.slane %v1353, 1
    %v1355 = vadd.f32 %v1353, %v1354
    %v1356 = vrot.slane %v1324, 4
    %v1357 = vadd.f32 %v1324, %v1356
    %v1358 = vrot.slane %v1357, 2
    %v1359 = vadd.f32 %v1357, %v1358
    %v1360 = vrot.slane %v1359, 1
    %v1361 = vadd.f32 %v1359, %v1360
    %v1362 = vrot.slane %v1325, 4
    %v1363 = vadd.f32 %v1325, %v1362
    %v1364 = vrot.slane %v1363, 2
    %v1365 = vadd.f32 %v1363, %v1364
    %v1366 = vrot.slane %v1365, 1
    %v1367 = vadd.f32 %v1365, %v1366
    %v1368 = vmul.f32 %v1282, 0.125
    %v1369 = vmul.f32 %v1288, 0.125
    %v1370 = vmul.f32 %v1294, 0.125
    %v1371 = vmul.f32 %v1300, 0.125
    %v1372 = vmul.f32 %v1306, 0.125
    %v1373 = vmul.f32 %v1312, 0.125
    %v1374 = vmul.f32 %v1318, 0.125
    %v1375 = vmul.f32 %v1331, 0.125
    %v1376 = vmul.f32 %v1337, 0.125
    %v1377 = vmul.f32 %v1343, 0.125
    %v1378 = vmul.f32 %v1349, 0.125
    %v1379 = vmul.f32 %v1355, 0.125
    %v1380 = vmul.f32 %v1361, 0.125
    %v1381 = vmul.f32 %v1367, 0.125
    %v1382 = vmul.f32 %v1368, %v1368
    %v1383 = vmul.f32 %v1369, %v1369
    %v1384 = vmul.f32 %v1370, %v1370
    %v1385 = vmul.f32 %v1371, %v1371
    %v1386 = vmul.f32 %v1372, %v1372
    %v1387 = vmul.f32 %v1373, %v1373
    %v1388 = vmul.f32 %v1374, %v1374
    %v1389 = vsub.f32 %v1375, %v1382
    %v1390 = vsub.f32 %v1376, %v1383
    %v1391 = vsub.f32 %v1377, %v1384
    %v1392 = vsub.f32 %v1378, %v1385
    %v1393 = vsub.f32 %v1379, %v1386
    %v1394 = vsub.f32 %v1380, %v1387
    %v1395 = vsub.f32 %v1381, %v1388
    %v1396 = vmax.f32 %v1389, 0.0
    %v1397 = vmax.f32 %v1390, 0.0
    %v1398 = vmax.f32 %v1391, 0.0
    %v1399 = vmax.f32 %v1392, 0.0
    %v1400 = vmax.f32 %v1393, 0.0
    %v1401 = vmax.f32 %v1394, 0.0
    %v1402 = vmax.f32 %v1395, 0.0
    %v1403 = vadd.f32 %v1396, 1e-05
    %v1404 = vadd.f32 %v1397, 1e-05
    %v1405 = vadd.f32 %v1398, 1e-05
    %v1406 = vadd.f32 %v1399, 1e-05
    %v1407 = vadd.f32 %v1400, 1e-05
    %v1408 = vadd.f32 %v1401, 1e-05
    %v1409 = vadd.f32 %v1402, 1e-05
    %v1410 = vrsqrt.pop %v1403
    %v1411 = vrsqrt.pop %v1404
    %v1412 = vrsqrt.pop %v1405
    %v1413 = vrsqrt.pop %v1406
    %v1414 = vrsqrt.pop %v1407
    %v1415 = vrsqrt.pop %v1408
    %v1416 = vrsqrt.pop %v1409
    %v1424 = vcombine.low %v1410, %v1411
    %v1425 = vcombine.low %v1412, %v1413
    %v1426 = vcombine.low %v1414, %v1415
    %v1428 = vunpack.c.l.s4 1966171168
    %v1429 = vunpack.c.0.s8 %v1428
    %v1430 = vlaneseq
    %v1431 = vshrl.u32 %v1430, 7
    %v1432 = vsub.s32 %v1429, %v1431
    %v1433 = vrot.slane %v1424, %v1432
    %v1435 = vunpack.c.l.s4 1966171168
    %v1436 = vunpack.c.0.s8 %v1435
    %v1437 = vlaneseq
    %v1438 = vshrl.u32 %v1437, 7
    %v1439 = vsub.s32 %v1436, %v1438
    %v1440 = vrot.slane %v1425, %v1439
    %v1442 = vunpack.c.l.s4 1966171168
    %v1443 = vunpack.c.0.s8 %v1442
    %v1444 = vlaneseq
    %v1445 = vshrl.u32 %v1444, 7
    %v1446 = vsub.s32 %v1443, %v1445
    %v1447 = vrot.slane %v1426, %v1446
    %v1449 = vunpack.c.l.s4 1966171168
    %v1450 = vunpack.c.0.s8 %v1449
    %v1451 = vlaneseq
    %v1452 = vshrl.u32 %v1451, 7
    %v1453 = vsub.s32 %v1450, %v1452
    %v1454 = vrot.slane %v1416, %v1453
    %v1455 = vcombine.low %v1433, %v1440
    %v1456 = vcombine.low %v1447, %v1454
    %v1458 = vunpack.c.l.s4 1966171168
    %v1459 = vunpack.c.0.s8 %v1458
    %v1460 = vlaneseq
    %v1461 = vshrl.u32 %v1460, 7
    %v1462 = vsub.s32 %v1459, %v1461
    %v1463 = vrot.slane %v1455, %v1462
    %v1465 = vunpack.c.l.s4 1966171168
    %v1466 = vunpack.c.0.s8 %v1465
    %v1467 = vlaneseq
    %v1468 = vshrl.u32 %v1467, 7
    %v1469 = vsub.s32 %v1466, %v1468
    %v1470 = vrot.slane %v1456, %v1469
    %v1471 = vcombine.low %v1463, %v1470
    %v1473 = vmul.f32 %v1275, %v1471
    %v1475 = vlaneseq
    %v1476 = vshrl.u32 %v1475, 7
    %v1477 = vsub.s32 0, %v1476
    %v1478 = vrot.slane %v1473, %v1477
    %v1479 = vlaneseq
    %v1480 = vshrl.u32 %v1479, 7
    %v1481 = vsub.s32 1, %v1480
    %v1482 = vrot.slane %v1473, %v1481
    %v1483 = vlaneseq
    %v1484 = vshrl.u32 %v1483, 7
    %v1485 = vsub.s32 2, %v1484
    %v1486 = vrot.slane %v1473, %v1485
    %v1487 = vlaneseq
    %v1488 = vshrl.u32 %v1487, 7
    %v1489 = vsub.s32 3, %v1488
    %v1490 = vrot.slane %v1473, %v1489
    %v1491 = vlaneseq
    %v1492 = vshrl.u32 %v1491, 7
    %v1493 = vsub.s32 4, %v1492
    %v1494 = vrot.slane %v1473, %v1493
    %v1495 = vlaneseq
    %v1496 = vshrl.u32 %v1495, 7
    %v1497 = vsub.s32 5, %v1496
    %v1498 = vrot.slane %v1473, %v1497
    %v1499 = vlaneseq
    %v1500 = vshrl.u32 %v1499, 7
    %v1501 = vsub.s32 6, %v1500
    %v1502 = vrot.slane %v1473, %v1501
    %v1510 = vmul.f32 %v1368, %v1478
    %v1511 = vmul.f32 %v1369, %v1482
    %v1512 = vmul.f32 %v1370, %v1486
    %v1513 = vmul.f32 %v1371, %v1490
    %v1514 = vmul.f32 %v1372, %v1494
    %v1515 = vmul.f32 %v1373, %v1498
    %v1516 = vmul.f32 %v1374, %v1502
    %v1524 = vcombine.low %v1510, %v1511
    %v1525 = vcombine.low %v1512, %v1513
    %v1526 = vcombine.low %v1514, %v1515
    %v1528 = vunpack.c.l.s4 1966171168
    %v1529 = vunpack.c.0.s8 %v1528
    %v1530 = vlaneseq
    %v1531 = vshrl.u32 %v1530, 7
    %v1532 = vsub.s32 %v1529, %v1531
    %v1533 = vrot.slane %v1524, %v1532
    %v1535 = vunpack.c.l.s4 1966171168
    %v1536 = vunpack.c.0.s8 %v1535
    %v1537 = vlaneseq
    %v1538 = vshrl.u32 %v1537, 7
    %v1539 = vsub.s32 %v1536, %v1538
    %v1540 = vrot.slane %v1525, %v1539
    %v1542 = vunpack.c.l.s4 1966171168
    %v1543 = vunpack.c.0.s8 %v1542
    %v1544 = vlaneseq
    %v1545 = vshrl.u32 %v1544, 7
    %v1546 = vsub.s32 %v1543, %v1545
    %v1547 = vrot.slane %v1526, %v1546
    %v1549 = vunpack.c.l.s4 1966171168
    %v1550 = vunpack.c.0.s8 %v1549
    %v1551 = vlaneseq
    %v1552 = vshrl.u32 %v1551, 7
    %v1553 = vsub.s32 %v1550, %v1552
    %v1554 = vrot.slane %v1516, %v1553
    %v1555 = vcombine.low %v1533, %v1540
    %v1556 = vcombine.low %v1547, %v1554
    %v1558 = vunpack.c.l.s4 1966171168
    %v1559 = vunpack.c.0.s8 %v1558
    %v1560 = vlaneseq
    %v1561 = vshrl.u32 %v1560, 7
    %v1562 = vsub.s32 %v1559, %v1561
    %v1563 = vrot.slane %v1555, %v1562
    %v1565 = vunpack.c.l.s4 1966171168
    %v1566 = vunpack.c.0.s8 %v1565
    %v1567 = vlaneseq
    %v1568 = vshrl.u32 %v1567, 7
    %v1569 = vsub.s32 %v1566, %v1568
    %v1570 = vrot.slane %v1556, %v1569
    %v1571 = vcombine.low %v1563, %v1570
    %v1573 = vsub.f32 %v1276, %v1571
    %v1574 = vmul.f32 %v1268, %v1478
    %v1575 = vmul.f32 %v1269, %v1482
    %v1576 = vmul.f32 %v1270, %v1486
    %v1577 = vmul.f32 %v1271, %v1490
    %v1578 = vmul.f32 %v1272, %v1494
    %v1579 = vmul.f32 %v1273, %v1498
    %v1580 = vmul.f32 %v1274, %v1502
    %v1582 = vlaneseq
    %v1583 = vshrl.u32 %v1582, 7
    %v1584 = vsub.s32 0, %v1583
    %v1585 = vrot.slane %v1573, %v1584
    %v1586 = vlaneseq
    %v1587 = vshrl.u32 %v1586, 7
    %v1588 = vsub.s32 1, %v1587
    %v1589 = vrot.slane %v1573, %v1588
    %v1590 = vlaneseq
    %v1591 = vshrl.u32 %v1590, 7
    %v1592 = vsub.s32 2, %v1591
    %v1593 = vrot.slane %v1573, %v1592
    %v1594 = vlaneseq
    %v1595 = vshrl.u32 %v1594, 7
    %v1596 = vsub.s32 3, %v1595
    %v1597 = vrot.slane %v1573, %v1596
    %v1598 = vlaneseq
    %v1599 = vshrl.u32 %v1598, 7
    %v1600 = vsub.s32 4, %v1599
    %v1601 = vrot.slane %v1573, %v1600
    %v1602 = vlaneseq
    %v1603 = vshrl.u32 %v1602, 7
    %v1604 = vsub.s32 5, %v1603
    %v1605 = vrot.slane %v1573, %v1604
    %v1606 = vlaneseq
    %v1607 = vshrl.u32 %v1606, 7
    %v1608 = vsub.s32 6, %v1607
    %v1609 = vrot.slane %v1573, %v1608
    %v1617 = vadd.f32 %v1574, %v1585
    %v1618 = vadd.f32 %v1575, %v1589
    %v1619 = vadd.f32 %v1576, %v1593
    %v1620 = vadd.f32 %v1577, %v1597
    %v1621 = vadd.f32 %v1578, %v1601
    %v1622 = vadd.f32 %v1579, %v1605
    %v1623 = vadd.f32 %v1580, %v1609
    %v1624 = vpack.c.bf16 %v1617, %v1617
    %v1625 = vpack.c.bf16 %v1618, %v1618
    %v1626 = vpack.c.bf16 %v1619, %v1619
    %v1627 = vpack.c.bf16 %v1620, %v1620
    %v1628 = vpack.c.bf16 %v1621, %v1621
    %v1629 = vpack.c.bf16 %v1622, %v1622
    %v1630 = vpack.c.bf16 %v1623, %v1623
    %v1631 = vld [vmem:[#allocation13] sm:$0xff]
    %v1632 = vld [vmem:[#allocation13 + $0x8] sm:$0xff]
    %v1633 = vld [vmem:[#allocation13 + $0x10] sm:$0xff]
    %v1634 = vld [vmem:[#allocation13 + $0x18] sm:$0xff]
    %v1635 = vld [vmem:[#allocation13 + $0x20] sm:$0xff]
    %v1636 = vld [vmem:[#allocation13 + $0x28] sm:$0xff]
    %v1637 = vld [vmem:[#allocation13 + $0x30] sm:$0xff]
    %v1638 = vld [vmem:[#allocation13 + $0x38] sm:$0xff]
    %v1639 = vld [vmem:[#allocation13 + $0x40] sm:$0xff]
    %v1640 = vld [vmem:[#allocation13 + $0x48] sm:$0xff]
    %v1641 = vld [vmem:[#allocation13 + $0x50] sm:$0xff]
    %v1642 = vld [vmem:[#allocation13 + $0x58] sm:$0xff]
    %v1643 = vld [vmem:[#allocation13 + $0x60] sm:$0xff]
    %v1644 = vld [vmem:[#allocation13 + $0x68] sm:$0xff]
    %v1645 = vld [vmem:[#allocation13 + $0x70] sm:$0xff]
    %v1646 = vld [vmem:[#allocation13 + $0x78] sm:$0xff]
    %v1647 = vld [vmem:[#allocation13 + $0x80] sm:$0xff]
    %v1648 = vld [vmem:[#allocation13 + $0x88] sm:$0xff]
    %v1649 = vld [vmem:[#allocation13 + $0x90] sm:$0xff]
    %v1650 = vld [vmem:[#allocation13 + $0x98] sm:$0xff]
    %v1651 = vld [vmem:[#allocation13 + $0xa0] sm:$0xff]
    %v1652 = vld [vmem:[#allocation13 + $0xa8] sm:$0xff]
    %v1653 = vld [vmem:[#allocation13 + $0xb0] sm:$0xff]
    %v1654 = vld [vmem:[#allocation13 + $0xb8] sm:$0xff]
    %v1655 = vld [vmem:[#allocation13 + $0xc0] sm:$0xff]
    %v1656 = vld [vmem:[#allocation13 + $0xc8] sm:$0xff]
    %v1657 = vld [vmem:[#allocation13 + $0xd0] sm:$0xff]
    %v1658 = vld [vmem:[#allocation13 + $0xd8] sm:$0xff]
    %v1659 = vld [vmem:[#allocation13 + $0xe0] sm:$0xff]
    %v1660 = vld [vmem:[#allocation13 + $0xe8] sm:$0xff]
    %v1661 = vld [vmem:[#allocation13 + $0xf0] sm:$0xff]
    %v1662 = vld [vmem:[#allocation13 + $0xf8] sm:$0xff]
    %v1663 = vld [vmem:[#allocation13 + $0x100] sm:$0xff]
    %v1664 = vld [vmem:[#allocation13 + $0x108] sm:$0xff]
    %v1665 = vld [vmem:[#allocation13 + $0x110] sm:$0xff]
    %v1666 = vld [vmem:[#allocation13 + $0x118] sm:$0xff]
    %v1667 = vld [vmem:[#allocation13 + $0x120] sm:$0xff]
    %v1668 = vld [vmem:[#allocation13 + $0x128] sm:$0xff]
    %v1669 = vld [vmem:[#allocation13 + $0x130] sm:$0xff]
    %v1670 = vld [vmem:[#allocation13 + $0x138] sm:$0xff]
    %v1671 = vld [vmem:[#allocation13 + $0x140] sm:$0xff]
    %v1672 = vld [vmem:[#allocation13 + $0x148] sm:$0xff]
    %v1673 = vld [vmem:[#allocation13 + $0x150] sm:$0xff]
    %v1674 = vld [vmem:[#allocation13 + $0x158] sm:$0xff]
    %v1675 = vld [vmem:[#allocation13 + $0x160] sm:$0xff]
    %v1676 = vld [vmem:[#allocation13 + $0x168] sm:$0xff]
    %v1677 = vld [vmem:[#allocation13 + $0x170] sm:$0xff]
    %v1678 = vld [vmem:[#allocation13 + $0x178] sm:$0xff]
    %v1679 = vld [vmem:[#allocation13 + $0x180] sm:$0xff]
    %v1680 = vld [vmem:[#allocation13 + $0x188] sm:$0xff]
    %v1681 = vld [vmem:[#allocation13 + $0x190] sm:$0xff]
    %v1682 = vld [vmem:[#allocation13 + $0x198] sm:$0xff]
    %v1683 = vld [vmem:[#allocation13 + $0x1a0] sm:$0xff]
    %v1684 = vld [vmem:[#allocation13 + $0x1a8] sm:$0xff]
    %v1685 = vld [vmem:[#allocation13 + $0x1b0] sm:$0xff]
    %v1686 = vld [vmem:[#allocation13 + $0x1b8] sm:$0xff]
    %v1687 = vld [vmem:[#allocation13 + $0x1c0] sm:$0xff]
    %v1688 = vld [vmem:[#allocation13 + $0x1c8] sm:$0xff]
    %v1689 = vld [vmem:[#allocation13 + $0x1d0] sm:$0xff]
    %v1690 = vld [vmem:[#allocation13 + $0x1d8] sm:$0xff]
    %v1691 = vld [vmem:[#allocation13 + $0x1e0] sm:$0xff]
    %v1692 = vld [vmem:[#allocation13 + $0x1e8] sm:$0xff]
    %v1693 = vld [vmem:[#allocation13 + $0x1f0] sm:$0xff]
    %v1694 = vld [vmem:[#allocation13 + $0x1f8] sm:$0xff]
    %v1695 = vld [vmem:[#allocation13 + $0x200] sm:$0xff]
    %v1696 = vld [vmem:[#allocation13 + $0x208] sm:$0xff]
    %v1697 = vld [vmem:[#allocation13 + $0x210] sm:$0xff]
    %v1698 = vld [vmem:[#allocation13 + $0x218] sm:$0xff]
    %v1699 = vld [vmem:[#allocation13 + $0x220] sm:$0xff]
    %v1700 = vld [vmem:[#allocation13 + $0x228] sm:$0xff]
    %v1701 = vld [vmem:[#allocation13 + $0x230] sm:$0xff]
    %v1702 = vld [vmem:[#allocation13 + $0x238] sm:$0xff]
    %v1703 = vld [vmem:[#allocation13 + $0x240] sm:$0xff]
    %v1704 = vld [vmem:[#allocation13 + $0x248] sm:$0xff]
    %v1705 = vld [vmem:[#allocation13 + $0x250] sm:$0xff]
    %v1706 = vld [vmem:[#allocation13 + $0x258] sm:$0xff]
    %v1707 = vld [vmem:[#allocation13 + $0x260] sm:$0xff]
    %v1708 = vld [vmem:[#allocation13 + $0x268] sm:$0xff]
    %v1709 = vld [vmem:[#allocation13 + $0x270] sm:$0xff]
    %v1710 = vld [vmem:[#allocation13 + $0x278] sm:$0xff]
    %v1711 = vld [vmem:[#allocation13 + $0x280] sm:$0xff]
    %v1712 = vld [vmem:[#allocation13 + $0x288] sm:$0xff]
    %v1713 = vld [vmem:[#allocation13 + $0x290] sm:$0xff]
    %v1714 = vld [vmem:[#allocation13 + $0x298] sm:$0xff]
    %v1715 = vld [vmem:[#allocation13 + $0x2a0] sm:$0xff]
    %v1716 = vld [vmem:[#allocation13 + $0x2a8] sm:$0xff]
    %v1717 = vld [vmem:[#allocation13 + $0x2b0] sm:$0xff]
    %v1718 = vld [vmem:[#allocation13 + $0x2b8] sm:$0xff]
    %v1719 = vld [vmem:[#allocation13 + $0x2c0] sm:$0xff]
    %v1720 = vld [vmem:[#allocation13 + $0x2c8] sm:$0xff]
    %v1721 = vld [vmem:[#allocation13 + $0x2d0] sm:$0xff]
    %v1722 = vld [vmem:[#allocation13 + $0x2d8] sm:$0xff]
    %v1723 = vld [vmem:[#allocation13 + $0x2e0] sm:$0xff]
    %v1724 = vld [vmem:[#allocation13 + $0x2e8] sm:$0xff]
    %v1725 = vld [vmem:[#allocation13 + $0x2f0] sm:$0xff]
    %v1726 = vld [vmem:[#allocation13 + $0x2f8] sm:$0xff]
    %v1727 = vld [vmem:[#allocation13 + $0x300] sm:$0xff]
    %v1728 = vld [vmem:[#allocation13 + $0x308] sm:$0xff]
    %v1729 = vld [vmem:[#allocation13 + $0x310] sm:$0xff]
    %v1730 = vld [vmem:[#allocation13 + $0x318] sm:$0xff]
    %v1731 = vld [vmem:[#allocation13 + $0x320] sm:$0xff]
    %v1732 = vld [vmem:[#allocation13 + $0x328] sm:$0xff]
    %v1733 = vld [vmem:[#allocation13 + $0x330] sm:$0xff]
    %v1734 = vld [vmem:[#allocation13 + $0x338] sm:$0xff]
    %v1735 = vld [vmem:[#allocation13 + $0x340] sm:$0xff]
    %v1736 = vld [vmem:[#allocation13 + $0x348] sm:$0xff]
    %v1737 = vld [vmem:[#allocation13 + $0x350] sm:$0xff]
    %v1738 = vld [vmem:[#allocation13 + $0x358] sm:$0xff]
    %v1739 = vld [vmem:[#allocation13 + $0x360] sm:$0xff]
    %v1740 = vld [vmem:[#allocation13 + $0x368] sm:$0xff]
    %v1741 = vld [vmem:[#allocation13 + $0x370] sm:$0xff]
    %v1742 = vld [vmem:[#allocation13 + $0x378] sm:$0xff]
    %v1743 = vld [vmem:[#allocation13 + $0x380] sm:$0xff]
    %v1744 = vld [vmem:[#allocation13 + $0x388] sm:$0xff]
    %v1745 = vld [vmem:[#allocation13 + $0x390] sm:$0xff]
    %v1746 = vld [vmem:[#allocation13 + $0x398] sm:$0xff]
    %v1747 = vld [vmem:[#allocation13 + $0x3a0] sm:$0xff]
    %v1748 = vld [vmem:[#allocation13 + $0x3a8] sm:$0xff]
    %v1749 = vld [vmem:[#allocation13 + $0x3b0] sm:$0xff]
    %v1750 = vld [vmem:[#allocation13 + $0x3b8] sm:$0xff]
    %v1751 = vld [vmem:[#allocation13 + $0x3c0] sm:$0xff]
    %v1752 = vld [vmem:[#allocation13 + $0x3c8] sm:$0xff]
    %v1753 = vld [vmem:[#allocation13 + $0x3d0] sm:$0xff]
    %v1754 = vld [vmem:[#allocation13 + $0x3d8] sm:$0xff]
    %v1755 = vld [vmem:[#allocation13 + $0x3e0] sm:$0xff]
    %v1756 = vld [vmem:[#allocation13 + $0x3e8] sm:$0xff]
    %v1757 = vld [vmem:[#allocation13 + $0x3f0] sm:$0xff]
    %v1758 = vld [vmem:[#allocation13 + $0x3f8] sm:$0xff]
    %v1759 = vld [vmem:[#allocation13 + $0x400] sm:$0xff]
    %v1760 = vld [vmem:[#allocation13 + $0x408] sm:$0xff]
    %v1761 = vld [vmem:[#allocation13 + $0x410] sm:$0xff]
    %v1762 = vld [vmem:[#allocation13 + $0x418] sm:$0xff]
    %v1763 = vld [vmem:[#allocation13 + $0x420] sm:$0xff]
    %v1764 = vld [vmem:[#allocation13 + $0x428] sm:$0xff]
    %v1765 = vld [vmem:[#allocation13 + $0x430] sm:$0xff]
    %v1766 = vld [vmem:[#allocation13 + $0x438] sm:$0xff]
    %v1767 = vld [vmem:[#allocation13 + $0x440] sm:$0xff]
    %v1768 = vld [vmem:[#allocation13 + $0x448] sm:$0xff]
    %v1769 = vld [vmem:[#allocation13 + $0x450] sm:$0xff]
    %v1770 = vld [vmem:[#allocation13 + $0x458] sm:$0xff]
    %v1771 = vld [vmem:[#allocation13 + $0x460] sm:$0xff]
    %v1772 = vld [vmem:[#allocation13 + $0x468] sm:$0xff]
    %v1773 = vld [vmem:[#allocation13 + $0x470] sm:$0xff]
    %v1774 = vld [vmem:[#allocation13 + $0x478] sm:$0xff]
    %v1775 = vld [vmem:[#allocation13 + $0x480] sm:$0xff]
    %v1776 = vld [vmem:[#allocation13 + $0x488] sm:$0xff]
    %v1777 = vld [vmem:[#allocation13 + $0x490] sm:$0xff]
    %v1778 = vld [vmem:[#allocation13 + $0x498] sm:$0xff]
    %v1779 = vld [vmem:[#allocation13 + $0x4a0] sm:$0xff]
    %v1780 = vld [vmem:[#allocation13 + $0x4a8] sm:$0xff]
    %v1781 = vld [vmem:[#allocation13 + $0x4b0] sm:$0xff]
    %v1782 = vld [vmem:[#allocation13 + $0x4b8] sm:$0xff]
    %v1783 = vld [vmem:[#allocation13 + $0x4c0] sm:$0xff]
    %v1784 = vld [vmem:[#allocation13 + $0x4c8] sm:$0xff]
    %v1785 = vld [vmem:[#allocation13 + $0x4d0] sm:$0xff]
    %v1786 = vld [vmem:[#allocation13 + $0x4d8] sm:$0xff]
    %v1787 = vld [vmem:[#allocation13 + $0x4e0] sm:$0xff]
    %v1788 = vld [vmem:[#allocation13 + $0x4e8] sm:$0xff]
    %v1789 = vld [vmem:[#allocation13 + $0x4f0] sm:$0xff]
    %v1790 = vld [vmem:[#allocation13 + $0x4f8] sm:$0xff]
    %v1791 = vld [vmem:[#allocation13 + $0x500] sm:$0xff]
    %v1792 = vld [vmem:[#allocation13 + $0x508] sm:$0xff]
    %v1793 = vld [vmem:[#allocation13 + $0x510] sm:$0xff]
    %v1794 = vld [vmem:[#allocation13 + $0x518] sm:$0xff]
    %v1795 = vld [vmem:[#allocation13 + $0x520] sm:$0xff]
    %v1796 = vld [vmem:[#allocation13 + $0x528] sm:$0xff]
    %v1797 = vld [vmem:[#allocation13 + $0x530] sm:$0xff]
    %v1798 = vld [vmem:[#allocation13 + $0x538] sm:$0xff]
    %v1799 = vld [vmem:[#allocation13 + $0x540] sm:$0xff]
    %v1800 = vld [vmem:[#allocation13 + $0x548] sm:$0xff]
    %v1801 = vld [vmem:[#allocation13 + $0x550] sm:$0xff]
    %v1802 = vld [vmem:[#allocation13 + $0x558] sm:$0xff]
    %v1803 = vld [vmem:[#allocation13 + $0x560] sm:$0xff]
    %v1804 = vld [vmem:[#allocation13 + $0x568] sm:$0xff]
    %v1805 = vld [vmem:[#allocation13 + $0x570] sm:$0xff]
    %v1806 = vld [vmem:[#allocation13 + $0x578] sm:$0xff]
    %v1807 = vld [vmem:[#allocation13 + $0x580] sm:$0xff]
    %v1808 = vld [vmem:[#allocation13 + $0x588] sm:$0xff]
    %v1809 = vld [vmem:[#allocation13 + $0x590] sm:$0xff]
    %v1810 = vld [vmem:[#allocation13 + $0x598] sm:$0xff]
    %v1811 = vld [vmem:[#allocation13 + $0x5a0] sm:$0xff]
    %v1812 = vld [vmem:[#allocation13 + $0x5a8] sm:$0xff]
    %v1813 = vld [vmem:[#allocation13 + $0x5b0] sm:$0xff]
    %v1814 = vld [vmem:[#allocation13 + $0x5b8] sm:$0xff]
    %v1815 = vld [vmem:[#allocation13 + $0x5c0] sm:$0xff]
    %v1816 = vld [vmem:[#allocation13 + $0x5c8] sm:$0xff]
    %v1817 = vld [vmem:[#allocation13 + $0x5d0] sm:$0xff]
    %v1818 = vld [vmem:[#allocation13 + $0x5d8] sm:$0xff]
    %v1819 = vld [vmem:[#allocation13 + $0x5e0] sm:$0xff]
    %v1820 = vld [vmem:[#allocation13 + $0x5e8] sm:$0xff]
    %v1821 = vld [vmem:[#allocation13 + $0x5f0] sm:$0xff]
    %v1822 = vld [vmem:[#allocation13 + $0x5f8] sm:$0xff]
    %v1823 = vld [vmem:[#allocation13 + $0x600] sm:$0xff]
    %v1824 = vld [vmem:[#allocation13 + $0x608] sm:$0xff]
    %v1825 = vld [vmem:[#allocation13 + $0x610] sm:$0xff]
    %v1826 = vld [vmem:[#allocation13 + $0x618] sm:$0xff]
    %v1827 = vunpack.c.l.s8.bf16 %v1631
    %v1828 = vunpack.c.l.s8.bf16 %v1632
    %v1829 = vunpack.c.l.s8.bf16 %v1633
    %v1830 = vunpack.c.l.s8.bf16 %v1634
    %v1831 = vunpack.c.l.s8.bf16 %v1635
    %v1832 = vunpack.c.l.s8.bf16 %v1636
    %v1833 = vunpack.c.l.s8.bf16 %v1637
    %v1834 = vunpack.c.h.s8.bf16 %v1631
    %v1835 = vunpack.c.h.s8.bf16 %v1632
    %v1836 = vunpack.c.h.s8.bf16 %v1633
    %v1837 = vunpack.c.h.s8.bf16 %v1634
    %v1838 = vunpack.c.h.s8.bf16 %v1635
    %v1839 = vunpack.c.h.s8.bf16 %v1636
    %v1840 = vunpack.c.h.s8.bf16 %v1637
    %v1841 = vunpack.c.l.s8.bf16 %v1638
    %v1842 = vunpack.c.l.s8.bf16 %v1639
    %v1843 = vunpack.c.l.s8.bf16 %v1640
    %v1844 = vunpack.c.l.s8.bf16 %v1641
    %v1845 = vunpack.c.l.s8.bf16 %v1642
    %v1846 = vunpack.c.l.s8.bf16 %v1643
    %v1847 = vunpack.c.l.s8.bf16 %v1644
    %v1848 = vunpack.c.h.s8.bf16 %v1638
    %v1849 = vunpack.c.h.s8.bf16 %v1639
    %v1850 = vunpack.c.h.s8.bf16 %v1640
    %v1851 = vunpack.c.h.s8.bf16 %v1641
    %v1852 = vunpack.c.h.s8.bf16 %v1642
    %v1853 = vunpack.c.h.s8.bf16 %v1643
    %v1854 = vunpack.c.h.s8.bf16 %v1644
    %v1855 = vunpack.c.l.s8.bf16 %v1645
    %v1856 = vunpack.c.l.s8.bf16 %v1646
    %v1857 = vunpack.c.l.s8.bf16 %v1647
    %v1858 = vunpack.c.l.s8.bf16 %v1648
    %v1859 = vunpack.c.l.s8.bf16 %v1649
    %v1860 = vunpack.c.l.s8.bf16 %v1650
    %v1861 = vunpack.c.l.s8.bf16 %v1651
    %v1862 = vunpack.c.h.s8.bf16 %v1645
    %v1863 = vunpack.c.h.s8.bf16 %v1646
    %v1864 = vunpack.c.h.s8.bf16 %v1647
    %v1865 = vunpack.c.h.s8.bf16 %v1648
    %v1866 = vunpack.c.h.s8.bf16 %v1649
    %v1867 = vunpack.c.h.s8.bf16 %v1650
    %v1868 = vunpack.c.h.s8.bf16 %v1651
    %v1869 = vunpack.c.l.s8.bf16 %v1652
    %v1870 = vunpack.c.l.s8.bf16 %v1653
    %v1871 = vunpack.c.l.s8.bf16 %v1654
    %v1872 = vunpack.c.l.s8.bf16 %v1655
    %v1873 = vunpack.c.l.s8.bf16 %v1656
    %v1874 = vunpack.c.l.s8.bf16 %v1657
    %v1875 = vunpack.c.l.s8.bf16 %v1658
    %v1876 = vunpack.c.h.s8.bf16 %v1652
    %v1877 = vunpack.c.h.s8.bf16 %v1653
    %v1878 = vunpack.c.h.s8.bf16 %v1654
    %v1879 = vunpack.c.h.s8.bf16 %v1655
    %v1880 = vunpack.c.h.s8.bf16 %v1656
    %v1881 = vunpack.c.h.s8.bf16 %v1657
    %v1882 = vunpack.c.h.s8.bf16 %v1658
    %v1883 = vunpack.c.l.s8.bf16 %v1659
    %v1884 = vunpack.c.l.s8.bf16 %v1660
    %v1885 = vunpack.c.l.s8.bf16 %v1661
    %v1886 = vunpack.c.l.s8.bf16 %v1662
    %v1887 = vunpack.c.l.s8.bf16 %v1663
    %v1888 = vunpack.c.l.s8.bf16 %v1664
    %v1889 = vunpack.c.l.s8.bf16 %v1665
    %v1890 = vunpack.c.h.s8.bf16 %v1659
    %v1891 = vunpack.c.h.s8.bf16 %v1660
    %v1892 = vunpack.c.h.s8.bf16 %v1661
    %v1893 = vunpack.c.h.s8.bf16 %v1662
    %v1894 = vunpack.c.h.s8.bf16 %v1663
    %v1895 = vunpack.c.h.s8.bf16 %v1664
    %v1896 = vunpack.c.h.s8.bf16 %v1665
    %v1897 = vunpack.c.l.s8.bf16 %v1666
    %v1898 = vunpack.c.l.s8.bf16 %v1667
    %v1899 = vunpack.c.l.s8.bf16 %v1668
    %v1900 = vunpack.c.l.s8.bf16 %v1669
    %v1901 = vunpack.c.l.s8.bf16 %v1670
    %v1902 = vunpack.c.l.s8.bf16 %v1671
    %v1903 = vunpack.c.l.s8.bf16 %v1672
    %v1904 = vunpack.c.h.s8.bf16 %v1666
    %v1905 = vunpack.c.h.s8.bf16 %v1667
    %v1906 = vunpack.c.h.s8.bf16 %v1668
    %v1907 = vunpack.c.h.s8.bf16 %v1669
    %v1908 = vunpack.c.h.s8.bf16 %v1670
    %v1909 = vunpack.c.h.s8.bf16 %v1671
    %v1910 = vunpack.c.h.s8.bf16 %v1672
    %v1911 = vunpack.c.l.s8.bf16 %v1673
    %v1912 = vunpack.c.l.s8.bf16 %v1674
    %v1913 = vunpack.c.l.s8.bf16 %v1675
    %v1914 = vunpack.c.l.s8.bf16 %v1676
    %v1915 = vunpack.c.l.s8.bf16 %v1677
    %v1916 = vunpack.c.l.s8.bf16 %v1678
    %v1917 = vunpack.c.l.s8.bf16 %v1679
    %v1918 = vunpack.c.h.s8.bf16 %v1673
    %v1919 = vunpack.c.h.s8.bf16 %v1674
    %v1920 = vunpack.c.h.s8.bf16 %v1675
    %v1921 = vunpack.c.h.s8.bf16 %v1676
    %v1922 = vunpack.c.h.s8.bf16 %v1677
    %v1923 = vunpack.c.h.s8.bf16 %v1678
    %v1924 = vunpack.c.h.s8.bf16 %v1679
    %v1925 = vunpack.c.l.s8.bf16 %v1680
    %v1926 = vunpack.c.l.s8.bf16 %v1681
    %v1927 = vunpack.c.l.s8.bf16 %v1682
    %v1928 = vunpack.c.l.s8.bf16 %v1683
    %v1929 = vunpack.c.l.s8.bf16 %v1684
    %v1930 = vunpack.c.l.s8.bf16 %v1685
    %v1931 = vunpack.c.l.s8.bf16 %v1686
    %v1932 = vunpack.c.h.s8.bf16 %v1680
    %v1933 = vunpack.c.h.s8.bf16 %v1681
    %v1934 = vunpack.c.h.s8.bf16 %v1682
    %v1935 = vunpack.c.h.s8.bf16 %v1683
    %v1936 = vunpack.c.h.s8.bf16 %v1684
    %v1937 = vunpack.c.h.s8.bf16 %v1685
    %v1938 = vunpack.c.h.s8.bf16 %v1686
    %v1939 = vunpack.c.l.s8.bf16 %v1687
    %v1940 = vunpack.c.l.s8.bf16 %v1688
    %v1941 = vunpack.c.l.s8.bf16 %v1689
    %v1942 = vunpack.c.l.s8.bf16 %v1690
    %v1943 = vunpack.c.l.s8.bf16 %v1691
    %v1944 = vunpack.c.l.s8.bf16 %v1692
    %v1945 = vunpack.c.l.s8.bf16 %v1693
    %v1946 = vunpack.c.h.s8.bf16 %v1687
    %v1947 = vunpack.c.h.s8.bf16 %v1688
    %v1948 = vunpack.c.h.s8.bf16 %v1689
    %v1949 = vunpack.c.h.s8.bf16 %v1690
    %v1950 = vunpack.c.h.s8.bf16 %v1691
    %v1951 = vunpack.c.h.s8.bf16 %v1692
    %v1952 = vunpack.c.h.s8.bf16 %v1693
    %v1953 = vunpack.c.l.s8.bf16 %v1694
    %v1954 = vunpack.c.l.s8.bf16 %v1695
    %v1955 = vunpack.c.l.s8.bf16 %v1696
    %v1956 = vunpack.c.l.s8.bf16 %v1697
    %v1957 = vunpack.c.l.s8.bf16 %v1698
    %v1958 = vunpack.c.l.s8.bf16 %v1699
    %v1959 = vunpack.c.l.s8.bf16 %v1700
    %v1960 = vunpack.c.h.s8.bf16 %v1694
    %v1961 = vunpack.c.h.s8.bf16 %v1695
    %v1962 = vunpack.c.h.s8.bf16 %v1696
    %v1963 = vunpack.c.h.s8.bf16 %v1697
    %v1964 = vunpack.c.h.s8.bf16 %v1698
    %v1965 = vunpack.c.h.s8.bf16 %v1699
    %v1966 = vunpack.c.h.s8.bf16 %v1700
    %v1967 = vunpack.c.l.s8.bf16 %v1701
    %v1968 = vunpack.c.l.s8.bf16 %v1702
    %v1969 = vunpack.c.l.s8.bf16 %v1703
    %v1970 = vunpack.c.l.s8.bf16 %v1704
    %v1971 = vunpack.c.l.s8.bf16 %v1705
    %v1972 = vunpack.c.l.s8.bf16 %v1706
    %v1973 = vunpack.c.l.s8.bf16 %v1707
    %v1974 = vunpack.c.h.s8.bf16 %v1701
    %v1975 = vunpack.c.h.s8.bf16 %v1702
    %v1976 = vunpack.c.h.s8.bf16 %v1703
    %v1977 = vunpack.c.h.s8.bf16 %v1704
    %v1978 = vunpack.c.h.s8.bf16 %v1705
    %v1979 = vunpack.c.h.s8.bf16 %v1706
    %v1980 = vunpack.c.h.s8.bf16 %v1707
    %v1981 = vunpack.c.l.s8.bf16 %v1708
    %v1982 = vunpack.c.l.s8.bf16 %v1709
    %v1983 = vunpack.c.l.s8.bf16 %v1710
    %v1984 = vunpack.c.l.s8.bf16 %v1711
    %v1985 = vunpack.c.l.s8.bf16 %v1712
    %v1986 = vunpack.c.l.s8.bf16 %v1713
    %v1987 = vunpack.c.l.s8.bf16 %v1714
    %v1988 = vunpack.c.h.s8.bf16 %v1708
    %v1989 = vunpack.c.h.s8.bf16 %v1709
    %v1990 = vunpack.c.h.s8.bf16 %v1710
    %v1991 = vunpack.c.h.s8.bf16 %v1711
    %v1992 = vunpack.c.h.s8.bf16 %v1712
    %v1993 = vunpack.c.h.s8.bf16 %v1713
    %v1994 = vunpack.c.h.s8.bf16 %v1714
    %v1995 = vunpack.c.l.s8.bf16 %v1715
    %v1996 = vunpack.c.l.s8.bf16 %v1716
    %v1997 = vunpack.c.l.s8.bf16 %v1717
    %v1998 = vunpack.c.l.s8.bf16 %v1718
    %v1999 = vunpack.c.l.s8.bf16 %v1719
    %v2000 = vunpack.c.l.s8.bf16 %v1720
    %v2001 = vunpack.c.l.s8.bf16 %v1721
    %v2002 = vunpack.c.h.s8.bf16 %v1715
    %v2003 = vunpack.c.h.s8.bf16 %v1716
    %v2004 = vunpack.c.h.s8.bf16 %v1717
    %v2005 = vunpack.c.h.s8.bf16 %v1718
    %v2006 = vunpack.c.h.s8.bf16 %v1719
    %v2007 = vunpack.c.h.s8.bf16 %v1720
    %v2008 = vunpack.c.h.s8.bf16 %v1721
    %v2009 = vunpack.c.l.s8.bf16 %v1722
    %v2010 = vunpack.c.l.s8.bf16 %v1723
    %v2011 = vunpack.c.l.s8.bf16 %v1724
    %v2012 = vunpack.c.l.s8.bf16 %v1725
    %v2013 = vunpack.c.l.s8.bf16 %v1726
    %v2014 = vunpack.c.l.s8.bf16 %v1727
    %v2015 = vunpack.c.l.s8.bf16 %v1728
    %v2016 = vunpack.c.h.s8.bf16 %v1722
    %v2017 = vunpack.c.h.s8.bf16 %v1723
    %v2018 = vunpack.c.h.s8.bf16 %v1724
    %v2019 = vunpack.c.h.s8.bf16 %v1725
    %v2020 = vunpack.c.h.s8.bf16 %v1726
    %v2021 = vunpack.c.h.s8.bf16 %v1727
    %v2022 = vunpack.c.h.s8.bf16 %v1728
    %v2023 = vunpack.c.l.s8.bf16 %v1729
    %v2024 = vunpack.c.l.s8.bf16 %v1730
    %v2025 = vunpack.c.l.s8.bf16 %v1731
    %v2026 = vunpack.c.l.s8.bf16 %v1732
    %v2027 = vunpack.c.l.s8.bf16 %v1733
    %v2028 = vunpack.c.l.s8.bf16 %v1734
    %v2029 = vunpack.c.l.s8.bf16 %v1735
    %v2030 = vunpack.c.h.s8.bf16 %v1729
    %v2031 = vunpack.c.h.s8.bf16 %v1730
    %v2032 = vunpack.c.h.s8.bf16 %v1731
    %v2033 = vunpack.c.h.s8.bf16 %v1732
    %v2034 = vunpack.c.h.s8.bf16 %v1733
    %v2035 = vunpack.c.h.s8.bf16 %v1734
    %v2036 = vunpack.c.h.s8.bf16 %v1735
    %v2037 = vunpack.c.l.s8.bf16 %v1736
    %v2038 = vunpack.c.l.s8.bf16 %v1737
    %v2039 = vunpack.c.l.s8.bf16 %v1738
    %v2040 = vunpack.c.l.s8.bf16 %v1739
    %v2041 = vunpack.c.l.s8.bf16 %v1740
    %v2042 = vunpack.c.l.s8.bf16 %v1741
    %v2043 = vunpack.c.l.s8.bf16 %v1742
    %v2044 = vunpack.c.h.s8.bf16 %v1736
    %v2045 = vunpack.c.h.s8.bf16 %v1737
    %v2046 = vunpack.c.h.s8.bf16 %v1738
    %v2047 = vunpack.c.h.s8.bf16 %v1739
    %v2048 = vunpack.c.h.s8.bf16 %v1740
    %v2049 = vunpack.c.h.s8.bf16 %v1741
    %v2050 = vunpack.c.h.s8.bf16 %v1742
    %v2051 = vunpack.c.l.s8.bf16 %v1743
    %v2052 = vunpack.c.l.s8.bf16 %v1744
    %v2053 = vunpack.c.l.s8.bf16 %v1745
    %v2054 = vunpack.c.l.s8.bf16 %v1746
    %v2055 = vunpack.c.l.s8.bf16 %v1747
    %v2056 = vunpack.c.l.s8.bf16 %v1748
    %v2057 = vunpack.c.l.s8.bf16 %v1749
    %v2058 = vunpack.c.h.s8.bf16 %v1743
    %v2059 = vunpack.c.h.s8.bf16 %v1744
    %v2060 = vunpack.c.h.s8.bf16 %v1745
    %v2061 = vunpack.c.h.s8.bf16 %v1746
    %v2062 = vunpack.c.h.s8.bf16 %v1747
    %v2063 = vunpack.c.h.s8.bf16 %v1748
    %v2064 = vunpack.c.h.s8.bf16 %v1749
    %v2065 = vunpack.c.l.s8.bf16 %v1750
    %v2066 = vunpack.c.l.s8.bf16 %v1751
    %v2067 = vunpack.c.l.s8.bf16 %v1752
    %v2068 = vunpack.c.l.s8.bf16 %v1753
    %v2069 = vunpack.c.l.s8.bf16 %v1754
    %v2070 = vunpack.c.l.s8.bf16 %v1755
    %v2071 = vunpack.c.l.s8.bf16 %v1756
    %v2072 = vunpack.c.h.s8.bf16 %v1750
    %v2073 = vunpack.c.h.s8.bf16 %v1751
    %v2074 = vunpack.c.h.s8.bf16 %v1752
    %v2075 = vunpack.c.h.s8.bf16 %v1753
    %v2076 = vunpack.c.h.s8.bf16 %v1754
    %v2077 = vunpack.c.h.s8.bf16 %v1755
    %v2078 = vunpack.c.h.s8.bf16 %v1756
    %v2079 = vunpack.c.l.s8.bf16 %v1757
    %v2080 = vunpack.c.l.s8.bf16 %v1758
    %v2081 = vunpack.c.l.s8.bf16 %v1759
    %v2082 = vunpack.c.l.s8.bf16 %v1760
    %v2083 = vunpack.c.l.s8.bf16 %v1761
    %v2084 = vunpack.c.l.s8.bf16 %v1762
    %v2085 = vunpack.c.l.s8.bf16 %v1763
    %v2086 = vunpack.c.h.s8.bf16 %v1757
    %v2087 = vunpack.c.h.s8.bf16 %v1758
    %v2088 = vunpack.c.h.s8.bf16 %v1759
    %v2089 = vunpack.c.h.s8.bf16 %v1760
    %v2090 = vunpack.c.h.s8.bf16 %v1761
    %v2091 = vunpack.c.h.s8.bf16 %v1762
    %v2092 = vunpack.c.h.s8.bf16 %v1763
    %v2093 = vunpack.c.l.s8.bf16 %v1764
    %v2094 = vunpack.c.l.s8.bf16 %v1765
    %v2095 = vunpack.c.l.s8.bf16 %v1766
    %v2096 = vunpack.c.l.s8.bf16 %v1767
    %v2097 = vunpack.c.l.s8.bf16 %v1768
    %v2098 = vunpack.c.l.s8.bf16 %v1769
    %v2099 = vunpack.c.l.s8.bf16 %v1770
    %v2100 = vunpack.c.h.s8.bf16 %v1764
    %v2101 = vunpack.c.h.s8.bf16 %v1765
    %v2102 = vunpack.c.h.s8.bf16 %v1766
    %v2103 = vunpack.c.h.s8.bf16 %v1767
    %v2104 = vunpack.c.h.s8.bf16 %v1768
    %v2105 = vunpack.c.h.s8.bf16 %v1769
    %v2106 = vunpack.c.h.s8.bf16 %v1770
    %v2107 = vunpack.c.l.s8.bf16 %v1771
    %v2108 = vunpack.c.l.s8.bf16 %v1772
    %v2109 = vunpack.c.l.s8.bf16 %v1773
    %v2110 = vunpack.c.l.s8.bf16 %v1774
    %v2111 = vunpack.c.l.s8.bf16 %v1775
    %v2112 = vunpack.c.l.s8.bf16 %v1776
    %v2113 = vunpack.c.l.s8.bf16 %v1777
    %v2114 = vunpack.c.h.s8.bf16 %v1771
    %v2115 = vunpack.c.h.s8.bf16 %v1772
    %v2116 = vunpack.c.h.s8.bf16 %v1773
    %v2117 = vunpack.c.h.s8.bf16 %v1774
    %v2118 = vunpack.c.h.s8.bf16 %v1775
    %v2119 = vunpack.c.h.s8.bf16 %v1776
    %v2120 = vunpack.c.h.s8.bf16 %v1777
    %v2121 = vunpack.c.l.s8.bf16 %v1778
    %v2122 = vunpack.c.l.s8.bf16 %v1779
    %v2123 = vunpack.c.l.s8.bf16 %v1780
    %v2124 = vunpack.c.l.s8.bf16 %v1781
    %v2125 = vunpack.c.l.s8.bf16 %v1782
    %v2126 = vunpack.c.l.s8.bf16 %v1783
    %v2127 = vunpack.c.l.s8.bf16 %v1784
    %v2128 = vunpack.c.h.s8.bf16 %v1778
    %v2129 = vunpack.c.h.s8.bf16 %v1779
    %v2130 = vunpack.c.h.s8.bf16 %v1780
    %v2131 = vunpack.c.h.s8.bf16 %v1781
    %v2132 = vunpack.c.h.s8.bf16 %v1782
    %v2133 = vunpack.c.h.s8.bf16 %v1783
    %v2134 = vunpack.c.h.s8.bf16 %v1784
    %v2135 = vunpack.c.l.s8.bf16 %v1785
    %v2136 = vunpack.c.l.s8.bf16 %v1786
    %v2137 = vunpack.c.l.s8.bf16 %v1787
    %v2138 = vunpack.c.l.s8.bf16 %v1788
    %v2139 = vunpack.c.l.s8.bf16 %v1789
    %v2140 = vunpack.c.l.s8.bf16 %v1790
    %v2141 = vunpack.c.l.s8.bf16 %v1791
    %v2142 = vunpack.c.h.s8.bf16 %v1785
    %v2143 = vunpack.c.h.s8.bf16 %v1786
    %v2144 = vunpack.c.h.s8.bf16 %v1787
    %v2145 = vunpack.c.h.s8.bf16 %v1788
    %v2146 = vunpack.c.h.s8.bf16 %v1789
    %v2147 = vunpack.c.h.s8.bf16 %v1790
    %v2148 = vunpack.c.h.s8.bf16 %v1791
    %v2149 = vunpack.c.l.s8.bf16 %v1792
    %v2150 = vunpack.c.l.s8.bf16 %v1793
    %v2151 = vunpack.c.l.s8.bf16 %v1794
    %v2152 = vunpack.c.l.s8.bf16 %v1795
    %v2153 = vunpack.c.l.s8.bf16 %v1796
    %v2154 = vunpack.c.l.s8.bf16 %v1797
    %v2155 = vunpack.c.l.s8.bf16 %v1798
    %v2156 = vunpack.c.h.s8.bf16 %v1792
    %v2157 = vunpack.c.h.s8.bf16 %v1793
    %v2158 = vunpack.c.h.s8.bf16 %v1794
    %v2159 = vunpack.c.h.s8.bf16 %v1795
    %v2160 = vunpack.c.h.s8.bf16 %v1796
    %v2161 = vunpack.c.h.s8.bf16 %v1797
    %v2162 = vunpack.c.h.s8.bf16 %v1798
    %v2163 = vunpack.c.l.s8.bf16 %v1799
    %v2164 = vunpack.c.l.s8.bf16 %v1800
    %v2165 = vunpack.c.l.s8.bf16 %v1801
    %v2166 = vunpack.c.l.s8.bf16 %v1802
    %v2167 = vunpack.c.l.s8.bf16 %v1803
    %v2168 = vunpack.c.l.s8.bf16 %v1804
    %v2169 = vunpack.c.l.s8.bf16 %v1805
    %v2170 = vunpack.c.h.s8.bf16 %v1799
    %v2171 = vunpack.c.h.s8.bf16 %v1800
    %v2172 = vunpack.c.h.s8.bf16 %v1801
    %v2173 = vunpack.c.h.s8.bf16 %v1802
    %v2174 = vunpack.c.h.s8.bf16 %v1803
    %v2175 = vunpack.c.h.s8.bf16 %v1804
    %v2176 = vunpack.c.h.s8.bf16 %v1805
    %v2177 = vunpack.c.l.s8.bf16 %v1806
    %v2178 = vunpack.c.l.s8.bf16 %v1807
    %v2179 = vunpack.c.l.s8.bf16 %v1808
    %v2180 = vunpack.c.l.s8.bf16 %v1809
    %v2181 = vunpack.c.l.s8.bf16 %v1810
    %v2182 = vunpack.c.l.s8.bf16 %v1811
    %v2183 = vunpack.c.l.s8.bf16 %v1812
    %v2184 = vunpack.c.h.s8.bf16 %v1806
    %v2185 = vunpack.c.h.s8.bf16 %v1807
    %v2186 = vunpack.c.h.s8.bf16 %v1808
    %v2187 = vunpack.c.h.s8.bf16 %v1809
    %v2188 = vunpack.c.h.s8.bf16 %v1810
    %v2189 = vunpack.c.h.s8.bf16 %v1811
    %v2190 = vunpack.c.h.s8.bf16 %v1812
    %v2191 = vunpack.c.l.s8.bf16 %v1813
    %v2192 = vunpack.c.l.s8.bf16 %v1814
    %v2193 = vunpack.c.l.s8.bf16 %v1815
    %v2194 = vunpack.c.l.s8.bf16 %v1816
    %v2195 = vunpack.c.l.s8.bf16 %v1817
    %v2196 = vunpack.c.l.s8.bf16 %v1818
    %v2197 = vunpack.c.l.s8.bf16 %v1819
    %v2198 = vunpack.c.h.s8.bf16 %v1813
    %v2199 = vunpack.c.h.s8.bf16 %v1814
    %v2200 = vunpack.c.h.s8.bf16 %v1815
    %v2201 = vunpack.c.h.s8.bf16 %v1816
    %v2202 = vunpack.c.h.s8.bf16 %v1817
    %v2203 = vunpack.c.h.s8.bf16 %v1818
    %v2204 = vunpack.c.h.s8.bf16 %v1819
    %v2205 = vunpack.c.l.s8.bf16 %v1820
    %v2206 = vunpack.c.l.s8.bf16 %v1821
    %v2207 = vunpack.c.l.s8.bf16 %v1822
    %v2208 = vunpack.c.l.s8.bf16 %v1823
    %v2209 = vunpack.c.l.s8.bf16 %v1824
    %v2210 = vunpack.c.l.s8.bf16 %v1825
    %v2211 = vunpack.c.l.s8.bf16 %v1826
    %v2212 = vunpack.c.h.s8.bf16 %v1820
    %v2213 = vunpack.c.h.s8.bf16 %v1821
    %v2214 = vunpack.c.h.s8.bf16 %v1822
    %v2215 = vunpack.c.h.s8.bf16 %v1823
    %v2216 = vunpack.c.h.s8.bf16 %v1824
    %v2217 = vunpack.c.h.s8.bf16 %v1825
    %v2218 = vunpack.c.h.s8.bf16 %v1826
    %2219 = vmatprep.subr.bf16.mxu0 %v1828
    %2220 = vmatpush1.bf16.msra.mxu0 %v1827
    %2221 = vmatprep.subr.bf16.mxu0 %v1835
    %2222 = vmatpush1.bf16.msra.mxu0 %v1834
    %2223 = vmatprep.subr.bf16.mxu0 %v1842
    %2224 = vmatpush1.bf16.msra.mxu0 %v1841
    %2225 = vmatprep.subr.bf16.mxu0 %v1849
    %2226 = vmatpush1.bf16.msra.mxu0 %v1848
    %2227 = vmatprep.subr.bf16.mxu0 %v1856
    %2228 = vmatpush1.bf16.msra.mxu0 %v1855
    %2229 = vmatprep.subr.bf16.mxu0 %v1863
    %2230 = vmatpush1.bf16.msra.mxu0 %v1862
    %2231 = vmatprep.subr.bf16.mxu0 %v1870
    %2232 = vmatpush1.bf16.msra.mxu0 %v1869
    %2233 = vmatprep.subr.bf16.mxu0 %v1877
    %2234 = vmatpush1.bf16.msra.mxu0 %v1876
    %2235 = vmatprep.subr.bf16.mxu0 %v1884
    %2236 = vmatpush1.bf16.msra.mxu0 %v1883
    %2237 = vmatprep.subr.bf16.mxu0 %v1891
    %2238 = vmatpush1.bf16.msra.mxu0 %v1890
    %2239 = vmatprep.subr.bf16.mxu0 %v1898
    %2240 = vmatpush1.bf16.msra.mxu0 %v1897
    %2241 = vmatprep.subr.bf16.mxu0 %v1905
    %2242 = vmatpush1.bf16.msra.mxu0 %v1904
    %2243 = vmatprep.subr.bf16.mxu0 %v1912
    %2244 = vmatpush1.bf16.msra.mxu0 %v1911
    %2245 = vmatprep.subr.bf16.mxu0 %v1919
    %2246 = vmatpush1.bf16.msra.mxu0 %v1918
    %2247 = vmatprep.subr.bf16.mxu0 %v1926
    %2248 = vmatpush1.bf16.msra.mxu0 %v1925
    %2249 = vmatprep.subr.bf16.mxu0 %v1933
    %2250 = vmatpush1.bf16.msra.mxu0 %v1932
    %2251 = vmatprep.mubr.bf16.mxu0 %v1625
    %2252 = vmatmul.mubr.bf16.gmra.mrb[0].mxu0 %v1624
    %v2253 = vpop.f32.mrb[0].mxu0
    %v2254 = vadd.f32 0.0, %v2253
    %v2255 = vpop.f32.mrb[0].mxu0
    %v2256 = vadd.f32 0.0, %v2255
    %v2257 = vpop.f32.mrb[0].mxu0
    %v2258 = vpop.f32.mrb[0].mxu0
    %2259 = vdwg.mxu0
    %2260 = vmatprep.subr.bf16.mxu0 %v1940
    %2261 = vmatpush1.bf16.msra.mxu0 %v1939
    %2262 = vmatprep.subr.bf16.mxu0 %v1947
    %2263 = vmatpush1.bf16.msra.mxu0 %v1946
    %2264 = vmatprep.subr.bf16.mxu0 %v1954
    %2265 = vmatpush1.bf16.msra.mxu0 %v1953
    %2266 = vmatprep.subr.bf16.mxu0 %v1961
    %2267 = vmatpush1.bf16.msra.mxu0 %v1960
    %2268 = vmatprep.subr.bf16.mxu0 %v1968
    %2269 = vmatpush1.bf16.msra.mxu0 %v1967
    %2270 = vmatprep.subr.bf16.mxu0 %v1975
    %2271 = vmatpush1.bf16.msra.mxu0 %v1974
    %2272 = vmatprep.subr.bf16.mxu0 %v1982
    %2273 = vmatpush1.bf16.msra.mxu0 %v1981
    %2274 = vmatprep.subr.bf16.mxu0 %v1989
    %2275 = vmatpush1.bf16.msra.mxu0 %v1988
    %2276 = vmatprep.subr.bf16.mxu0 %v1996
    %2277 = vmatpush1.bf16.msra.mxu0 %v1995
    %2278 = vmatprep.subr.bf16.mxu0 %v2003
    %2279 = vmatpush1.bf16.msra.mxu0 %v2002
    %2280 = vmatprep.subr.bf16.mxu0 %v2010
    %2281 = vmatpush1.bf16.msra.mxu0 %v2009
    %2282 = vmatprep.subr.bf16.mxu0 %v2017
    %2283 = vmatpush1.bf16.msra.mxu0 %v2016
    %2284 = vmatprep.subr.bf16.mxu0 %v2024
    %2285 = vmatpush1.bf16.msra.mxu0 %v2023
    %2286 = vmatprep.subr.bf16.mxu0 %v2031
    %2287 = vmatpush1.bf16.msra.mxu0 %v2030
    %2288 = vmatprep.subr.bf16.mxu0 %v2038
    %2289 = vmatpush1.bf16.msra.mxu0 %v2037
    %2290 = vmatprep.subr.bf16.mxu0 %v2045
    %2291 = vmatpush1.bf16.msra.mxu0 %v2044
    %2292 = vmatprep.mubr.bf16.mxu0 %v1627
    %2293 = vmatmul.mubr.bf16.gmra.mrb[0].mxu0 %v1626
    %v2294 = vpop.f32.mrb[0].mxu0
    %v2295 = vadd.f32 %v2254, %v2294
    %v2296 = vpop.f32.mrb[0].mxu0
    %v2297 = vadd.f32 %v2256, %v2296
    %v2298 = vpop.f32.mrb[0].mxu0
    %v2299 = vpop.f32.mrb[0].mxu0
    %2300 = vdwg.mxu0
    %2301 = vmatprep.subr.bf16.mxu0 %v2052
    %2302 = vmatpush1.bf16.msra.mxu0 %v2051
    %2303 = vmatprep.subr.bf16.mxu0 %v2059
    %2304 = vmatpush1.bf16.msra.mxu0 %v2058
    %2305 = vmatprep.subr.bf16.mxu0 %v2066
    %2306 = vmatpush1.bf16.msra.mxu0 %v2065
    %2307 = vmatprep.subr.bf16.mxu0 %v2073
    %2308 = vmatpush1.bf16.msra.mxu0 %v2072
    %2309 = vmatprep.subr.bf16.mxu0 %v2080
    %2310 = vmatpush1.bf16.msra.mxu0 %v2079
    %2311 = vmatprep.subr.bf16.mxu0 %v2087
    %2312 = vmatpush1.bf16.msra.mxu0 %v2086
    %2313 = vmatprep.subr.bf16.mxu0 %v2094
    %2314 = vmatpush1.bf16.msra.mxu0 %v2093
    %2315 = vmatprep.subr.bf16.mxu0 %v2101
    %2316 = vmatpush1.bf16.msra.mxu0 %v2100
    %2317 = vmatprep.subr.bf16.mxu0 %v2108
    %2318 = vmatpush1.bf16.msra.mxu0 %v2107
    %2319 = vmatprep.subr.bf16.mxu0 %v2115
    %2320 = vmatpush1.bf16.msra.mxu0 %v2114
    %2321 = vmatprep.subr.bf16.mxu0 %v2122
    %2322 = vmatpush1.bf16.msra.mxu0 %v2121
    %2323 = vmatprep.subr.bf16.mxu0 %v2129
    %2324 = vmatpush1.bf16.msra.mxu0 %v2128
    %2325 = vmatprep.subr.bf16.mxu0 %v2136
    %2326 = vmatpush1.bf16.msra.mxu0 %v2135
    %2327 = vmatprep.subr.bf16.mxu0 %v2143
    %2328 = vmatpush1.bf16.msra.mxu0 %v2142
    %2329 = vmatprep.subr.bf16.mxu0 %v2150
    %2330 = vmatpush1.bf16.msra.mxu0 %v2149
    %2331 = vmatprep.subr.bf16.mxu0 %v2157
    %2332 = vmatpush1.bf16.msra.mxu0 %v2156
    %2333 = vmatprep.mubr.bf16.mxu0 %v1629
    %2334 = vmatmul.mubr.bf16.gmra.mrb[0].mxu0 %v1628
    %v2335 = vpop.f32.mrb[0].mxu0
    %v2336 = vadd.f32 %v2295, %v2335
    %v2337 = vpop.f32.mrb[0].mxu0
    %v2338 = vadd.f32 %v2297, %v2337
    %v2339 = vpop.f32.mrb[0].mxu0
    %v2340 = vpop.f32.mrb[0].mxu0
    %2341 = vdwg.mxu0
    %2342 = vmatprep.subr.bf16.mxu0 %v2164
    %2343 = vmatpush1.bf16.msra.mxu0 %v2163
    %2344 = vmatprep.subr.bf16.mxu0 %v2171
    %2345 = vmatpush1.bf16.msra.mxu0 %v2170
    %2346 = vmatprep.subr.bf16.mxu0 %v2178
    %2347 = vmatpush1.bf16.msra.mxu0 %v2177
    %2348 = vmatprep.subr.bf16.mxu0 %v2185
    %2349 = vmatpush1.bf16.msra.mxu0 %v2184
    %2350 = vmatprep.subr.bf16.mxu0 %v2192
    %2351 = vmatpush1.bf16.msra.mxu0 %v2191
    %2352 = vmatprep.subr.bf16.mxu0 %v2199
    %2353 = vmatpush1.bf16.msra.mxu0 %v2198
    %2354 = vmatprep.subr.bf16.mxu0 %v2206
    %2355 = vmatpush1.bf16.msra.mxu0 %v2205
    %2356 = vmatprep.subr.bf16.mxu0 %v2213
    %2357 = vmatpush1.bf16.msra.mxu0 %v2212
    %2358 = vmatprep.subr.bf16.mxu0 0
    %2359 = vmatpush1.bf16.msra.mxu0 0
    %2360 = vmatprep.subr.bf16.mxu0 0
    %2361 = vmatpush1.bf16.msra.mxu0 0
    %2362 = vmatprep.subr.bf16.mxu0 0
    %2363 = vmatpush1.bf16.msra.mxu0 0
    %2364 = vmatprep.subr.bf16.mxu0 0
    %2365 = vmatpush1.bf16.msra.mxu0 0
    %2366 = vmatprep.subr.bf16.mxu0 0
    %2367 = vmatpush1.bf16.msra.mxu0 0
    %2368 = vmatprep.subr.bf16.mxu0 0
    %2369 = vmatpush1.bf16.msra.mxu0 0
    %2370 = vmatprep.subr.bf16.mxu0 0
    %2371 = vmatpush1.bf16.msra.mxu0 0
    %2372 = vmatprep.subr.bf16.mxu0 0
    %2373 = vmatpush1.bf16.msra.mxu0 0
    %2374 = vmatprep.mubr.bf16.mxu0 0
    %2375 = vmatmul.mubr.bf16.gmra.mrb[0].mxu0 %v1630
    %v2376 = vpop.f32.mrb[0].mxu0
    %v2377 = vadd.f32 %v2336, %v2376
    %v2378 = vpop.f32.mrb[0].mxu0
    %v2379 = vadd.f32 %v2338, %v2378
    %v2380 = vpop.f32.mrb[0].mxu0
    %v2381 = vpop.f32.mrb[0].mxu0
    %2382 = vdwg.mxu0
    %2383 = vmatprep.subr.bf16.mxu0 %v1830
    %2384 = vmatpush1.bf16.msra.mxu0 %v1829
    %2385 = vmatprep.subr.bf16.mxu0 %v1837
    %2386 = vmatpush1.bf16.msra.mxu0 %v1836
    %2387 = vmatprep.subr.bf16.mxu0 %v1844
    %2388 = vmatpush1.bf16.msra.mxu0 %v1843
    %2389 = vmatprep.subr.bf16.mxu0 %v1851
    %2390 = vmatpush1.bf16.msra.mxu0 %v1850
    %2391 = vmatprep.subr.bf16.mxu0 %v1858
    %2392 = vmatpush1.bf16.msra.mxu0 %v1857
    %2393 = vmatprep.subr.bf16.mxu0 %v1865
    %2394 = vmatpush1.bf16.msra.mxu0 %v1864
    %2395 = vmatprep.subr.bf16.mxu0 %v1872
    %2396 = vmatpush1.bf16.msra.mxu0 %v1871
    %2397 = vmatprep.subr.bf16.mxu0 %v1879
    %2398 = vmatpush1.bf16.msra.mxu0 %v1878
    %2399 = vmatprep.subr.bf16.mxu0 %v1886
    %2400 = vmatpush1.bf16.msra.mxu0 %v1885
    %2401 = vmatprep.subr.bf16.mxu0 %v1893
    %2402 = vmatpush1.bf16.msra.mxu0 %v1892
    %2403 = vmatprep.subr.bf16.mxu0 %v1900
    %2404 = vmatpush1.bf16.msra.mxu0 %v1899
    %2405 = vmatprep.subr.bf16.mxu0 %v1907
    %2406 = vmatpush1.bf16.msra.mxu0 %v1906
    %2407 = vmatprep.subr.bf16.mxu0 %v1914
    %2408 = vmatpush1.bf16.msra.mxu0 %v1913
    %2409 = vmatprep.subr.bf16.mxu0 %v1921
    %2410 = vmatpush1.bf16.msra.mxu0 %v1920
    %2411 = vmatprep.subr.bf16.mxu0 %v1928
    %2412 = vmatpush1.bf16.msra.mxu0 %v1927
    %2413 = vmatprep.subr.bf16.mxu0 %v1935
    %2414 = vmatpush1.bf16.msra.mxu0 %v1934
    %2415 = vmatprep.mubr.bf16.mxu0 %v1625
    %2416 = vmatmul.mubr.bf16.gmra.mrb[0].mxu0 %v1624
    %v2417 = vpop.f32.mrb[0].mxu0
    %v2418 = vadd.f32 0.0, %v2417
    %v2419 = vpop.f32.mrb[0].mxu0
    %v2420 = vadd.f32 0.0, %v2419
    %v2421 = vpop.f32.mrb[0].mxu0
    %v2422 = vpop.f32.mrb[0].mxu0
    %2423 = vdwg.mxu0
    %2424 = vmatprep.subr.bf16.mxu0 %v1942
    %2425 = vmatpush1.bf16.msra.mxu0 %v1941
    %2426 = vmatprep.subr.bf16.mxu0 %v1949
    %2427 = vmatpush1.bf16.msra.mxu0 %v1948
    %2428 = vmatprep.subr.bf16.mxu0 %v1956
    %2429 = vmatpush1.bf16.msra.mxu0 %v1955
    %2430 = vmatprep.subr.bf16.mxu0 %v1963
    %2431 = vmatpush1.bf16.msra.mxu0 %v1962
    %2432 = vmatprep.subr.bf16.mxu0 %v1970
    %2433 = vmatpush1.bf16.msra.mxu0 %v1969
    %2434 = vmatprep.subr.bf16.mxu0 %v1977
    %2435 = vmatpush1.bf16.msra.mxu0 %v1976
    %2436 = vmatprep.subr.bf16.mxu0 %v1984
    %2437 = vmatpush1.bf16.msra.mxu0 %v1983
    %2438 = vmatprep.subr.bf16.mxu0 %v1991
    %2439 = vmatpush1.bf16.msra.mxu0 %v1990
    %2440 = vmatprep.subr.bf16.mxu0 %v1998
    %2441 = vmatpush1.bf16.msra.mxu0 %v1997
    %2442 = vmatprep.subr.bf16.mxu0 %v2005
    %2443 = vmatpush1.bf16.msra.mxu0 %v2004
    %2444 = vmatprep.subr.bf16.mxu0 %v2012
    %2445 = vmatpush1.bf16.msra.mxu0 %v2011
    %2446 = vmatprep.subr.bf16.mxu0 %v2019
    %2447 = vmatpush1.bf16.msra.mxu0 %v2018
    %2448 = vmatprep.subr.bf16.mxu0 %v2026
    %2449 = vmatpush1.bf16.msra.mxu0 %v2025
    %2450 = vmatprep.subr.bf16.mxu0 %v2033
    %2451 = vmatpush1.bf16.msra.mxu0 %v2032
    %2452 = vmatprep.subr.bf16.mxu0 %v2040
    %2453 = vmatpush1.bf16.msra.mxu0 %v2039
    %2454 = vmatprep.subr.bf16.mxu0 %v2047
    %2455 = vmatpush1.bf16.msra.mxu0 %v2046
    %2456 = vmatprep.mubr.bf16.mxu0 %v1627
    %2457 = vmatmul.mubr.bf16.gmra.mrb[0].mxu0 %v1626
    %v2458 = vpop.f32.mrb[0].mxu0
    %v2459 = vadd.f32 %v2418, %v2458
    %v2460 = vpop.f32.mrb[0].mxu0
    %v2461 = vadd.f32 %v2420, %v2460
    %v2462 = vpop.f32.mrb[0].mxu0
    %v2463 = vpop.f32.mrb[0].mxu0
    %2464 = vdwg.mxu0
    %2465 = vmatprep.subr.bf16.mxu0 %v2054
    %2466 = vmatpush1.bf16.msra.mxu0 %v2053
    %2467 = vmatprep.subr.bf16.mxu0 %v2061
    %2468 = vmatpush1.bf16.msra.mxu0 %v2060
    %2469 = vmatprep.subr.bf16.mxu0 %v2068
    %2470 = vmatpush1.bf16.msra.mxu0 %v2067
    %2471 = vmatprep.subr.bf16.mxu0 %v2075
    %2472 = vmatpush1.bf16.msra.mxu0 %v2074
    %2473 = vmatprep.subr.bf16.mxu0 %v2082
    %2474 = vmatpush1.bf16.msra.mxu0 %v2081
    %2475 = vmatprep.subr.bf16.mxu0 %v2089
    %2476 = vmatpush1.bf16.msra.mxu0 %v2088
    %2477 = vmatprep.subr.bf16.mxu0 %v2096
    %2478 = vmatpush1.bf16.msra.mxu0 %v2095
    %2479 = vmatprep.subr.bf16.mxu0 %v2103
    %2480 = vmatpush1.bf16.msra.mxu0 %v2102
    %2481 = vmatprep.subr.bf16.mxu0 %v2110
    %2482 = vmatpush1.bf16.msra.mxu0 %v2109
    %2483 = vmatprep.subr.bf16.mxu0 %v2117
    %2484 = vmatpush1.bf16.msra.mxu0 %v2116
    %2485 = vmatprep.subr.bf16.mxu0 %v2124
    %2486 = vmatpush1.bf16.msra.mxu0 %v2123
    %2487 = vmatprep.subr.bf16.mxu0 %v2131
    %2488 = vmatpush1.bf16.msra.mxu0 %v2130
    %2489 = vmatprep.subr.bf16.mxu0 %v2138
    %2490 = vmatpush1.bf16.msra.mxu0 %v2137
    %2491 = vmatprep.subr.bf16.mxu0 %v2145
    %2492 = vmatpush1.bf16.msra.mxu0 %v2144
    %2493 = vmatprep.subr.bf16.mxu0 %v2152
    %2494 = vmatpush1.bf16.msra.mxu0 %v2151
    %2495 = vmatprep.subr.bf16.mxu0 %v2159
    %2496 = vmatpush1.bf16.msra.mxu0 %v2158
    %2497 = vmatprep.mubr.bf16.mxu0 %v1629
    %2498 = vmatmul.mubr.bf16.gmra.mrb[0].mxu0 %v1628
    %v2499 = vpop.f32.mrb[0].mxu0
    %v2500 = vadd.f32 %v2459, %v2499
    %v2501 = vpop.f32.mrb[0].mxu0
    %v2502 = vadd.f32 %v2461, %v2501
    %v2503 = vpop.f32.mrb[0].mxu0
    %v2504 = vpop.f32.mrb[0].mxu0
    %2505 = vdwg.mxu0
    %2506 = vmatprep.subr.bf16.mxu0 %v2166
    %2507 = vmatpush1.bf16.msra.mxu0 %v2165
    %2508 = vmatprep.subr.bf16.mxu0 %v2173
    %2509 = vmatpush1.bf16.msra.mxu0 %v2172
    %2510 = vmatprep.subr.bf16.mxu0 %v2180
    %2511 = vmatpush1.bf16.msra.mxu0 %v2179
    %2512 = vmatprep.subr.bf16.mxu0 %v2187
    %2513 = vmatpush1.bf16.msra.mxu0 %v2186
    %2514 = vmatprep.subr.bf16.mxu0 %v2194
    %2515 = vmatpush1.bf16.msra.mxu0 %v2193
    %2516 = vmatprep.subr.bf16.mxu0 %v2201
    %2517 = vmatpush1.bf16.msra.mxu0 %v2200
    %2518 = vmatprep.subr.bf16.mxu0 %v2208
    %2519 = vmatpush1.bf16.msra.mxu0 %v2207
    %2520 = vmatprep.subr.bf16.mxu0 %v2215
    %2521 = vmatpush1.bf16.msra.mxu0 %v2214
    %2522 = vmatprep.subr.bf16.mxu0 0
    %2523 = vmatpush1.bf16.msra.mxu0 0
    %2524 = vmatprep.subr.bf16.mxu0 0
    %2525 = vmatpush1.bf16.msra.mxu0 0
    %2526 = vmatprep.subr.bf16.mxu0 0
    %2527 = vmatpush1.bf16.msra.mxu0 0
    %2528 = vmatprep.subr.bf16.mxu0 0
    %2529 = vmatpush1.bf16.msra.mxu0 0
    %2530 = vmatprep.subr.bf16.mxu0 0
    %2531 = vmatpush1.bf16.msra.mxu0 0
    %2532 = vmatprep.subr.bf16.mxu0 0
    %2533 = vmatpush1.bf16.msra.mxu0 0
    %2534 = vmatprep.subr.bf16.mxu0 0
    %2535 = vmatpush1.bf16.msra.mxu0 0
    %2536 = vmatprep.subr.bf16.mxu0 0
    %2537 = vmatpush1.bf16.msra.mxu0 0
    %2538 = vmatprep.mubr.bf16.mxu0 0
    %2539 = vmatmul.mubr.bf16.gmra.mrb[0].mxu0 %v1630
    %v2540 = vpop.f32.mrb[0].mxu0
    %v2541 = vadd.f32 %v2500, %v2540
    %v2542 = vpop.f32.mrb[0].mxu0
    %v2543 = vadd.f32 %v2502, %v2542
    %v2544 = vpop.f32.mrb[0].mxu0
    %v2545 = vpop.f32.mrb[0].mxu0
    %2546 = vdwg.mxu0
    %2547 = vmatprep.subr.bf16.mxu0 %v1832
    %2548 = vmatpush1.bf16.msra.mxu0 %v1831
    %2549 = vmatprep.subr.bf16.mxu0 %v1839
    %2550 = vmatpush1.bf16.msra.mxu0 %v1838
    %2551 = vmatprep.subr.bf16.mxu0 %v1846
    %2552 = vmatpush1.bf16.msra.mxu0 %v1845
    %2553 = vmatprep.subr.bf16.mxu0 %v1853
    %2554 = vmatpush1.bf16.msra.mxu0 %v1852
    %2555 = vmatprep.subr.bf16.mxu0 %v1860
    %2556 = vmatpush1.bf16.msra.mxu0 %v1859
    %2557 = vmatprep.subr.bf16.mxu0 %v1867
    %2558 = vmatpush1.bf16.msra.mxu0 %v1866
    %2559 = vmatprep.subr.bf16.mxu0 %v1874
    %2560 = vmatpush1.bf16.msra.mxu0 %v1873
    %2561 = vmatprep.subr.bf16.mxu0 %v1881
    %2562 = vmatpush1.bf16.msra.mxu0 %v1880
    %2563 = vmatprep.subr.bf16.mxu0 %v1888
    %2564 = vmatpush1.bf16.msra.mxu0 %v1887
    %2565 = vmatprep.subr.bf16.mxu0 %v1895
    %2566 = vmatpush1.bf16.msra.mxu0 %v1894
    %2567 = vmatprep.subr.bf16.mxu0 %v1902
    %2568 = vmatpush1.bf16.msra.mxu0 %v1901
    %2569 = vmatprep.subr.bf16.mxu0 %v1909
    %2570 = vmatpush1.bf16.msra.mxu0 %v1908
    %2571 = vmatprep.subr.bf16.mxu0 %v1916
    %2572 = vmatpush1.bf16.msra.mxu0 %v1915
    %2573 = vmatprep.subr.bf16.mxu0 %v1923
    %2574 = vmatpush1.bf16.msra.mxu0 %v1922
    %2575 = vmatprep.subr.bf16.mxu0 %v1930
    %2576 = vmatpush1.bf16.msra.mxu0 %v1929
    %2577 = vmatprep.subr.bf16.mxu0 %v1937
    %2578 = vmatpush1.bf16.msra.mxu0 %v1936
    %2579 = vmatprep.mubr.bf16.mxu0 %v1625
    %2580 = vmatmul.mubr.bf16.gmra.mrb[0].mxu0 %v1624
    %v2581 = vpop.f32.mrb[0].mxu0
    %v2582 = vadd.f32 0.0, %v2581
    %v2583 = vpop.f32.mrb[0].mxu0
    %v2584 = vadd.f32 0.0, %v2583
    %v2585 = vpop.f32.mrb[0].mxu0
    %v2586 = vpop.f32.mrb[0].mxu0
    %2587 = vdwg.mxu0
    %2588 = vmatprep.subr.bf16.mxu0 %v1944
    %2589 = vmatpush1.bf16.msra.mxu0 %v1943
    %2590 = vmatprep.subr.bf16.mxu0 %v1951
    %2591 = vmatpush1.bf16.msra.mxu0 %v1950
    %2592 = vmatprep.subr.bf16.mxu0 %v1958
    %2593 = vmatpush1.bf16.msra.mxu0 %v1957
    %2594 = vmatprep.subr.bf16.mxu0 %v1965
    %2595 = vmatpush1.bf16.msra.mxu0 %v1964
    %2596 = vmatprep.subr.bf16.mxu0 %v1972
    %2597 = vmatpush1.bf16.msra.mxu0 %v1971
    %2598 = vmatprep.subr.bf16.mxu0 %v1979
    %2599 = vmatpush1.bf16.msra.mxu0 %v1978
    %2600 = vmatprep.subr.bf16.mxu0 %v1986
    %2601 = vmatpush1.bf16.msra.mxu0 %v1985
    %2602 = vmatprep.subr.bf16.mxu0 %v1993
    %2603 = vmatpush1.bf16.msra.mxu0 %v1992
    %2604 = vmatprep.subr.bf16.mxu0 %v2000
    %2605 = vmatpush1.bf16.msra.mxu0 %v1999
    %2606 = vmatprep.subr.bf16.mxu0 %v2007
    %2607 = vmatpush1.bf16.msra.mxu0 %v2006
    %2608 = vmatprep.subr.bf16.mxu0 %v2014
    %2609 = vmatpush1.bf16.msra.mxu0 %v2013
    %2610 = vmatprep.subr.bf16.mxu0 %v2021
    %2611 = vmatpush1.bf16.msra.mxu0 %v2020
    %2612 = vmatprep.subr.bf16.mxu0 %v2028
    %2613 = vmatpush1.bf16.msra.mxu0 %v2027
    %2614 = vmatprep.subr.bf16.mxu0 %v2035
    %2615 = vmatpush1.bf16.msra.mxu0 %v2034
    %2616 = vmatprep.subr.bf16.mxu0 %v2042
    %2617 = vmatpush1.bf16.msra.mxu0 %v2041
    %2618 = vmatprep.subr.bf16.mxu0 %v2049
    %2619 = vmatpush1.bf16.msra.mxu0 %v2048
    %2620 = vmatprep.mubr.bf16.mxu0 %v1627
    %2621 = vmatmul.mubr.bf16.gmra.mrb[0].mxu0 %v1626
    %v2622 = vpop.f32.mrb[0].mxu0
    %v2623 = vadd.f32 %v2582, %v2622
    %v2624 = vpop.f32.mrb[0].mxu0
    %v2625 = vadd.f32 %v2584, %v2624
    %v2626 = vpop.f32.mrb[0].mxu0
    %v2627 = vpop.f32.mrb[0].mxu0
    %2628 = vdwg.mxu0
    %2629 = vmatprep.subr.bf16.mxu0 %v2056
    %2630 = vmatpush1.bf16.msra.mxu0 %v2055
    %2631 = vmatprep.subr.bf16.mxu0 %v2063
    %2632 = vmatpush1.bf16.msra.mxu0 %v2062
    %2633 = vmatprep.subr.bf16.mxu0 %v2070
    %2634 = vmatpush1.bf16.msra.mxu0 %v2069
    %2635 = vmatprep.subr.bf16.mxu0 %v2077
    %2636 = vmatpush1.bf16.msra.mxu0 %v2076
    %2637 = vmatprep.subr.bf16.mxu0 %v2084
    %2638 = vmatpush1.bf16.msra.mxu0 %v2083
    %2639 = vmatprep.subr.bf16.mxu0 %v2091
    %2640 = vmatpush1.bf16.msra.mxu0 %v2090
    %2641 = vmatprep.subr.bf16.mxu0 %v2098
    %2642 = vmatpush1.bf16.msra.mxu0 %v2097
    %2643 = vmatprep.subr.bf16.mxu0 %v2105
    %2644 = vmatpush1.bf16.msra.mxu0 %v2104
    %2645 = vmatprep.subr.bf16.mxu0 %v2112
    %2646 = vmatpush1.bf16.msra.mxu0 %v2111
    %2647 = vmatprep.subr.bf16.mxu0 %v2119
    %2648 = vmatpush1.bf16.msra.mxu0 %v2118
    %2649 = vmatprep.subr.bf16.mxu0 %v2126
    %2650 = vmatpush1.bf16.msra.mxu0 %v2125
    %2651 = vmatprep.subr.bf16.mxu0 %v2133
    %2652 = vmatpush1.bf16.msra.mxu0 %v2132
    %2653 = vmatprep.subr.bf16.mxu0 %v2140
    %2654 = vmatpush1.bf16.msra.mxu0 %v2139
    %2655 = vmatprep.subr.bf16.mxu0 %v2147
    %2656 = vmatpush1.bf16.msra.mxu0 %v2146
    %2657 = vmatprep.subr.bf16.mxu0 %v2154
    %2658 = vmatpush1.bf16.msra.mxu0 %v2153
    %2659 = vmatprep.subr.bf16.mxu0 %v2161
    %2660 = vmatpush1.bf16.msra.mxu0 %v2160
    %2661 = vmatprep.mubr.bf16.mxu0 %v1629
    %2662 = vmatmul.mubr.bf16.gmra.mrb[0].mxu0 %v1628
    %v2663 = vpop.f32.mrb[0].mxu0
    %v2664 = vadd.f32 %v2623, %v2663
    %v2665 = vpop.f32.mrb[0].mxu0
    %v2666 = vadd.f32 %v2625, %v2665
    %v2667 = vpop.f32.mrb[0].mxu0
    %v2668 = vpop.f32.mrb[0].mxu0
    %2669 = vdwg.mxu0
    %2670 = vmatprep.subr.bf16.mxu0 %v2168
    %2671 = vmatpush1.bf16.msra.mxu0 %v2167
    %2672 = vmatprep.subr.bf16.mxu0 %v2175
    %2673 = vmatpush1.bf16.msra.mxu0 %v2174
    %2674 = vmatprep.subr.bf16.mxu0 %v2182
    %2675 = vmatpush1.bf16.msra.mxu0 %v2181
    %2676 = vmatprep.subr.bf16.mxu0 %v2189
    %2677 = vmatpush1.bf16.msra.mxu0 %v2188
    %2678 = vmatprep.subr.bf16.mxu0 %v2196
    %2679 = vmatpush1.bf16.msra.mxu0 %v2195
    %2680 = vmatprep.subr.bf16.mxu0 %v2203
    %2681 = vmatpush1.bf16.msra.mxu0 %v2202
    %2682 = vmatprep.subr.bf16.mxu0 %v2210
    %2683 = vmatpush1.bf16.msra.mxu0 %v2209
    %2684 = vmatprep.subr.bf16.mxu0 %v2217
    %2685 = vmatpush1.bf16.msra.mxu0 %v2216
    %2686 = vmatprep.subr.bf16.mxu0 0
    %2687 = vmatpush1.bf16.msra.mxu0 0
    %2688 = vmatprep.subr.bf16.mxu0 0
    %2689 = vmatpush1.bf16.msra.mxu0 0
    %2690 = vmatprep.subr.bf16.mxu0 0
    %2691 = vmatpush1.bf16.msra.mxu0 0
    %2692 = vmatprep.subr.bf16.mxu0 0
    %2693 = vmatpush1.bf16.msra.mxu0 0
    %2694 = vmatprep.subr.bf16.mxu0 0
    %2695 = vmatpush1.bf16.msra.mxu0 0
    %2696 = vmatprep.subr.bf16.mxu0 0
    %2697 = vmatpush1.bf16.msra.mxu0 0
    %2698 = vmatprep.subr.bf16.mxu0 0
    %2699 = vmatpush1.bf16.msra.mxu0 0
    %2700 = vmatprep.subr.bf16.mxu0 0
    %2701 = vmatpush1.bf16.msra.mxu0 0
    %2702 = vmatprep.mubr.bf16.mxu0 0
    %2703 = vmatmul.mubr.bf16.gmra.mrb[0].mxu0 %v1630
    %v2704 = vpop.f32.mrb[0].mxu0
    %v2705 = vadd.f32 %v2664, %v2704
    %v2706 = vpop.f32.mrb[0].mxu0
    %v2707 = vadd.f32 %v2666, %v2706
    %v2708 = vpop.f32.mrb[0].mxu0
    %v2709 = vpop.f32.mrb[0].mxu0
    %2710 = vdwg.mxu0
    %2711 = vmatprep.subr.bf16.mxu0 0
    %2712 = vmatpush1.bf16.msra.mxu0 %v1833
    %2713 = vmatprep.subr.bf16.mxu0 0
    %2714 = vmatpush1.bf16.msra.mxu0 %v1840
    %2715 = vmatprep.subr.bf16.mxu0 0
    %2716 = vmatpush1.bf16.msra.mxu0 %v1847
    %2717 = vmatprep.subr.bf16.mxu0 0
    %2718 = vmatpush1.bf16.msra.mxu0 %v1854
    %2719 = vmatprep.subr.bf16.mxu0 0
    %2720 = vmatpush1.bf16.msra.mxu0 %v1861
    %2721 = vmatprep.subr.bf16.mxu0 0
    %2722 = vmatpush1.bf16.msra.mxu0 %v1868
    %2723 = vmatprep.subr.bf16.mxu0 0
    %2724 = vmatpush1.bf16.msra.mxu0 %v1875
    %2725 = vmatprep.subr.bf16.mxu0 0
    %2726 = vmatpush1.bf16.msra.mxu0 %v1882
    %2727 = vmatprep.subr.bf16.mxu0 0
    %2728 = vmatpush1.bf16.msra.mxu0 %v1889
    %2729 = vmatprep.subr.bf16.mxu0 0
    %2730 = vmatpush1.bf16.msra.mxu0 %v1896
    %2731 = vmatprep.subr.bf16.mxu0 0
    %2732 = vmatpush1.bf16.msra.mxu0 %v1903
    %2733 = vmatprep.subr.bf16.mxu0 0
    %2734 = vmatpush1.bf16.msra.mxu0 %v1910
    %2735 = vmatprep.subr.bf16.mxu0 0
    %2736 = vmatpush1.bf16.msra.mxu0 %v1917
    %2737 = vmatprep.subr.bf16.mxu0 0
    %2738 = vmatpush1.bf16.msra.mxu0 %v1924
    %2739 = vmatprep.subr.bf16.mxu0 0
    %2740 = vmatpush1.bf16.msra.mxu0 %v1931
    %2741 = vmatprep.subr.bf16.mxu0 0
    %2742 = vmatpush1.bf16.msra.mxu0 %v1938
    %2743 = vmatprep.mubr.bf16.mxu0 %v1625
    %2744 = vmatmul.mubr.bf16.gmra.mrb[0].mxu0 %v1624
    %v2745 = vpop.f32.mrb[0].mxu0
    %v2746 = vadd.f32 0.0, %v2745
    %v2747 = vpop.f32.mrb[0].mxu0
    %v2748 = vpop.f32.mrb[0].mxu0
    %v2749 = vpop.f32.mrb[0].mxu0
    %2750 = vdwg.mxu0
    %2751 = vmatprep.subr.bf16.mxu0 0
    %2752 = vmatpush1.bf16.msra.mxu0 %v1945
    %2753 = vmatprep.subr.bf16.mxu0 0
    %2754 = vmatpush1.bf16.msra.mxu0 %v1952
    %2755 = vmatprep.subr.bf16.mxu0 0
    %2756 = vmatpush1.bf16.msra.mxu0 %v1959
    %2757 = vmatprep.subr.bf16.mxu0 0
    %2758 = vmatpush1.bf16.msra.mxu0 %v1966
    %2759 = vmatprep.subr.bf16.mxu0 0
    %2760 = vmatpush1.bf16.msra.mxu0 %v1973
    %2761 = vmatprep.subr.bf16.mxu0 0
    %2762 = vmatpush1.bf16.msra.mxu0 %v1980
    %2763 = vmatprep.subr.bf16.mxu0 0
    %2764 = vmatpush1.bf16.msra.mxu0 %v1987
    %2765 = vmatprep.subr.bf16.mxu0 0
    %2766 = vmatpush1.bf16.msra.mxu0 %v1994
    %2767 = vmatprep.subr.bf16.mxu0 0
    %2768 = vmatpush1.bf16.msra.mxu0 %v2001
    %2769 = vmatprep.subr.bf16.mxu0 0
    %2770 = vmatpush1.bf16.msra.mxu0 %v2008
    %2771 = vmatprep.subr.bf16.mxu0 0
    %2772 = vmatpush1.bf16.msra.mxu0 %v2015
    %2773 = vmatprep.subr.bf16.mxu0 0
    %2774 = vmatpush1.bf16.msra.mxu0 %v2022
    %2775 = vmatprep.subr.bf16.mxu0 0
    %2776 = vmatpush1.bf16.msra.mxu0 %v2029
    %2777 = vmatprep.subr.bf16.mxu0 0
    %2778 = vmatpush1.bf16.msra.mxu0 %v2036
    %2779 = vmatprep.subr.bf16.mxu0 0
    %2780 = vmatpush1.bf16.msra.mxu0 %v2043
    %2781 = vmatprep.subr.bf16.mxu0 0
    %2782 = vmatpush1.bf16.msra.mxu0 %v2050
    %2783 = vmatprep.mubr.bf16.mxu0 %v1627
    %2784 = vmatmul.mubr.bf16.gmra.mrb[0].mxu0 %v1626
    %v2785 = vpop.f32.mrb[0].mxu0
    %v2786 = vadd.f32 %v2746, %v2785
    %v2787 = vpop.f32.mrb[0].mxu0
    %v2788 = vpop.f32.mrb[0].mxu0
    %v2789 = vpop.f32.mrb[0].mxu0
    %2790 = vdwg.mxu0
    %2791 = vmatprep.subr.bf16.mxu0 0
    %2792 = vmatpush1.bf16.msra.mxu0 %v2057
    %2793 = vmatprep.subr.bf16.mxu0 0
    %2794 = vmatpush1.bf16.msra.mxu0 %v2064
    %2795 = vmatprep.subr.bf16.mxu0 0
    %2796 = vmatpush1.bf16.msra.mxu0 %v2071
    %2797 = vmatprep.subr.bf16.mxu0 0
    %2798 = vmatpush1.bf16.msra.mxu0 %v2078
    %2799 = vmatprep.subr.bf16.mxu0 0
    %2800 = vmatpush1.bf16.msra.mxu0 %v2085
    %2801 = vmatprep.subr.bf16.mxu0 0
    %2802 = vmatpush1.bf16.msra.mxu0 %v2092
    %2803 = vmatprep.subr.bf16.mxu0 0
    %2804 = vmatpush1.bf16.msra.mxu0 %v2099
    %2805 = vmatprep.subr.bf16.mxu0 0
    %2806 = vmatpush1.bf16.msra.mxu0 %v2106
    %2807 = vmatprep.subr.bf16.mxu0 0
    %2808 = vmatpush1.bf16.msra.mxu0 %v2113
    %2809 = vmatprep.subr.bf16.mxu0 0
    %2810 = vmatpush1.bf16.msra.mxu0 %v2120
    %2811 = vmatprep.subr.bf16.mxu0 0
    %2812 = vmatpush1.bf16.msra.mxu0 %v2127
    %2813 = vmatprep.subr.bf16.mxu0 0
    %2814 = vmatpush1.bf16.msra.mxu0 %v2134
    %2815 = vmatprep.subr.bf16.mxu0 0
    %2816 = vmatpush1.bf16.msra.mxu0 %v2141
    %2817 = vmatprep.subr.bf16.mxu0 0
    %2818 = vmatpush1.bf16.msra.mxu0 %v2148
    %2819 = vmatprep.subr.bf16.mxu0 0
    %2820 = vmatpush1.bf16.msra.mxu0 %v2155
    %2821 = vmatprep.subr.bf16.mxu0 0
    %2822 = vmatpush1.bf16.msra.mxu0 %v2162
    %2823 = vmatprep.mubr.bf16.mxu0 %v1629
    %2824 = vmatmul.mubr.bf16.gmra.mrb[0].mxu0 %v1628
    %v2825 = vpop.f32.mrb[0].mxu0
    %v2826 = vadd.f32 %v2786, %v2825
    %v2827 = vpop.f32.mrb[0].mxu0
    %v2828 = vpop.f32.mrb[0].mxu0
    %v2829 = vpop.f32.mrb[0].mxu0
    %2830 = vdwg.mxu0
    %2831 = vmatprep.subr.bf16.mxu0 0
    %2832 = vmatpush1.bf16.msra.mxu0 %v2169
    %2833 = vmatprep.subr.bf16.mxu0 0
    %2834 = vmatpush1.bf16.msra.mxu0 %v2176
    %2835 = vmatprep.subr.bf16.mxu0 0
    %2836 = vmatpush1.bf16.msra.mxu0 %v2183
    %2837 = vmatprep.subr.bf16.mxu0 0
    %2838 = vmatpush1.bf16.msra.mxu0 %v2190
    %2839 = vmatprep.subr.bf16.mxu0 0
    %2840 = vmatpush1.bf16.msra.mxu0 %v2197
    %2841 = vmatprep.subr.bf16.mxu0 0
    %2842 = vmatpush1.bf16.msra.mxu0 %v2204
    %2843 = vmatprep.subr.bf16.mxu0 0
    %2844 = vmatpush1.bf16.msra.mxu0 %v2211
    %2845 = vmatprep.subr.bf16.mxu0 0
    %2846 = vmatpush1.bf16.msra.mxu0 %v2218
    %2847 = vmatprep.subr.bf16.mxu0 0
    %2848 = vmatpush1.bf16.msra.mxu0 0
    %2849 = vmatprep.subr.bf16.mxu0 0
    %2850 = vmatpush1.bf16.msra.mxu0 0
    %2851 = vmatprep.subr.bf16.mxu0 0
    %2852 = vmatpush1.bf16.msra.mxu0 0
    %2853 = vmatprep.subr.bf16.mxu0 0
    %2854 = vmatpush1.bf16.msra.mxu0 0
    %2855 = vmatprep.subr.bf16.mxu0 0
    %2856 = vmatpush1.bf16.msra.mxu0 0
    %2857 = vmatprep.subr.bf16.mxu0 0
    %2858 = vmatpush1.bf16.msra.mxu0 0
    %2859 = vmatprep.subr.bf16.mxu0 0
    %2860 = vmatpush1.bf16.msra.mxu0 0
    %2861 = vmatprep.subr.bf16.mxu0 0
    %2862 = vmatpush1.bf16.msra.mxu0 0
    %2863 = vmatprep.mubr.bf16.mxu0 0
    %2864 = vmatmul.mubr.bf16.gmra.mrb[0].mxu0 %v1630
    %v2865 = vpop.f32.mrb[0].mxu0
    %v2866 = vadd.f32 %v2826, %v2865
    %v2867 = vpop.f32.mrb[0].mxu0
    %v2868 = vpop.f32.mrb[0].mxu0
    %v2869 = vpop.f32.mrb[0].mxu0
    %2870 = vdwg.mxu0
    %v2871 = vld [vmem:[%s11] sm:$0xff]
    %v2873 = vlaneseq
    %v2874 = vshrl.u32 %v2873, 7
    %v2875 = vsub.s32 0, %v2874
    %v2876 = vrot.slane %v2871, %v2875
    %v2877 = vlaneseq
    %v2878 = vshrl.u32 %v2877, 7
    %v2879 = vsub.s32 1, %v2878
    %v2880 = vrot.slane %v2871, %v2879
    %v2881 = vlaneseq
    %v2882 = vshrl.u32 %v2881, 7
    %v2883 = vsub.s32 2, %v2882
    %v2884 = vrot.slane %v2871, %v2883
    %v2885 = vlaneseq
    %v2886 = vshrl.u32 %v2885, 7
    %v2887 = vsub.s32 3, %v2886
    %v2888 = vrot.slane %v2871, %v2887
    %v2889 = vlaneseq
    %v2890 = vshrl.u32 %v2889, 7
    %v2891 = vsub.s32 4, %v2890
    %v2892 = vrot.slane %v2871, %v2891
    %v2893 = vlaneseq
    %v2894 = vshrl.u32 %v2893, 7
    %v2895 = vsub.s32 5, %v2894
    %v2896 = vrot.slane %v2871, %v2895
    %v2897 = vlaneseq
    %v2898 = vshrl.u32 %v2897, 7
    %v2899 = vsub.s32 6, %v2898
    %v2900 = vrot.slane %v2871, %v2899
    %v2908 = vmul.f32 %v2377, %v2876
    %v2909 = vmul.f32 %v2379, %v2880
    %v2910 = vmul.f32 %v2541, %v2884
    %v2911 = vmul.f32 %v2543, %v2888
    %v2912 = vmul.f32 %v2705, %v2892
    %v2913 = vmul.f32 %v2707, %v2896
    %v2914 = vmul.f32 %v2866, %v2900
    %v2915 = vld [vmem:[%s12] sm:$0xff]
    %v2917 = vlaneseq
    %v2918 = vshrl.u32 %v2917, 7
    %v2919 = vsub.s32 0, %v2918
    %v2920 = vrot.slane %v2915, %v2919
    %v2921 = vlaneseq
    %v2922 = vshrl.u32 %v2921, 7
    %v2923 = vsub.s32 1, %v2922
    %v2924 = vrot.slane %v2915, %v2923
    %v2925 = vlaneseq
    %v2926 = vshrl.u32 %v2925, 7
    %v2927 = vsub.s32 2, %v2926
    %v2928 = vrot.slane %v2915, %v2927
    %v2929 = vlaneseq
    %v2930 = vshrl.u32 %v2929, 7
    %v2931 = vsub.s32 3, %v2930
    %v2932 = vrot.slane %v2915, %v2931
    %v2933 = vlaneseq
    %v2934 = vshrl.u32 %v2933, 7
    %v2935 = vsub.s32 4, %v2934
    %v2936 = vrot.slane %v2915, %v2935
    %v2937 = vlaneseq
    %v2938 = vshrl.u32 %v2937, 7
    %v2939 = vsub.s32 5, %v2938
    %v2940 = vrot.slane %v2915, %v2939
    %v2941 = vlaneseq
    %v2942 = vshrl.u32 %v2941, 7
    %v2943 = vsub.s32 6, %v2942
    %v2944 = vrot.slane %v2915, %v2943
    %v2952 = vadd.f32 %v2908, %v2920
    %v2953 = vadd.f32 %v2909, %v2924
    %v2954 = vadd.f32 %v2910, %v2928
    %v2955 = vadd.f32 %v2911, %v2932
    %v2956 = vadd.f32 %v2912, %v2936
    %v2957 = vadd.f32 %v2913, %v2940
    %v2958 = vadd.f32 %v2914, %v2944
    %v2959 = vxor.u32 %v2952, 2147483648
    %v2960 = vxor.u32 %v2953, 2147483648
    %v2961 = vxor.u32 %v2954, 2147483648
    %v2962 = vxor.u32 %v2955, 2147483648
    %v2963 = vxor.u32 %v2956, 2147483648
    %v2964 = vxor.u32 %v2957, 2147483648
    %v2965 = vxor.u32 %v2958, 2147483648
    %v2966 = vmul.f32 %v2959, 1.442695
    %v2967 = vpow.pop %v2966
    %v2968 = vmul.f32 %v2960, 1.442695
    %v2969 = vpow.pop %v2968
    %v2970 = vmul.f32 %v2961, 1.442695
    %v2971 = vpow.pop %v2970
    %v2972 = vmul.f32 %v2962, 1.442695
    %v2973 = vpow.pop %v2972
    %v2974 = vmul.f32 %v2963, 1.442695
    %v2975 = vpow.pop %v2974
    %v2976 = vmul.f32 %v2964, 1.442695
    %v2977 = vpow.pop %v2976
    %v2978 = vmul.f32 %v2965, 1.442695
    %v2979 = vpow.pop %v2978
    %v2980 = vadd.f32 %v2967, 1.0
    %v2981 = vadd.f32 %v2969, 1.0
    %v2982 = vadd.f32 %v2971, 1.0
    %v2983 = vadd.f32 %v2973, 1.0
    %v2984 = vadd.f32 %v2975, 1.0
    %v2985 = vadd.f32 %v2977, 1.0
    %v2986 = vadd.f32 %v2979, 1.0
    %v2987 = vrcp.pop %v2980
    %v2988 = vmul.f32 1.0, %v2987
    %v2989 = vrcp.pop %v2981
    %v2990 = vmul.f32 1.0, %v2989
    %v2991 = vrcp.pop %v2982
    %v2992 = vmul.f32 1.0, %v2991
    %v2993 = vrcp.pop %v2983
    %v2994 = vmul.f32 1.0, %v2993
    %v2995 = vrcp.pop %v2984
    %v2996 = vmul.f32 1.0, %v2995
    %v2997 = vrcp.pop %v2985
    %v2998 = vmul.f32 1.0, %v2997
    %v2999 = vrcp.pop %v2986
    %v3000 = vmul.f32 1.0, %v2999
    %3001 = vst [vmem:[#allocation14] sm:$0xff] %v2988
    %3002 = vst [vmem:[#allocation14 + $0x8] sm:$0xff] %v2990
    %3003 = vst [vmem:[#allocation14 + $0x10] sm:$0xff] %v2992
    %3004 = vst [vmem:[#allocation14 + $0x18] sm:$0xff] %v2994
    %3005 = vst [vmem:[#allocation14 + $0x20] sm:$0xff] %v2996
    %3006 = vst [vmem:[#allocation14 + $0x28] sm:$0xff] %v2998
    %3007 = vst [vmem:[#allocation14 + $0x30] sm:$0xff] %v3000
    // Predicated region
    $region82: #{decoder_forward.1} parent=1 // pred_check
      _
    $region83: #{decoder_forward.1} parent=1 // pred_check_branch
      %3009 = sbr.rel (0) target = $region85
    $region84: #{decoder_forward.1} parent=1 // pred_region
      %s3011 = ssub.s32 896, 896
      %3012 = vsyncadd [#allocation4], %s3011
      %s3014 = sshll.u32 [#allocation14], 4
      %s3015 = int_to_ptr.vmem [resolvable:$true] %s3014
      %3017 = dma.vmem_to_hbm [thread:$0]  %s3015, 896, %s13, [#allocation4]
    $region85: #{decoder_forward.1} parent=1 // pred_fallthru
      _
    // Predicated region
    $region86: #{decoder_forward.1} parent=1 // pred_check
      _
    $region87: #{decoder_forward.1} parent=1 // pred_check_branch
      %3019 = sbr.rel (0) target = $region89
    $region88: #{decoder_forward.1} parent=1 // pred_region
      %3020 = dma.done [#allocation4], 896
    $region89: #{decoder_forward.1} parent=1 // pred_fallthru
      _
    %3021 = vsyncpa [#allocation3], 1
    %3022 = vsyncpa [#allocation6], 1
    %3023 = vsyncpa [#allocation9], 1
    %3024 = vsyncpa [#allocation12], 1
    %3025 = vsyncpa [#allocation4], 1

</llo_original>
